<compile_context>
chip_gen: v7x
topology: tpu7x:2x2x1
jax: 0.10.0
libtpu: 0.0.40
codegen_flags: <defaults>
</compile_context>

<pallas_src>
import jax
import jax.numpy as jnp
from jax.experimental import pallas as pl
from jax.experimental.pallas import tpu as pltpu

BN_EPS = 1e-5
_PAD = 8  # canvas tail padding (needs >= 2 so tap slices never run off the end)


# ----------------------------------------------------------------------------
# Fused VGGBlock kernel: conv3x3(valid)+BN+ReLU -> conv3x3(valid)+BN+ReLU
# ----------------------------------------------------------------------------
def make_vgg_block(H, W, Cin, Cmid, Cout):
    assert H >= 5 and W >= 5, "need at least a 5x5 image for two valid 3x3 convs"
    L = H * W + _PAD          # flattened canvas length per image
    M = (H - 2) * W           # full-width output positions per conv (MXU M dim)
    assert 2 * W + 2 + M <= L  # tap slices stay inside the canvas

    def kernel(x_ref, w1_ref, b1_ref, w2_ref, b2_ref, o_ref, mid_ref):
        # ---- stage 1: conv1 (+ folded BN1) + ReLU ------------------------------
        acc = jnp.zeros((M, Cmid), jnp.float32)
        for dy in range(3):
            for dx in range(3):
                off = dy * W + dx
                acc = acc + jnp.dot(x_ref[pl.ds(off, M), :], w1_ref[dy, dx],
                                    preferred_element_type=jnp.float32)
        mid_ref[pl.ds(0, M), :] = jnp.maximum(acc + b1_ref[...], 0.0)
        # zero the tail so stage-2 tap slices read finite (and irrelevant) values
        mid_ref[pl.ds(M, L - M), :] = jnp.zeros((L - M, Cmid), jnp.float32)

        # ---- stage 2: conv2 (+ folded BN2) + ReLU ------------------------------
        acc2 = jnp.zeros((M, Cout), jnp.float32)
        for dy in range(3):
            for dx in range(3):
                off = dy * W + dx
                acc2 = acc2 + jnp.dot(mid_ref[pl.ds(off, M), :], w2_ref[dy, dx],
                                      preferred_element_type=jnp.float32)
        o_ref[pl.ds(0, M), :] = jnp.maximum(acc2 + b2_ref[...], 0.0)
        o_ref[pl.ds(M, L - M), :] = jnp.zeros((L - M, Cout), jnp.float32)

    def call(x_canvas, w1, b1, w2, b2):
        N = x_canvas.shape[0]
        return pl.pallas_call(
            kernel,
            out_shape=jax.ShapeDtypeStruct((N, L, Cout), jnp.float32),
            grid_spec=pltpu.PrefetchScalarGridSpec(
                num_scalar_prefetch=0,
                grid=(N,),
                in_specs=[
                    pl.BlockSpec((None, L, Cin), lambda n: (n, 0, 0)),
                    pl.BlockSpec((3, 3, Cin, Cmid), lambda n: (0, 0, 0, 0)),
                    pl.BlockSpec((1, Cmid), lambda n: (0, 0)),
                    pl.BlockSpec((3, 3, Cmid, Cout), lambda n: (0, 0, 0, 0)),
                    pl.BlockSpec((1, Cout), lambda n: (0, 0)),
                ],
                out_specs=pl.BlockSpec((None, L, Cout), lambda n: (n, 0, 0)),
                scratch_shapes=[pltpu.VMEM((L, Cmid), jnp.float32)],
            ),
            compiler_params=pltpu.CompilerParams(
                dimension_semantics=("parallel",)),
        )(x_canvas, w1, b1, w2, b2)

    return call


# ----------------------------------------------------------------------------
# Parameters: PyTorch-style raw params + BN folding at prep time
# ----------------------------------------------------------------------------
def init_raw_params(key, cin, cmid, cout):
    ks = list(jax.random.split(key, 12))

    def conv(kw, kb, ci, co):
        bound = (9 * ci) ** -0.5                       # PyTorch Conv2d default init
        w = jax.random.uniform(kw, (3, 3, ci, co), jnp.float32, -bound, bound)
        b = jax.random.uniform(kb, (co,), jnp.float32, -bound, bound)
        return w, b

    def bn(kg, kb, km, kv, co):
        return dict(
            gamma=1.0 + 0.1 * jax.random.normal(kg, (co,), jnp.float32),
            beta=0.1 * jax.random.normal(kb, (co,), jnp.float32),
            mean=0.1 * jax.random.normal(km, (co,), jnp.float32),
            var=jax.random.uniform(kv, (co,), jnp.float32, 0.5, 1.5))

    w1, cb1 = conv(ks[0], ks[1], cin, cmid)
    w2, cb2 = conv(ks[2], ks[3], cmid, cout)
    return dict(w1=w1, cb1=cb1, bn1=bn(ks[4], ks[5], ks[6], ks[7], cmid),
                w2=w2, cb2=cb2, bn2=bn(ks[8], ks[9], ks[10], ks[11], cout))


def _fold_bn(w_hwio, conv_b, bn):
    scale = bn["gamma"] / jnp.sqrt(bn["var"] + BN_EPS)     # per output channel
    w_eff = w_hwio * scale                                 # broadcast over O dim
    b_eff = (conv_b - bn["mean"]) * scale + bn["beta"]
    return w_eff, b_eff


def prepare_params(raw):
    w1, b1 = _fold_bn(raw["w1"], raw["cb1"], raw["bn1"])
    w2, b2 = _fold_bn(raw["w2"], raw["cb2"], raw["bn2"])
    return dict(w1=w1, b1=b1.reshape(1, -1), w2=w2, b2=b2.reshape(1, -1))


# ----------------------------------------------------------------------------
# Forward pass (NCHW in, NCHW out — matches the PyTorch module)
# ----------------------------------------------------------------------------
def vgg_block_forward(params, x_nchw):
    N, Cin, H, W = x_nchw.shape
    Cmid = params["w1"].shape[-1]
    Cout = params["w2"].shape[-1]
    # NCHW -> NHWC -> flattened, tail-padded canvas (single cheap layout change)
    x = jnp.transpose(x_nchw, (0, 2, 3, 1)).astype(jnp.float32)
    x_canvas = jnp.pad(x.reshape(N, H * W, Cin), ((0, 0), (0, _PAD), (0, 0)))

    call = make_vgg_block(H, W, Cin, Cmid, Cout)
    y_canvas = call(x_canvas, params["w1"], params["b1"],
                    params["w2"], params["b2"])

    # extract the valid (H-4) x (W-4) region and return NCHW like PyTorch
    y = y_canvas[:, :H * W, :].reshape(N, H, W, Cout)[:, :H - 4, :W - 4, :]
    return jnp.transpose(y, (0, 3, 1, 2))


# ----------------------------------------------------------------------------
# Pure-JAX reference (un-folded BN) for a correctness sanity check
# ----------------------------------------------------------------------------
def vgg_block_reference(raw, x_nchw):
    def stage(x, w, cb, bn):
        y = jax.lax.conv_general_dilated(
            x, w, (1, 1), "VALID",
            dimension_numbers=("NHWC", "HWIO", "NHWC")) + cb
        y = (y - bn["mean"]) / jnp.sqrt(bn["var"] + BN_EPS) * bn["gamma"] + bn["beta"]
        return jnp.maximum(y, 0.0)

    x = jnp.transpose(x_nchw, (0, 2, 3, 1)).astype(jnp.float32)
    y = stage(x, raw["w1"], raw["cb1"], raw["bn1"])
    y = stage(y, raw["w2"], raw["cb2"], raw["bn2"])
    return jnp.transpose(y, (0, 3, 1, 2))


if __name__ == "__main__":
    key = jax.random.PRNGKey(0)
    pkey, xkey = jax.random.split(key)

    N, Cin, H, W = 2, 3, 16, 16          # small shapes; VGGBlock(3, 32, 64)
    Cmid, Cout = 32, 64

    raw = init_raw_params(pkey, Cin, Cmid, Cout)
    params = prepare_params(raw)          # BN folded into conv weights/bias here
    x = jax.random.normal(xkey, (N, Cin, H, W), jnp.float32)

    fwd = jax.jit(vgg_block_forward)
    y = jax.block_until_ready(fwd(params, x))

    assert y.shape == (N, Cout, H - 4, W - 4), y.shape
    assert bool(jnp.all(jnp.isfinite(y)))

    y_ref = vgg_block_reference(raw, x)
    assert bool(jnp.allclose(y, y_ref, atol=5e-2, rtol=5e-2)), \
        float(jnp.max(jnp.abs(y - y_ref)))

    print("KERNEL_OK")
</pallas_src>

<mosaic_0001>
module attributes {stable_mosaic.version = 11 : i64} {
  func.func @kernel(%arg0: i32, %arg1: memref<1x264x3xf32, #tpu.memory_space<vmem>>, %arg2: memref<3x3x3x32xf32, #tpu.memory_space<vmem>>, %arg3: memref<1x32xf32, #tpu.memory_space<vmem>>, %arg4: memref<3x3x32x64xf32, #tpu.memory_space<vmem>>, %arg5: memref<1x64xf32, #tpu.memory_space<vmem>>, %arg6: memref<1x264x64xf32, #tpu.memory_space<vmem>>, %arg7: memref<264x32xf32, #tpu.memory_space<vmem>>) attributes {dimension_semantics = [#tpu.dimension_semantics<parallel>], iteration_bounds = array<i64: 2>, scalar_prefetch = 0 : i64, scratch_operands = 1 : i64, tpu.core_type = #tpu.core_type<tc>, window_params = [{transform_indices = @transform_0, window_bounds = array<i64: 1, 264, 3>}, {pipeline_mode = #tpu.pipeline_mode<synchronous>, transform_indices = @transform_1, window_bounds = array<i64: 3, 3, 3, 32>}, {pipeline_mode = #tpu.pipeline_mode<synchronous>, transform_indices = @transform_2, window_bounds = array<i64: 1, 32>}, {pipeline_mode = #tpu.pipeline_mode<synchronous>, transform_indices = @transform_3, window_bounds = array<i64: 3, 3, 32, 64>}, {pipeline_mode = #tpu.pipeline_mode<synchronous>, transform_indices = @transform_4, window_bounds = array<i64: 1, 64>}, {transform_indices = @transform_5, window_bounds = array<i64: 1, 264, 64>}]} {
    %cst = arith.constant 0.000000e+00 : f32
    %0 = vector.broadcast %cst : f32 to vector<224x32xf32>
    %c0 = arith.constant 0 : index
    %c0_0 = arith.constant 0 : index
    %c0_1 = arith.constant 0 : index
    %1 = vector.load %arg1[%c0, %c0_0, %c0_1] : memref<1x264x3xf32, #tpu.memory_space<vmem>>, vector<1x224x3xf32>
    %2 = vector.shape_cast %1 : vector<1x224x3xf32> to vector<224x3xf32>
    %c0_2 = arith.constant 0 : index
    %c0_3 = arith.constant 0 : index
    %c0_4 = arith.constant 0 : index
    %c0_5 = arith.constant 0 : index
    %3 = vector.load %arg2[%c0_2, %c0_3, %c0_4, %c0_5] : memref<3x3x3x32xf32, #tpu.memory_space<vmem>>, vector<1x1x3x32xf32>
    %4 = vector.shape_cast %3 : vector<1x1x3x32xf32> to vector<3x32xf32>
    %cst_6 = arith.constant dense<0.000000e+00> : vector<224x32xf32>
    %5 = tpu.matmul %2, %4, %cst_6 {dimension_numbers = #tpu.dot_dimension_numbers<[1], [0], [0], [1], [0, 0, 1, 1], [], []>} : vector<224x3xf32>, vector<3x32xf32>, vector<224x32xf32> -> vector<224x32xf32>
    %6 = arith.addf %0, %5 : vector<224x32xf32>
    %c0_7 = arith.constant 0 : index
    %c1 = arith.constant 1 : index
    %c0_8 = arith.constant 0 : index
    %7 = vector.load %arg1[%c0_7, %c1, %c0_8] : memref<1x264x3xf32, #tpu.memory_space<vmem>>, vector<1x224x3xf32>
    %8 = vector.shape_cast %7 : vector<1x224x3xf32> to vector<224x3xf32>
    %c0_9 = arith.constant 0 : index
    %c1_10 = arith.constant 1 : index
    %c0_11 = arith.constant 0 : index
    %c0_12 = arith.constant 0 : index
    %9 = vector.load %arg2[%c0_9, %c1_10, %c0_11, %c0_12] : memref<3x3x3x32xf32, #tpu.memory_space<vmem>>, vector<1x1x3x32xf32>
    %10 = vector.shape_cast %9 : vector<1x1x3x32xf32> to vector<3x32xf32>
    %cst_13 = arith.constant dense<0.000000e+00> : vector<224x32xf32>
    %11 = tpu.matmul %8, %10, %cst_13 {dimension_numbers = #tpu.dot_dimension_numbers<[1], [0], [0], [1], [0, 0, 1, 1], [], []>} : vector<224x3xf32>, vector<3x32xf32>, vector<224x32xf32> -> vector<224x32xf32>
    %12 = arith.addf %6, %11 : vector<224x32xf32>
    %c0_14 = arith.constant 0 : index
    %c2 = arith.constant 2 : index
    %c0_15 = arith.constant 0 : index
    %13 = vector.load %arg1[%c0_14, %c2, %c0_15] : memref<1x264x3xf32, #tpu.memory_space<vmem>>, vector<1x224x3xf32>
    %14 = vector.shape_cast %13 : vector<1x224x3xf32> to vector<224x3xf32>
    %c0_16 = arith.constant 0 : index
    %c2_17 = arith.constant 2 : index
    %c0_18 = arith.constant 0 : index
    %c0_19 = arith.constant 0 : index
    %15 = vector.load %arg2[%c0_16, %c2_17, %c0_18, %c0_19] : memref<3x3x3x32xf32, #tpu.memory_space<vmem>>, vector<1x1x3x32xf32>
    %16 = vector.shape_cast %15 : vector<1x1x3x32xf32> to vector<3x32xf32>
    %cst_20 = arith.constant dense<0.000000e+00> : vector<224x32xf32>
    %17 = tpu.matmul %14, %16, %cst_20 {dimension_numbers = #tpu.dot_dimension_numbers<[1], [0], [0], [1], [0, 0, 1, 1], [], []>} : vector<224x3xf32>, vector<3x32xf32>, vector<224x32xf32> -> vector<224x32xf32>
    %18 = arith.addf %12, %17 : vector<224x32xf32>
    %c0_21 = arith.constant 0 : index
    %c16 = arith.constant 16 : index
    %c0_22 = arith.constant 0 : index
    %19 = vector.load %arg1[%c0_21, %c16, %c0_22] : memref<1x264x3xf32, #tpu.memory_space<vmem>>, vector<1x224x3xf32>
    %20 = vector.shape_cast %19 : vector<1x224x3xf32> to vector<224x3xf32>
    %c1_23 = arith.constant 1 : index
    %c0_24 = arith.constant 0 : index
    %c0_25 = arith.constant 0 : index
    %c0_26 = arith.constant 0 : index
    %21 = vector.load %arg2[%c1_23, %c0_24, %c0_25, %c0_26] : memref<3x3x3x32xf32, #tpu.memory_space<vmem>>, vector<1x1x3x32xf32>
    %22 = vector.shape_cast %21 : vector<1x1x3x32xf32> to vector<3x32xf32>
    %cst_27 = arith.constant dense<0.000000e+00> : vector<224x32xf32>
    %23 = tpu.matmul %20, %22, %cst_27 {dimension_numbers = #tpu.dot_dimension_numbers<[1], [0], [0], [1], [0, 0, 1, 1], [], []>} : vector<224x3xf32>, vector<3x32xf32>, vector<224x32xf32> -> vector<224x32xf32>
    %24 = arith.addf %18, %23 : vector<224x32xf32>
    %c0_28 = arith.constant 0 : index
    %c17 = arith.constant 17 : index
    %c0_29 = arith.constant 0 : index
    %25 = vector.load %arg1[%c0_28, %c17, %c0_29] : memref<1x264x3xf32, #tpu.memory_space<vmem>>, vector<1x224x3xf32>
    %26 = vector.shape_cast %25 : vector<1x224x3xf32> to vector<224x3xf32>
    %c1_30 = arith.constant 1 : index
    %c1_31 = arith.constant 1 : index
    %c0_32 = arith.constant 0 : index
    %c0_33 = arith.constant 0 : index
    %27 = vector.load %arg2[%c1_30, %c1_31, %c0_32, %c0_33] : memref<3x3x3x32xf32, #tpu.memory_space<vmem>>, vector<1x1x3x32xf32>
    %28 = vector.shape_cast %27 : vector<1x1x3x32xf32> to vector<3x32xf32>
    %cst_34 = arith.constant dense<0.000000e+00> : vector<224x32xf32>
    %29 = tpu.matmul %26, %28, %cst_34 {dimension_numbers = #tpu.dot_dimension_numbers<[1], [0], [0], [1], [0, 0, 1, 1], [], []>} : vector<224x3xf32>, vector<3x32xf32>, vector<224x32xf32> -> vector<224x32xf32>
    %30 = arith.addf %24, %29 : vector<224x32xf32>
    %c0_35 = arith.constant 0 : index
    %c18 = arith.constant 18 : index
    %c0_36 = arith.constant 0 : index
    %31 = vector.load %arg1[%c0_35, %c18, %c0_36] : memref<1x264x3xf32, #tpu.memory_space<vmem>>, vector<1x224x3xf32>
    %32 = vector.shape_cast %31 : vector<1x224x3xf32> to vector<224x3xf32>
    %c1_37 = arith.constant 1 : index
    %c2_38 = arith.constant 2 : index
    %c0_39 = arith.constant 0 : index
    %c0_40 = arith.constant 0 : index
    %33 = vector.load %arg2[%c1_37, %c2_38, %c0_39, %c0_40] : memref<3x3x3x32xf32, #tpu.memory_space<vmem>>, vector<1x1x3x32xf32>
    %34 = vector.shape_cast %33 : vector<1x1x3x32xf32> to vector<3x32xf32>
    %cst_41 = arith.constant dense<0.000000e+00> : vector<224x32xf32>
    %35 = tpu.matmul %32, %34, %cst_41 {dimension_numbers = #tpu.dot_dimension_numbers<[1], [0], [0], [1], [0, 0, 1, 1], [], []>} : vector<224x3xf32>, vector<3x32xf32>, vector<224x32xf32> -> vector<224x32xf32>
    %36 = arith.addf %30, %35 : vector<224x32xf32>
    %c0_42 = arith.constant 0 : index
    %c32 = arith.constant 32 : index
    %c0_43 = arith.constant 0 : index
    %37 = vector.load %arg1[%c0_42, %c32, %c0_43] : memref<1x264x3xf32, #tpu.memory_space<vmem>>, vector<1x224x3xf32>
    %38 = vector.shape_cast %37 : vector<1x224x3xf32> to vector<224x3xf32>
    %c2_44 = arith.constant 2 : index
    %c0_45 = arith.constant 0 : index
    %c0_46 = arith.constant 0 : index
    %c0_47 = arith.constant 0 : index
    %39 = vector.load %arg2[%c2_44, %c0_45, %c0_46, %c0_47] : memref<3x3x3x32xf32, #tpu.memory_space<vmem>>, vector<1x1x3x32xf32>
    %40 = vector.shape_cast %39 : vector<1x1x3x32xf32> to vector<3x32xf32>
    %cst_48 = arith.constant dense<0.000000e+00> : vector<224x32xf32>
    %41 = tpu.matmul %38, %40, %cst_48 {dimension_numbers = #tpu.dot_dimension_numbers<[1], [0], [0], [1], [0, 0, 1, 1], [], []>} : vector<224x3xf32>, vector<3x32xf32>, vector<224x32xf32> -> vector<224x32xf32>
    %42 = arith.addf %36, %41 : vector<224x32xf32>
    %c0_49 = arith.constant 0 : index
    %c33 = arith.constant 33 : index
    %c0_50 = arith.constant 0 : index
    %43 = vector.load %arg1[%c0_49, %c33, %c0_50] : memref<1x264x3xf32, #tpu.memory_space<vmem>>, vector<1x224x3xf32>
    %44 = vector.shape_cast %43 : vector<1x224x3xf32> to vector<224x3xf32>
    %c2_51 = arith.constant 2 : index
    %c1_52 = arith.constant 1 : index
    %c0_53 = arith.constant 0 : index
    %c0_54 = arith.constant 0 : index
    %45 = vector.load %arg2[%c2_51, %c1_52, %c0_53, %c0_54] : memref<3x3x3x32xf32, #tpu.memory_space<vmem>>, vector<1x1x3x32xf32>
    %46 = vector.shape_cast %45 : vector<1x1x3x32xf32> to vector<3x32xf32>
    %cst_55 = arith.constant dense<0.000000e+00> : vector<224x32xf32>
    %47 = tpu.matmul %44, %46, %cst_55 {dimension_numbers = #tpu.dot_dimension_numbers<[1], [0], [0], [1], [0, 0, 1, 1], [], []>} : vector<224x3xf32>, vector<3x32xf32>, vector<224x32xf32> -> vector<224x32xf32>
    %48 = arith.addf %42, %47 : vector<224x32xf32>
    %c0_56 = arith.constant 0 : index
    %c34 = arith.constant 34 : index
    %c0_57 = arith.constant 0 : index
    %49 = vector.load %arg1[%c0_56, %c34, %c0_57] : memref<1x264x3xf32, #tpu.memory_space<vmem>>, vector<1x224x3xf32>
    %50 = vector.shape_cast %49 : vector<1x224x3xf32> to vector<224x3xf32>
    %c2_58 = arith.constant 2 : index
    %c2_59 = arith.constant 2 : index
    %c0_60 = arith.constant 0 : index
    %c0_61 = arith.constant 0 : index
    %51 = vector.load %arg2[%c2_58, %c2_59, %c0_60, %c0_61] : memref<3x3x3x32xf32, #tpu.memory_space<vmem>>, vector<1x1x3x32xf32>
    %52 = vector.shape_cast %51 : vector<1x1x3x32xf32> to vector<3x32xf32>
    %cst_62 = arith.constant dense<0.000000e+00> : vector<224x32xf32>
    %53 = tpu.matmul %50, %52, %cst_62 {dimension_numbers = #tpu.dot_dimension_numbers<[1], [0], [0], [1], [0, 0, 1, 1], [], []>} : vector<224x3xf32>, vector<3x32xf32>, vector<224x32xf32> -> vector<224x32xf32>
    %54 = arith.addf %48, %53 : vector<224x32xf32>
    %c0_63 = arith.constant 0 : index
    %c0_64 = arith.constant 0 : index
    %55 = vector.load %arg3[%c0_63, %c0_64] : memref<1x32xf32, #tpu.memory_space<vmem>>, vector<1x32xf32>
    %56 = vector.broadcast %55 : vector<1x32xf32> to vector<224x32xf32>
    %57 = arith.addf %54, %56 : vector<224x32xf32>
    %cst_65 = arith.constant 0.000000e+00 : f32
    %58 = vector.broadcast %cst_65 : f32 to vector<224x32xf32>
    %59 = arith.maximumf %57, %58 : vector<224x32xf32>
    %c0_66 = arith.constant 0 : index
    %c0_67 = arith.constant 0 : index
    %60 = vector.load %arg7[%c0_66, %c0_67] : memref<264x32xf32, #tpu.memory_space<vmem>>, vector<224x32xf32>
    tpu.vector_store %arg7[%c0_66, %c0_67], %59 {strides = array<i32>} : memref<264x32xf32, #tpu.memory_space<vmem>>, vector<224x32xf32>,
    %cst_68 = arith.constant 0.000000e+00 : f32
    %61 = vector.broadcast %cst_68 : f32 to vector<40x32xf32>
    %c224 = arith.constant 224 : index
    %c0_69 = arith.constant 0 : index
    %62 = vector.load %arg7[%c224, %c0_69] : memref<264x32xf32, #tpu.memory_space<vmem>>, vector<40x32xf32>
    tpu.vector_store %arg7[%c224, %c0_69], %61 {strides = array<i32>} : memref<264x32xf32, #tpu.memory_space<vmem>>, vector<40x32xf32>,
    %cst_70 = arith.constant 0.000000e+00 : f32
    %63 = vector.broadcast %cst_70 : f32 to vector<224x64xf32>
    %c0_71 = arith.constant 0 : index
    %c0_72 = arith.constant 0 : index
    %64 = vector.load %arg7[%c0_71, %c0_72] : memref<264x32xf32, #tpu.memory_space<vmem>>, vector<224x32xf32>
    %c0_73 = arith.constant 0 : index
    %c0_74 = arith.constant 0 : index
    %c0_75 = arith.constant 0 : index
    %c0_76 = arith.constant 0 : index
    %65 = vector.load %arg4[%c0_73, %c0_74, %c0_75, %c0_76] : memref<3x3x32x64xf32, #tpu.memory_space<vmem>>, vector<1x1x32x64xf32>
    %66 = vector.shape_cast %65 : vector<1x1x32x64xf32> to vector<32x64xf32>
    %cst_77 = arith.constant dense<0.000000e+00> : vector<224x64xf32>
    %67 = tpu.matmul %64, %66, %cst_77 {dimension_numbers = #tpu.dot_dimension_numbers<[1], [0], [0], [1], [0, 0, 1, 1], [], []>} : vector<224x32xf32>, vector<32x64xf32>, vector<224x64xf32> -> vector<224x64xf32>
    %68 = arith.addf %63, %67 : vector<224x64xf32>
    %c1_78 = arith.constant 1 : index
    %c0_79 = arith.constant 0 : index
    %69 = vector.load %arg7[%c1_78, %c0_79] : memref<264x32xf32, #tpu.memory_space<vmem>>, vector<224x32xf32>
    %c0_80 = arith.constant 0 : index
    %c1_81 = arith.constant 1 : index
    %c0_82 = arith.constant 0 : index
    %c0_83 = arith.constant 0 : index
    %70 = vector.load %arg4[%c0_80, %c1_81, %c0_82, %c0_83] : memref<3x3x32x64xf32, #tpu.memory_space<vmem>>, vector<1x1x32x64xf32>
    %71 = vector.shape_cast %70 : vector<1x1x32x64xf32> to vector<32x64xf32>
    %cst_84 = arith.constant dense<0.000000e+00> : vector<224x64xf32>
    %72 = tpu.matmul %69, %71, %cst_84 {dimension_numbers = #tpu.dot_dimension_numbers<[1], [0], [0], [1], [0, 0, 1, 1], [], []>} : vector<224x32xf32>, vector<32x64xf32>, vector<224x64xf32> -> vector<224x64xf32>
    %73 = arith.addf %68, %72 : vector<224x64xf32>
    %c2_85 = arith.constant 2 : index
    %c0_86 = arith.constant 0 : index
    %74 = vector.load %arg7[%c2_85, %c0_86] : memref<264x32xf32, #tpu.memory_space<vmem>>, vector<224x32xf32>
    %c0_87 = arith.constant 0 : index
    %c2_88 = arith.constant 2 : index
    %c0_89 = arith.constant 0 : index
    %c0_90 = arith.constant 0 : index
    %75 = vector.load %arg4[%c0_87, %c2_88, %c0_89, %c0_90] : memref<3x3x32x64xf32, #tpu.memory_space<vmem>>, vector<1x1x32x64xf32>
    %76 = vector.shape_cast %75 : vector<1x1x32x64xf32> to vector<32x64xf32>
    %cst_91 = arith.constant dense<0.000000e+00> : vector<224x64xf32>
    %77 = tpu.matmul %74, %76, %cst_91 {dimension_numbers = #tpu.dot_dimension_numbers<[1], [0], [0], [1], [0, 0, 1, 1], [], []>} : vector<224x32xf32>, vector<32x64xf32>, vector<224x64xf32> -> vector<224x64xf32>
    %78 = arith.addf %73, %77 : vector<224x64xf32>
    %c16_92 = arith.constant 16 : index
    %c0_93 = arith.constant 0 : index
    %79 = vector.load %arg7[%c16_92, %c0_93] : memref<264x32xf32, #tpu.memory_space<vmem>>, vector<224x32xf32>
    %c1_94 = arith.constant 1 : index
    %c0_95 = arith.constant 0 : index
    %c0_96 = arith.constant 0 : index
    %c0_97 = arith.constant 0 : index
    %80 = vector.load %arg4[%c1_94, %c0_95, %c0_96, %c0_97] : memref<3x3x32x64xf32, #tpu.memory_space<vmem>>, vector<1x1x32x64xf32>
    %81 = vector.shape_cast %80 : vector<1x1x32x64xf32> to vector<32x64xf32>
    %cst_98 = arith.constant dense<0.000000e+00> : vector<224x64xf32>
    %82 = tpu.matmul %79, %81, %cst_98 {dimension_numbers = #tpu.dot_dimension_numbers<[1], [0], [0], [1], [0, 0, 1, 1], [], []>} : vector<224x32xf32>, vector<32x64xf32>, vector<224x64xf32> -> vector<224x64xf32>
    %83 = arith.addf %78, %82 : vector<224x64xf32>
    %c17_99 = arith.constant 17 : index
    %c0_100 = arith.constant 0 : index
    %84 = vector.load %arg7[%c17_99, %c0_100] : memref<264x32xf32, #tpu.memory_space<vmem>>, vector<224x32xf32>
    %c1_101 = arith.constant 1 : index
    %c1_102 = arith.constant 1 : index
    %c0_103 = arith.constant 0 : index
    %c0_104 = arith.constant 0 : index
    %85 = vector.load %arg4[%c1_101, %c1_102, %c0_103, %c0_104] : memref<3x3x32x64xf32, #tpu.memory_space<vmem>>, vector<1x1x32x64xf32>
    %86 = vector.shape_cast %85 : vector<1x1x32x64xf32> to vector<32x64xf32>
    %cst_105 = arith.constant dense<0.000000e+00> : vector<224x64xf32>
    %87 = tpu.matmul %84, %86, %cst_105 {dimension_numbers = #tpu.dot_dimension_numbers<[1], [0], [0], [1], [0, 0, 1, 1], [], []>} : vector<224x32xf32>, vector<32x64xf32>, vector<224x64xf32> -> vector<224x64xf32>
    %88 = arith.addf %83, %87 : vector<224x64xf32>
    %c18_106 = arith.constant 18 : index
    %c0_107 = arith.constant 0 : index
    %89 = vector.load %arg7[%c18_106, %c0_107] : memref<264x32xf32, #tpu.memory_space<vmem>>, vector<224x32xf32>
    %c1_108 = arith.constant 1 : index
    %c2_109 = arith.constant 2 : index
    %c0_110 = arith.constant 0 : index
    %c0_111 = arith.constant 0 : index
    %90 = vector.load %arg4[%c1_108, %c2_109, %c0_110, %c0_111] : memref<3x3x32x64xf32, #tpu.memory_space<vmem>>, vector<1x1x32x64xf32>
    %91 = vector.shape_cast %90 : vector<1x1x32x64xf32> to vector<32x64xf32>
    %cst_112 = arith.constant dense<0.000000e+00> : vector<224x64xf32>
    %92 = tpu.matmul %89, %91, %cst_112 {dimension_numbers = #tpu.dot_dimension_numbers<[1], [0], [0], [1], [0, 0, 1, 1], [], []>} : vector<224x32xf32>, vector<32x64xf32>, vector<224x64xf32> -> vector<224x64xf32>
    %93 = arith.addf %88, %92 : vector<224x64xf32>
    %c32_113 = arith.constant 32 : index
    %c0_114 = arith.constant 0 : index
    %94 = vector.load %arg7[%c32_113, %c0_114] : memref<264x32xf32, #tpu.memory_space<vmem>>, vector<224x32xf32>
    %c2_115 = arith.constant 2 : index
    %c0_116 = arith.constant 0 : index
    %c0_117 = arith.constant 0 : index
    %c0_118 = arith.constant 0 : index
    %95 = vector.load %arg4[%c2_115, %c0_116, %c0_117, %c0_118] : memref<3x3x32x64xf32, #tpu.memory_space<vmem>>, vector<1x1x32x64xf32>
    %96 = vector.shape_cast %95 : vector<1x1x32x64xf32> to vector<32x64xf32>
    %cst_119 = arith.constant dense<0.000000e+00> : vector<224x64xf32>
    %97 = tpu.matmul %94, %96, %cst_119 {dimension_numbers = #tpu.dot_dimension_numbers<[1], [0], [0], [1], [0, 0, 1, 1], [], []>} : vector<224x32xf32>, vector<32x64xf32>, vector<224x64xf32> -> vector<224x64xf32>
    %98 = arith.addf %93, %97 : vector<224x64xf32>
    %c33_120 = arith.constant 33 : index
    %c0_121 = arith.constant 0 : index
    %99 = vector.load %arg7[%c33_120, %c0_121] : memref<264x32xf32, #tpu.memory_space<vmem>>, vector<224x32xf32>
    %c2_122 = arith.constant 2 : index
    %c1_123 = arith.constant 1 : index
    %c0_124 = arith.constant 0 : index
    %c0_125 = arith.constant 0 : index
    %100 = vector.load %arg4[%c2_122, %c1_123, %c0_124, %c0_125] : memref<3x3x32x64xf32, #tpu.memory_space<vmem>>, vector<1x1x32x64xf32>
    %101 = vector.shape_cast %100 : vector<1x1x32x64xf32> to vector<32x64xf32>
    %cst_126 = arith.constant dense<0.000000e+00> : vector<224x64xf32>
    %102 = tpu.matmul %99, %101, %cst_126 {dimension_numbers = #tpu.dot_dimension_numbers<[1], [0], [0], [1], [0, 0, 1, 1], [], []>} : vector<224x32xf32>, vector<32x64xf32>, vector<224x64xf32> -> vector<224x64xf32>
    %103 = arith.addf %98, %102 : vector<224x64xf32>
    %c34_127 = arith.constant 34 : index
    %c0_128 = arith.constant 0 : index
    %104 = vector.load %arg7[%c34_127, %c0_128] : memref<264x32xf32, #tpu.memory_space<vmem>>, vector<224x32xf32>
    %c2_129 = arith.constant 2 : index
    %c2_130 = arith.constant 2 : index
    %c0_131 = arith.constant 0 : index
    %c0_132 = arith.constant 0 : index
    %105 = vector.load %arg4[%c2_129, %c2_130, %c0_131, %c0_132] : memref<3x3x32x64xf32, #tpu.memory_space<vmem>>, vector<1x1x32x64xf32>
    %106 = vector.shape_cast %105 : vector<1x1x32x64xf32> to vector<32x64xf32>
    %cst_133 = arith.constant dense<0.000000e+00> : vector<224x64xf32>
    %107 = tpu.matmul %104, %106, %cst_133 {dimension_numbers = #tpu.dot_dimension_numbers<[1], [0], [0], [1], [0, 0, 1, 1], [], []>} : vector<224x32xf32>, vector<32x64xf32>, vector<224x64xf32> -> vector<224x64xf32>
    %108 = arith.addf %103, %107 : vector<224x64xf32>
    %c0_134 = arith.constant 0 : index
    %c0_135 = arith.constant 0 : index
    %109 = vector.load %arg5[%c0_134, %c0_135] : memref<1x64xf32, #tpu.memory_space<vmem>>, vector<1x64xf32>
    %110 = vector.broadcast %109 : vector<1x64xf32> to vector<224x64xf32>
    %111 = arith.addf %108, %110 : vector<224x64xf32>
    %cst_136 = arith.constant 0.000000e+00 : f32
    %112 = vector.broadcast %cst_136 : f32 to vector<224x64xf32>
    %113 = arith.maximumf %111, %112 : vector<224x64xf32>
    %c0_137 = arith.constant 0 : index
    %c0_138 = arith.constant 0 : index
    %c0_139 = arith.constant 0 : index
    %114 = vector.load %arg6[%c0_137, %c0_138, %c0_139] : memref<1x264x64xf32, #tpu.memory_space<vmem>>, vector<1x224x64xf32>
    %115 = vector.shape_cast %114 : vector<1x224x64xf32> to vector<224x64xf32>
    %116 = vector.shape_cast %113 : vector<224x64xf32> to vector<1x224x64xf32>
    tpu.vector_store %arg6[%c0_137, %c0_138, %c0_139], %116 {strides = array<i32>} : memref<1x264x64xf32, #tpu.memory_space<vmem>>, vector<1x224x64xf32>,
    %cst_140 = arith.constant 0.000000e+00 : f32
    %117 = vector.broadcast %cst_140 : f32 to vector<40x64xf32>
    %c0_141 = arith.constant 0 : index
    %c224_142 = arith.constant 224 : index
    %c0_143 = arith.constant 0 : index
    %118 = vector.load %arg6[%c0_141, %c224_142, %c0_143] : memref<1x264x64xf32, #tpu.memory_space<vmem>>, vector<1x40x64xf32>
    %119 = vector.shape_cast %118 : vector<1x40x64xf32> to vector<40x64xf32>
    %120 = vector.shape_cast %117 : vector<40x64xf32> to vector<1x40x64xf32>
    tpu.vector_store %arg6[%c0_141, %c224_142, %c0_143], %120 {strides = array<i32>} : memref<1x264x64xf32, #tpu.memory_space<vmem>>, vector<1x40x64xf32>,
    return
  }
  func.func @transform_0(%arg0: i32) -> (i32, i32, i32) {
    %c0_i32 = arith.constant 0 : i32
    %c0_i32_0 = arith.constant 0 : i32
    %c0_i32_1 = arith.constant 0 : i32
    return %arg0, %c0_i32, %c0_i32_0 : i32, i32, i32
  }
  func.func @transform_1(%arg0: i32) -> (i32, i32, i32, i32) {
    %c0_i32 = arith.constant 0 : i32
    %c0_i32_0 = arith.constant 0 : i32
    %c0_i32_1 = arith.constant 0 : i32
    %c0_i32_2 = arith.constant 0 : i32
    %c0_i32_3 = arith.constant 0 : i32
    return %c0_i32, %c0_i32_0, %c0_i32_1, %c0_i32_2 : i32, i32, i32, i32
  }
  func.func @transform_2(%arg0: i32) -> (i32, i32) {
    %c0_i32 = arith.constant 0 : i32
    %c0_i32_0 = arith.constant 0 : i32
    %c0_i32_1 = arith.constant 0 : i32
    return %c0_i32, %c0_i32_0 : i32, i32
  }
  func.func @transform_3(%arg0: i32) -> (i32, i32, i32, i32) {
    %c0_i32 = arith.constant 0 : i32
    %c0_i32_0 = arith.constant 0 : i32
    %c0_i32_1 = arith.constant 0 : i32
    %c0_i32_2 = arith.constant 0 : i32
    %c0_i32_3 = arith.constant 0 : i32
    return %c0_i32, %c0_i32_0, %c0_i32_1, %c0_i32_2 : i32, i32, i32, i32
  }
  func.func @transform_4(%arg0: i32) -> (i32, i32) {
    %c0_i32 = arith.constant 0 : i32
    %c0_i32_0 = arith.constant 0 : i32
    %c0_i32_1 = arith.constant 0 : i32
    return %c0_i32, %c0_i32_0 : i32, i32
  }
  func.func @transform_5(%arg0: i32) -> (i32, i32, i32) {
    %c0_i32 = arith.constant 0 : i32
    %c0_i32_0 = arith.constant 0 : i32
    %c0_i32_1 = arith.constant 0 : i32
    return %arg0, %c0_i32, %c0_i32_0 : i32, i32, i32
  }
}

</mosaic_0001>

<llo_original>
// kernel: vgg_block_forward.1
$region0: #{vgg_block_forward.1}
  #allocation0 [shape = 'u32[]', space=smem, size = 0x4, offset = 0x4, fixed_abs, tag = 'smem constant byte address 0x4 - core index']
  #allocation1 [shape = 'u32[144,128]{1,0:T(1,128)}', space=vmem, size = 0x12000, scoped, tag = 'internal scratch']
  #allocation2 [shape = 'f32[264,32]{1,0:T(8,128)}', space=vmem, size = 0x21000, scoped, tag = 'scratch operand']
  %s0 = inlined_call_operand.vmem [shape: f32[2,264,3], index: 0, kind: input, shape index: {}]
  %s1 = inlined_call_operand.vmem [shape: f32[3,3,3,32], index: 1, kind: input, shape index: {}]
  %s2 = inlined_call_operand.vmem [shape: f32[1,32], index: 2, kind: input, shape index: {}]
  %s3 = inlined_call_operand.vmem [shape: f32[3,3,32,64], index: 3, kind: input, shape index: {}]
  %s4 = inlined_call_operand.vmem [shape: f32[1,64], index: 4, kind: input, shape index: {}]
  %s5 = inlined_call_operand.vmem [shape: f32[2,264,64], index: 5, kind: output, shape index: {}]
  %s6 = sld [smem:[#allocation0]]
  $region53: #{vgg_block_forward.1} parent=0
    _
  %s8 = ssub.s32 1, %s6
  %s9 = scalar_select 0, %s8, %s6
  loop: start=0, step=1, limit=4
  $region2: #{vgg_block_forward.1} parent=0 // loop_pre_header
    _
  $region3: #{vgg_block_forward.1} parent=0 // loop_header
    %s11 = sphi 0, %s15
    %p12 = scmp.ge.s32.totalorder %s11, 4
    %s21 = sphi 0, %s23
    %s24 = sphi 0, %s21
    %s25 = sphi 0, %s24
    %s41 = sphi 0, %s25
    %s45 = sphi 0, %s45
    %s47 = sphi 0, %s45
    %s48 = sphi 0, %s47
    %s62 = sphi 0, %s48
    %s66 = sphi 0, %s66
    %s68 = sphi 0, %s66
    %s69 = sphi 0, %s68
    %s83 = sphi 0, %s69
    %s87 = sphi 0, %s87
    %s89 = sphi 0, %s87
    %s90 = sphi 0, %s89
    %s104 = sphi 0, %s90
    %s108 = sphi 0, %s108
    %s110 = sphi 0, %s108
    %s111 = sphi 0, %s110
    %s125 = sphi 0, %s111
    %s131 = sphi 0, %s133
    %s134 = sphi 0, %s131
    %s135 = sphi 0, %s134
    %s151 = sphi 0, %s135
  $region4: #{vgg_block_forward.1} parent=0 // loop_header_branch
    %14 = sbr.rel (%p12) target = $region8
  $region5: #{vgg_block_forward.1} parent=0 // loop_body
    %s16 = ssub.s32 %s11, 1
    %s17 = ssub.s32 %s11, 2
    %s18 = sadd.s32 %s11, 1
    %s19 = ssub.s32 %s11, %s18
    %p20 = scmp.eq.s32.totalorder %s19, 0
    %s22 = sadd.s32 %s21, 1
    %s23 = scalar_select %p20, %s21, %s22
    %p26 = pneg %p20
    %p27 = scmp.eq.s32.totalorder %s11, 1
    %p28 = por %p26, %p27
    %p29 = scmp.ne.s32.totalorder %s21, %s24
    %p30 = scmp.eq.s32.totalorder %s11, 0
    %p31 = por %p29, %p30
    %p32 = scmp.ne.s32.totalorder %s21, %s24
    %p33 = scmp.eq.s32.totalorder %s16, 1
    %p34 = por %p32, %p33
    %p35 = scmp.ne.s32.totalorder %s24, %s25
    %p36 = scmp.eq.s32.totalorder %s16, 0
    %p37 = por %p35, %p36
    %p38 = scmp.ne.s32.totalorder %s24, %s25
    %p39 = scmp.eq.s32.totalorder %s17, 1
    %p40 = por %p38, %p39
    %p42 = scmp.ne.s32.totalorder %s25, %s41
    %p43 = scmp.eq.s32.totalorder %s17, 0
    %p44 = por %p42, %p43
    %s46 = sadd.s32 %s45, 1
    %p49 = scmp.eq.s32.totalorder %s11, 1
    %p50 = scmp.ne.s32.totalorder %s45, %s47
    %p51 = scmp.eq.s32.totalorder %s11, 0
    %p52 = por %p50, %p51
    %p53 = scmp.ne.s32.totalorder %s45, %s47
    %p54 = scmp.eq.s32.totalorder %s16, 1
    %p55 = por %p53, %p54
    %p56 = scmp.ne.s32.totalorder %s47, %s48
    %p57 = scmp.eq.s32.totalorder %s16, 0
    %p58 = por %p56, %p57
    %p59 = scmp.ne.s32.totalorder %s47, %s48
    %p60 = scmp.eq.s32.totalorder %s17, 1
    %p61 = por %p59, %p60
    %p63 = scmp.ne.s32.totalorder %s48, %s62
    %p64 = scmp.eq.s32.totalorder %s17, 0
    %p65 = por %p63, %p64
    %s67 = sadd.s32 %s66, 1
    %p70 = scmp.eq.s32.totalorder %s11, 1
    %p71 = scmp.ne.s32.totalorder %s66, %s68
    %p72 = scmp.eq.s32.totalorder %s11, 0
    %p73 = por %p71, %p72
    %p74 = scmp.ne.s32.totalorder %s66, %s68
    %p75 = scmp.eq.s32.totalorder %s16, 1
    %p76 = por %p74, %p75
    %p77 = scmp.ne.s32.totalorder %s68, %s69
    %p78 = scmp.eq.s32.totalorder %s16, 0
    %p79 = por %p77, %p78
    %p80 = scmp.ne.s32.totalorder %s68, %s69
    %p81 = scmp.eq.s32.totalorder %s17, 1
    %p82 = por %p80, %p81
    %p84 = scmp.ne.s32.totalorder %s69, %s83
    %p85 = scmp.eq.s32.totalorder %s17, 0
    %p86 = por %p84, %p85
    %s88 = sadd.s32 %s87, 1
    %p91 = scmp.eq.s32.totalorder %s11, 1
    %p92 = scmp.ne.s32.totalorder %s87, %s89
    %p93 = scmp.eq.s32.totalorder %s11, 0
    %p94 = por %p92, %p93
    %p95 = scmp.ne.s32.totalorder %s87, %s89
    %p96 = scmp.eq.s32.totalorder %s16, 1
    %p97 = por %p95, %p96
    %p98 = scmp.ne.s32.totalorder %s89, %s90
    %p99 = scmp.eq.s32.totalorder %s16, 0
    %p100 = por %p98, %p99
    %p101 = scmp.ne.s32.totalorder %s89, %s90
    %p102 = scmp.eq.s32.totalorder %s17, 1
    %p103 = por %p101, %p102
    %p105 = scmp.ne.s32.totalorder %s90, %s104
    %p106 = scmp.eq.s32.totalorder %s17, 0
    %p107 = por %p105, %p106
    %s109 = sadd.s32 %s108, 1
    %p112 = scmp.eq.s32.totalorder %s11, 1
    %p113 = scmp.ne.s32.totalorder %s108, %s110
    %p114 = scmp.eq.s32.totalorder %s11, 0
    %p115 = por %p113, %p114
    %p116 = scmp.ne.s32.totalorder %s108, %s110
    %p117 = scmp.eq.s32.totalorder %s16, 1
    %p118 = por %p116, %p117
    %p119 = scmp.ne.s32.totalorder %s110, %s111
    %p120 = scmp.eq.s32.totalorder %s16, 0
    %p121 = por %p119, %p120
    %p122 = scmp.ne.s32.totalorder %s110, %s111
    %p123 = scmp.eq.s32.totalorder %s17, 1
    %p124 = por %p122, %p123
    %p126 = scmp.ne.s32.totalorder %s111, %s125
    %p127 = scmp.eq.s32.totalorder %s17, 0
    %p128 = por %p126, %p127
    %s129 = ssub.s32 %s11, %s18
    %p130 = scmp.eq.s32.totalorder %s129, 0
    %s132 = sadd.s32 %s131, 1
    %s133 = scalar_select %p130, %s131, %s132
    %p136 = pneg %p130
    %p137 = scmp.eq.s32.totalorder %s11, 1
    %p138 = por %p136, %p137
    %p139 = scmp.ne.s32.totalorder %s131, %s134
    %p140 = scmp.eq.s32.totalorder %s11, 0
    %p141 = por %p139, %p140
    %p142 = scmp.ne.s32.totalorder %s131, %s134
    %p143 = scmp.eq.s32.totalorder %s16, 1
    %p144 = por %p142, %p143
    %p145 = scmp.ne.s32.totalorder %s134, %s135
    %p146 = scmp.eq.s32.totalorder %s16, 0
    %p147 = por %p145, %p146
    %p148 = scmp.ne.s32.totalorder %s134, %s135
    %p149 = scmp.eq.s32.totalorder %s17, 1
    %p150 = por %p148, %p149
    %p152 = scmp.ne.s32.totalorder %s135, %s151
    %p153 = scmp.eq.s32.totalorder %s17, 0
    %p154 = por %p152, %p153
    %p155 = scmp.le.s32.totalorder 1, %s11
    %p156 = scmp.lt.s32.totalorder %s11, 3
    %p157 = pnand %p155, %p156
    %p158 = pneg %p157
    // Predicated region
    $region9: #{vgg_block_forward.1} parent=5 // pred_check
      _
    $region10: #{vgg_block_forward.1} parent=5 // pred_check_branch
      %160 = sbr.rel (%p157) target = $region12
    $region11: #{vgg_block_forward.1} parent=5 // pred_region
      %s161 = ssub.s32 %s11, 1
      // Predicated region
      $region13: #{vgg_block_forward.1} parent=11 // pred_check
        %p162 = pneg %p58
      $region14: #{vgg_block_forward.1} parent=11 // pred_check_branch
        %164 = sbr.rel (%p162) target = $region16
      $region15: #{vgg_block_forward.1} parent=11 // pred_region
        _
      $region16: #{vgg_block_forward.1} parent=11 // pred_fallthru
        _
      // Predicated region
      $region17: #{vgg_block_forward.1} parent=11 // pred_check
        %p165 = pneg %p79
      $region18: #{vgg_block_forward.1} parent=11 // pred_check_branch
        %167 = sbr.rel (%p165) target = $region20
      $region19: #{vgg_block_forward.1} parent=11 // pred_region
        _
      $region20: #{vgg_block_forward.1} parent=11 // pred_fallthru
        _
      // Predicated region
      $region21: #{vgg_block_forward.1} parent=11 // pred_check
        %p168 = pneg %p100
      $region22: #{vgg_block_forward.1} parent=11 // pred_check_branch
        %170 = sbr.rel (%p168) target = $region24
      $region23: #{vgg_block_forward.1} parent=11 // pred_region
        _
      $region24: #{vgg_block_forward.1} parent=11 // pred_fallthru
        _
      // Predicated region
      $region25: #{vgg_block_forward.1} parent=11 // pred_check
        %p171 = pneg %p121
      $region26: #{vgg_block_forward.1} parent=11 // pred_check_branch
        %173 = sbr.rel (%p171) target = $region28
      $region27: #{vgg_block_forward.1} parent=11 // pred_region
        _
      $region28: #{vgg_block_forward.1} parent=11 // pred_fallthru
        _
    $region12: #{vgg_block_forward.1} parent=5 // pred_fallthru
      _
    %p174 = scmp.lt.s32.totalorder %s11, 2
    // Predicated region
    $region29: #{vgg_block_forward.1} parent=5 // pred_check
      %p175 = pneg %p174
    $region30: #{vgg_block_forward.1} parent=5 // pred_check_branch
      %177 = sbr.rel (%p175) target = $region32
    $region31: #{vgg_block_forward.1} parent=5 // pred_region
      // Predicated region
      $region33: #{vgg_block_forward.1} parent=31 // pred_check
        %p178 = pneg %p31
      $region34: #{vgg_block_forward.1} parent=31 // pred_check_branch
        %180 = sbr.rel (%p178) target = $region36
      $region35: #{vgg_block_forward.1} parent=31 // pred_region
        %p181 = scmp.lt.s32.totalorder %s11, 1
        %s182 = scalar_select %p181, %s11, 1
        %s183 = smul.addr %s182, 33
        %s184 = smul.addr %s183, 8
        %s185 = scalar_lea.vmem %s0, %s184
      $region36: #{vgg_block_forward.1} parent=31 // pred_fallthru
        _
    $region32: #{vgg_block_forward.1} parent=5 // pred_fallthru
      _
    %p186 = scmp.le.s32.totalorder 1, %s11
    %p187 = scmp.lt.s32.totalorder %s11, 3
    %p188 = pnand %p186, %p187
    %p189 = pneg %p188
    // Predicated region
    $region37: #{vgg_block_forward.1} parent=5 // pred_check
      _
    $region38: #{vgg_block_forward.1} parent=5 // pred_check_branch
      %191 = sbr.rel (%p188) target = $region40
    $region39: #{vgg_block_forward.1} parent=5 // pred_region
      %s192 = ssub.s32 %s11, 1
      %p193 = scmp.lt.s32.totalorder %s16, 1
      %s194 = scalar_select %p193, %s16, 1
      %s195 = smul.addr %s194, 33
      %s196 = smul.addr %s195, 8
      %s197 = scalar_lea.vmem %s0, %s196
      %p198 = pneg %p37
      %p199 = pneg %p34
      %p200 = pneg %p58
      %p201 = pneg %p55
      %p202 = pneg %p79
      %p203 = pneg %p76
      %p204 = pneg %p100
      %p205 = pneg %p97
      %p206 = pneg %p121
      %p207 = pneg %p118
      %p208 = pneg %p147
      %p209 = pneg %p144
      %p210 = scmp.lt.s32.totalorder %s16, 1
      %s211 = scalar_select %p210, %s16, 1
      %s212 = smul.addr %s211, 33
      %s213 = smul.addr %s212, 8
      %s214 = scalar_lea.vmem %s5, %s213
      %p215 = scmp.lt.s32.totalorder %s16, 1
      %s216 = scalar_select %p215, %s16, 1
      %s217 = smul.addr %s216, 33
      %s218 = smul.addr %s217, 8
      %s219 = scalar_lea.vmem %s0, %s218
      %p220 = scmp.lt.s32.totalorder %s16, 1
      %s221 = scalar_select %p220, %s16, 1
      %s222 = smul.addr %s221, 33
      %s223 = smul.addr %s222, 8
      %s224 = scalar_lea.vmem %s5, %s223
      %v225 = vld [vmem:[%s219] sm:$0xff]
      %v226 = vld [vmem:[%s219 + $0x8] sm:$0xff]
      %v227 = vld [vmem:[%s219 + $0x10] sm:$0xff]
      %v228 = vld [vmem:[%s219 + $0x18] sm:$0xff]
      %v229 = vld [vmem:[%s219 + $0x20] sm:$0xff]
      %v230 = vld [vmem:[%s219 + $0x28] sm:$0xff]
      %v231 = vld [vmem:[%s219 + $0x30] sm:$0xff]
      %v232 = vld [vmem:[%s219 + $0x38] sm:$0xff]
      %v233 = vld [vmem:[%s219 + $0x40] sm:$0xff]
      %v234 = vld [vmem:[%s219 + $0x48] sm:$0xff]
      %v235 = vld [vmem:[%s219 + $0x50] sm:$0xff]
      %v236 = vld [vmem:[%s219 + $0x58] sm:$0xff]
      %v237 = vld [vmem:[%s219 + $0x60] sm:$0xff]
      %v238 = vld [vmem:[%s219 + $0x68] sm:$0xff]
      %v239 = vld [vmem:[%s219 + $0x70] sm:$0xff]
      %v240 = vld [vmem:[%s219 + $0x78] sm:$0xff]
      %v241 = vld [vmem:[%s219 + $0x80] sm:$0xff]
      %v242 = vld [vmem:[%s219 + $0x88] sm:$0xff]
      %v243 = vld [vmem:[%s219 + $0x90] sm:$0xff]
      %v244 = vld [vmem:[%s219 + $0x98] sm:$0xff]
      %v245 = vld [vmem:[%s219 + $0xa0] sm:$0xff]
      %v246 = vld [vmem:[%s219 + $0xa8] sm:$0xff]
      %v247 = vld [vmem:[%s219 + $0xb0] sm:$0xff]
      %v248 = vld [vmem:[%s219 + $0xb8] sm:$0xff]
      %v249 = vld [vmem:[%s219 + $0xc0] sm:$0xff]
      %v250 = vld [vmem:[%s219 + $0xc8] sm:$0xff]
      %v251 = vld [vmem:[%s219 + $0xd0] sm:$0xff]
      %v252 = vld [vmem:[%s219 + $0xd8] sm:$0xff]
      %v253 = vld [vmem:[%s1] sm:$0x7]
      %v254 = vld [vmem:[%s219 + $0x1] sm:$0xff]
      %v255 = vld [vmem:[%s219 + $0x9] sm:$0xff]
      %v256 = vld [vmem:[%s219 + $0x11] sm:$0xff]
      %v257 = vld [vmem:[%s219 + $0x19] sm:$0xff]
      %v258 = vld [vmem:[%s219 + $0x21] sm:$0xff]
      %v259 = vld [vmem:[%s219 + $0x29] sm:$0xff]
      %v260 = vld [vmem:[%s219 + $0x31] sm:$0xff]
      %v261 = vld [vmem:[%s219 + $0x39] sm:$0xff]
      %v262 = vld [vmem:[%s219 + $0x41] sm:$0xff]
      %v263 = vld [vmem:[%s219 + $0x49] sm:$0xff]
      %v264 = vld [vmem:[%s219 + $0x51] sm:$0xff]
      %v265 = vld [vmem:[%s219 + $0x59] sm:$0xff]
      %v266 = vld [vmem:[%s219 + $0x61] sm:$0xff]
      %v267 = vld [vmem:[%s219 + $0x69] sm:$0xff]
      %v268 = vld [vmem:[%s219 + $0x71] sm:$0xff]
      %v269 = vld [vmem:[%s219 + $0x79] sm:$0xff]
      %v270 = vld [vmem:[%s219 + $0x81] sm:$0xff]
      %v271 = vld [vmem:[%s219 + $0x89] sm:$0xff]
      %v272 = vld [vmem:[%s219 + $0x91] sm:$0xff]
      %v273 = vld [vmem:[%s219 + $0x99] sm:$0xff]
      %v274 = vld [vmem:[%s219 + $0xa1] sm:$0xff]
      %v275 = vld [vmem:[%s219 + $0xa9] sm:$0xff]
      %v276 = vld [vmem:[%s219 + $0xb1] sm:$0xff]
      %v277 = vld [vmem:[%s219 + $0xb9] sm:$0xff]
      %v278 = vld [vmem:[%s219 + $0xc1] sm:$0xff]
      %v279 = vld [vmem:[%s219 + $0xc9] sm:$0xff]
      %v280 = vld [vmem:[%s219 + $0xd1] sm:$0xff]
      %v281 = vld [vmem:[%s219 + $0xd9] sm:$0xff]
      %s282 = scalar_lea.vmem %s1, 4
      %v283 = vld [vmem:[%s282] sm:$0x7]
      %vm284 = vcmask 23552
      %v286 = vsel %vm284, %v254, 0
      %v289 = vsel %vm284, %v255, 0
      %v292 = vsel %vm284, %v256, 0
      %v295 = vsel %vm284, %v257, 0
      %v298 = vsel %vm284, %v258, 0
      %v301 = vsel %vm284, %v259, 0
      %v304 = vsel %vm284, %v260, 0
      %v307 = vsel %vm284, %v261, 0
      %v310 = vsel %vm284, %v262, 0
      %v313 = vsel %vm284, %v263, 0
      %v316 = vsel %vm284, %v264, 0
      %v319 = vsel %vm284, %v265, 0
      %v322 = vsel %vm284, %v266, 0
      %v325 = vsel %vm284, %v267, 0
      %v328 = vsel %vm284, %v268, 0
      %v331 = vsel %vm284, %v269, 0
      %v334 = vsel %vm284, %v270, 0
      %v337 = vsel %vm284, %v271, 0
      %v340 = vsel %vm284, %v272, 0
      %v343 = vsel %vm284, %v273, 0
      %v346 = vsel %vm284, %v274, 0
      %v349 = vsel %vm284, %v275, 0
      %v352 = vsel %vm284, %v276, 0
      %v355 = vsel %vm284, %v277, 0
      %v358 = vsel %vm284, %v278, 0
      %v361 = vsel %vm284, %v279, 0
      %v364 = vsel %vm284, %v280, 0
      %v367 = vsel %vm284, %v281, 0
      %vm369 = vcmask 1042432
      %v371 = vsel %vm369, %v283, 0
      %373 = vmatprep.subr.mxu0 0.0
      %374 = vmatpush1.msra.mxu0 %v371
      %375 = vmatprep.subr.mxu0 0.0
      %376 = vmatpush1.msra.mxu0 0.0
      %377 = vmatprep.subr.mxu0 0.0
      %378 = vmatpush1.msra.mxu0 0.0
      %379 = vmatprep.subr.mxu0 0.0
      %380 = vmatpush1.msra.mxu0 0.0
      %381 = vmatprep.subr.mxu0 0.0
      %382 = vmatpush1.msra.mxu0 0.0
      %383 = vmatprep.subr.mxu0 0.0
      %384 = vmatpush1.msra.mxu0 0.0
      %385 = vmatprep.subr.mxu0 0.0
      %386 = vmatpush1.msra.mxu0 0.0
      %387 = vmatprep.subr.mxu0 0.0
      %388 = vmatpush1.msra.mxu0 0.0
      %389 = vmatprep.subr.mxu0 0.0
      %390 = vmatpush1.msra.mxu0 0.0
      %391 = vmatprep.subr.mxu0 0.0
      %392 = vmatpush1.msra.mxu0 0.0
      %393 = vmatprep.subr.mxu0 0.0
      %394 = vmatpush1.msra.mxu0 0.0
      %395 = vmatprep.subr.mxu0 0.0
      %396 = vmatpush1.msra.mxu0 0.0
      %397 = vmatprep.subr.mxu0 0.0
      %398 = vmatpush1.msra.mxu0 0.0
      %399 = vmatprep.subr.mxu0 0.0
      %400 = vmatpush1.msra.mxu0 0.0
      %401 = vmatprep.subr.mxu0 0.0
      %402 = vmatpush1.msra.mxu0 0.0
      %403 = vmatprep.subr.mxu0 0.0
      %404 = vmatpush1.msra.mxu0 0.0
      %405 = vmatprep.subr.mxu0 0.0
      %406 = vmatpush1.msra.mxu0 0.0
      %407 = vmatprep.subr.mxu0 0.0
      %408 = vmatpush1.msra.mxu0 0.0
      %409 = vmatprep.subr.mxu0 0.0
      %410 = vmatpush1.msra.mxu0 0.0
      %411 = vmatprep.subr.mxu0 0.0
      %412 = vmatpush1.msra.mxu0 0.0
      %413 = vmatprep.subr.mxu0 0.0
      %414 = vmatpush1.msra.mxu0 0.0
      %415 = vmatprep.subr.mxu0 0.0
      %416 = vmatpush1.msra.mxu0 0.0
      %417 = vmatprep.subr.mxu0 0.0
      %418 = vmatpush1.msra.mxu0 0.0
      %419 = vmatprep.subr.mxu0 0.0
      %420 = vmatpush1.msra.mxu0 0.0
      %421 = vmatprep.subr.mxu0 0.0
      %422 = vmatpush1.msra.mxu0 0.0
      %423 = vmatprep.subr.mxu0 0.0
      %424 = vmatpush1.msra.mxu0 0.0
      %425 = vmatprep.subr.mxu0 0.0
      %426 = vmatpush1.msra.mxu0 0.0
      %427 = vmatprep.subr.mxu0 0.0
      %428 = vmatpush1.msra.mxu0 0.0
      %429 = vmatprep.subr.mxu0 0.0
      %430 = vmatpush1.msra.mxu0 0.0
      %431 = vmatprep.subr.mxu0 0.0
      %432 = vmatpush1.msra.mxu0 0.0
      %433 = vmatprep.subr.mxu0 0.0
      %434 = vmatpush1.msra.mxu0 0.0
      %435 = vmatprep.subr.mxu0 0.0
      %436 = vmatpush1.msra.mxu0 0.0
      %437 = vmatprep.mubr.f32.mxu0 0.0
      %438 = vmatmul.mubr.f32.gmra.mrb[0].mxu0 %v286
      %v439 = vpop.f32.mrb[0].mxu0
      %v440 = vadd.f32 0.0, %v439
      %v441 = vpop.f32.mrb[0].mxu0
      %442 = vmatprep.mubr.f32.mxu0 0.0
      %443 = vmatmul.mubr.f32.gmra.mrb[0].mxu0 %v289
      %v444 = vpop.f32.mrb[0].mxu0
      %v445 = vadd.f32 0.0, %v444
      %v446 = vpop.f32.mrb[0].mxu0
      %447 = vmatprep.mubr.f32.mxu0 0.0
      %448 = vmatmul.mubr.f32.gmra.mrb[0].mxu0 %v292
      %v449 = vpop.f32.mrb[0].mxu0
      %v450 = vadd.f32 0.0, %v449
      %v451 = vpop.f32.mrb[0].mxu0
      %452 = vmatprep.mubr.f32.mxu0 0.0
      %453 = vmatmul.mubr.f32.gmra.mrb[0].mxu0 %v295
      %v454 = vpop.f32.mrb[0].mxu0
      %v455 = vadd.f32 0.0, %v454
      %v456 = vpop.f32.mrb[0].mxu0
      %457 = vmatprep.mubr.f32.mxu0 0.0
      %458 = vmatmul.mubr.f32.gmra.mrb[0].mxu0 %v298
      %v459 = vpop.f32.mrb[0].mxu0
      %v460 = vadd.f32 0.0, %v459
      %v461 = vpop.f32.mrb[0].mxu0
      %462 = vmatprep.mubr.f32.mxu0 0.0
      %463 = vmatmul.mubr.f32.gmra.mrb[0].mxu0 %v301
      %v464 = vpop.f32.mrb[0].mxu0
      %v465 = vadd.f32 0.0, %v464
      %v466 = vpop.f32.mrb[0].mxu0
      %467 = vmatprep.mubr.f32.mxu0 0.0
      %468 = vmatmul.mubr.f32.gmra.mrb[0].mxu0 %v304
      %v469 = vpop.f32.mrb[0].mxu0
      %v470 = vadd.f32 0.0, %v469
      %v471 = vpop.f32.mrb[0].mxu0
      %472 = vmatprep.mubr.f32.mxu0 0.0
      %473 = vmatmul.mubr.f32.gmra.mrb[0].mxu0 %v307
      %v474 = vpop.f32.mrb[0].mxu0
      %v475 = vadd.f32 0.0, %v474
      %v476 = vpop.f32.mrb[0].mxu0
      %477 = vmatprep.mubr.f32.mxu0 0.0
      %478 = vmatmul.mubr.f32.gmra.mrb[0].mxu0 %v310
      %v479 = vpop.f32.mrb[0].mxu0
      %v480 = vadd.f32 0.0, %v479
      %v481 = vpop.f32.mrb[0].mxu0
      %482 = vmatprep.mubr.f32.mxu0 0.0
      %483 = vmatmul.mubr.f32.gmra.mrb[0].mxu0 %v313
      %v484 = vpop.f32.mrb[0].mxu0
      %v485 = vadd.f32 0.0, %v484
      %v486 = vpop.f32.mrb[0].mxu0
      %487 = vmatprep.mubr.f32.mxu0 0.0
      %488 = vmatmul.mubr.f32.gmra.mrb[0].mxu0 %v316
      %v489 = vpop.f32.mrb[0].mxu0
      %v490 = vadd.f32 0.0, %v489
      %v491 = vpop.f32.mrb[0].mxu0
      %492 = vmatprep.mubr.f32.mxu0 0.0
      %493 = vmatmul.mubr.f32.gmra.mrb[0].mxu0 %v319
      %v494 = vpop.f32.mrb[0].mxu0
      %v495 = vadd.f32 0.0, %v494
      %v496 = vpop.f32.mrb[0].mxu0
      %497 = vmatprep.mubr.f32.mxu0 0.0
      %498 = vmatmul.mubr.f32.gmra.mrb[0].mxu0 %v322
      %v499 = vpop.f32.mrb[0].mxu0
      %v500 = vadd.f32 0.0, %v499
      %v501 = vpop.f32.mrb[0].mxu0
      %502 = vmatprep.mubr.f32.mxu0 0.0
      %503 = vmatmul.mubr.f32.gmra.mrb[0].mxu0 %v325
      %v504 = vpop.f32.mrb[0].mxu0
      %v505 = vadd.f32 0.0, %v504
      %v506 = vpop.f32.mrb[0].mxu0
      %507 = vmatprep.mubr.f32.mxu0 0.0
      %508 = vmatmul.mubr.f32.gmra.mrb[0].mxu0 %v328
      %v509 = vpop.f32.mrb[0].mxu0
      %v510 = vadd.f32 0.0, %v509
      %v511 = vpop.f32.mrb[0].mxu0
      %512 = vmatprep.mubr.f32.mxu0 0.0
      %513 = vmatmul.mubr.f32.gmra.mrb[0].mxu0 %v331
      %v514 = vpop.f32.mrb[0].mxu0
      %v515 = vadd.f32 0.0, %v514
      %v516 = vpop.f32.mrb[0].mxu0
      %517 = vmatprep.mubr.f32.mxu0 0.0
      %518 = vmatmul.mubr.f32.gmra.mrb[0].mxu0 %v334
      %v519 = vpop.f32.mrb[0].mxu0
      %v520 = vadd.f32 0.0, %v519
      %v521 = vpop.f32.mrb[0].mxu0
      %522 = vmatprep.mubr.f32.mxu0 0.0
      %523 = vmatmul.mubr.f32.gmra.mrb[0].mxu0 %v337
      %v524 = vpop.f32.mrb[0].mxu0
      %v525 = vadd.f32 0.0, %v524
      %v526 = vpop.f32.mrb[0].mxu0
      %527 = vmatprep.mubr.f32.mxu0 0.0
      %528 = vmatmul.mubr.f32.gmra.mrb[0].mxu0 %v340
      %v529 = vpop.f32.mrb[0].mxu0
      %v530 = vadd.f32 0.0, %v529
      %v531 = vpop.f32.mrb[0].mxu0
      %532 = vmatprep.mubr.f32.mxu0 0.0
      %533 = vmatmul.mubr.f32.gmra.mrb[0].mxu0 %v343
      %v534 = vpop.f32.mrb[0].mxu0
      %v535 = vadd.f32 0.0, %v534
      %v536 = vpop.f32.mrb[0].mxu0
      %537 = vmatprep.mubr.f32.mxu0 0.0
      %538 = vmatmul.mubr.f32.gmra.mrb[0].mxu0 %v346
      %v539 = vpop.f32.mrb[0].mxu0
      %v540 = vadd.f32 0.0, %v539
      %v541 = vpop.f32.mrb[0].mxu0
      %542 = vmatprep.mubr.f32.mxu0 0.0
      %543 = vmatmul.mubr.f32.gmra.mrb[0].mxu0 %v349
      %v544 = vpop.f32.mrb[0].mxu0
      %v545 = vadd.f32 0.0, %v544
      %v546 = vpop.f32.mrb[0].mxu0
      %547 = vmatprep.mubr.f32.mxu0 0.0
      %548 = vmatmul.mubr.f32.gmra.mrb[0].mxu0 %v352
      %v549 = vpop.f32.mrb[0].mxu0
      %v550 = vadd.f32 0.0, %v549
      %v551 = vpop.f32.mrb[0].mxu0
      %552 = vmatprep.mubr.f32.mxu0 0.0
      %553 = vmatmul.mubr.f32.gmra.mrb[0].mxu0 %v355
      %v554 = vpop.f32.mrb[0].mxu0
      %v555 = vadd.f32 0.0, %v554
      %v556 = vpop.f32.mrb[0].mxu0
      %557 = vmatprep.mubr.f32.mxu0 0.0
      %558 = vmatmul.mubr.f32.gmra.mrb[0].mxu0 %v358
      %v559 = vpop.f32.mrb[0].mxu0
      %v560 = vadd.f32 0.0, %v559
      %v561 = vpop.f32.mrb[0].mxu0
      %562 = vmatprep.mubr.f32.mxu0 0.0
      %563 = vmatmul.mubr.f32.gmra.mrb[0].mxu0 %v361
      %v564 = vpop.f32.mrb[0].mxu0
      %v565 = vadd.f32 0.0, %v564
      %v566 = vpop.f32.mrb[0].mxu0
      %567 = vmatprep.mubr.f32.mxu0 0.0
      %568 = vmatmul.mubr.f32.gmra.mrb[0].mxu0 %v364
      %v569 = vpop.f32.mrb[0].mxu0
      %v570 = vadd.f32 0.0, %v569
      %v571 = vpop.f32.mrb[0].mxu0
      %572 = vmatprep.mubr.f32.mxu0 0.0
      %573 = vmatmul.mubr.f32.gmra.mrb[0].mxu0 %v367
      %v574 = vpop.f32.mrb[0].mxu0
      %v575 = vadd.f32 0.0, %v574
      %v576 = vpop.f32.mrb[0].mxu0
      %577 = vdwg.mxu0
      %v579 = vsel %vm284, %v225, 0
      %v582 = vsel %vm284, %v226, 0
      %v585 = vsel %vm284, %v227, 0
      %v588 = vsel %vm284, %v228, 0
      %v591 = vsel %vm284, %v229, 0
      %v594 = vsel %vm284, %v230, 0
      %v597 = vsel %vm284, %v231, 0
      %v600 = vsel %vm284, %v232, 0
      %v603 = vsel %vm284, %v233, 0
      %v606 = vsel %vm284, %v234, 0
      %v609 = vsel %vm284, %v235, 0
      %v612 = vsel %vm284, %v236, 0
      %v615 = vsel %vm284, %v237, 0
      %v618 = vsel %vm284, %v238, 0
      %v621 = vsel %vm284, %v239, 0
      %v624 = vsel %vm284, %v240, 0
      %v627 = vsel %vm284, %v241, 0
      %v630 = vsel %vm284, %v242, 0
      %v633 = vsel %vm284, %v243, 0
      %v636 = vsel %vm284, %v244, 0
      %v639 = vsel %vm284, %v245, 0
      %v642 = vsel %vm284, %v246, 0
      %v645 = vsel %vm284, %v247, 0
      %v648 = vsel %vm284, %v248, 0
      %v651 = vsel %vm284, %v249, 0
      %v654 = vsel %vm284, %v250, 0
      %v657 = vsel %vm284, %v251, 0
      %v660 = vsel %vm284, %v252, 0
      %v663 = vsel %vm369, %v253, 0
      %665 = vmatprep.subr.mxu0 0.0
      %666 = vmatpush1.msra.mxu0 %v663
      %667 = vmatprep.subr.mxu0 0.0
      %668 = vmatpush1.msra.mxu0 0.0
      %669 = vmatprep.subr.mxu0 0.0
      %670 = vmatpush1.msra.mxu0 0.0
      %671 = vmatprep.subr.mxu0 0.0
      %672 = vmatpush1.msra.mxu0 0.0
      %673 = vmatprep.subr.mxu0 0.0
      %674 = vmatpush1.msra.mxu0 0.0
      %675 = vmatprep.subr.mxu0 0.0
      %676 = vmatpush1.msra.mxu0 0.0
      %677 = vmatprep.subr.mxu0 0.0
      %678 = vmatpush1.msra.mxu0 0.0
      %679 = vmatprep.subr.mxu0 0.0
      %680 = vmatpush1.msra.mxu0 0.0
      %681 = vmatprep.subr.mxu0 0.0
      %682 = vmatpush1.msra.mxu0 0.0
      %683 = vmatprep.subr.mxu0 0.0
      %684 = vmatpush1.msra.mxu0 0.0
      %685 = vmatprep.subr.mxu0 0.0
      %686 = vmatpush1.msra.mxu0 0.0
      %687 = vmatprep.subr.mxu0 0.0
      %688 = vmatpush1.msra.mxu0 0.0
      %689 = vmatprep.subr.mxu0 0.0
      %690 = vmatpush1.msra.mxu0 0.0
      %691 = vmatprep.subr.mxu0 0.0
      %692 = vmatpush1.msra.mxu0 0.0
      %693 = vmatprep.subr.mxu0 0.0
      %694 = vmatpush1.msra.mxu0 0.0
      %695 = vmatprep.subr.mxu0 0.0
      %696 = vmatpush1.msra.mxu0 0.0
      %697 = vmatprep.subr.mxu0 0.0
      %698 = vmatpush1.msra.mxu0 0.0
      %699 = vmatprep.subr.mxu0 0.0
      %700 = vmatpush1.msra.mxu0 0.0
      %701 = vmatprep.subr.mxu0 0.0
      %702 = vmatpush1.msra.mxu0 0.0
      %703 = vmatprep.subr.mxu0 0.0
      %704 = vmatpush1.msra.mxu0 0.0
      %705 = vmatprep.subr.mxu0 0.0
      %706 = vmatpush1.msra.mxu0 0.0
      %707 = vmatprep.subr.mxu0 0.0
      %708 = vmatpush1.msra.mxu0 0.0
      %709 = vmatprep.subr.mxu0 0.0
      %710 = vmatpush1.msra.mxu0 0.0
      %711 = vmatprep.subr.mxu0 0.0
      %712 = vmatpush1.msra.mxu0 0.0
      %713 = vmatprep.subr.mxu0 0.0
      %714 = vmatpush1.msra.mxu0 0.0
      %715 = vmatprep.subr.mxu0 0.0
      %716 = vmatpush1.msra.mxu0 0.0
      %717 = vmatprep.subr.mxu0 0.0
      %718 = vmatpush1.msra.mxu0 0.0
      %719 = vmatprep.subr.mxu0 0.0
      %720 = vmatpush1.msra.mxu0 0.0
      %721 = vmatprep.subr.mxu0 0.0
      %722 = vmatpush1.msra.mxu0 0.0
      %723 = vmatprep.subr.mxu0 0.0
      %724 = vmatpush1.msra.mxu0 0.0
      %725 = vmatprep.subr.mxu0 0.0
      %726 = vmatpush1.msra.mxu0 0.0
      %727 = vmatprep.subr.mxu0 0.0
      %728 = vmatpush1.msra.mxu0 0.0
      %729 = vmatprep.mubr.f32.mxu0 0.0
      %730 = vmatmul.mubr.f32.gmra.mrb[0].mxu0 %v579
      %v731 = vpop.f32.mrb[0].mxu0
      %v732 = vadd.f32 %v440, %v731
      %v733 = vpop.f32.mrb[0].mxu0
      %734 = vmatprep.mubr.f32.mxu0 0.0
      %735 = vmatmul.mubr.f32.gmra.mrb[0].mxu0 %v582
      %v736 = vpop.f32.mrb[0].mxu0
      %v737 = vadd.f32 %v445, %v736
      %v738 = vpop.f32.mrb[0].mxu0
      %739 = vmatprep.mubr.f32.mxu0 0.0
      %740 = vmatmul.mubr.f32.gmra.mrb[0].mxu0 %v585
      %v741 = vpop.f32.mrb[0].mxu0
      %v742 = vadd.f32 %v450, %v741
      %v743 = vpop.f32.mrb[0].mxu0
      %744 = vmatprep.mubr.f32.mxu0 0.0
      %745 = vmatmul.mubr.f32.gmra.mrb[0].mxu0 %v588
      %v746 = vpop.f32.mrb[0].mxu0
      %v747 = vadd.f32 %v455, %v746
      %v748 = vpop.f32.mrb[0].mxu0
      %749 = vmatprep.mubr.f32.mxu0 0.0
      %750 = vmatmul.mubr.f32.gmra.mrb[0].mxu0 %v591
      %v751 = vpop.f32.mrb[0].mxu0
      %v752 = vadd.f32 %v460, %v751
      %v753 = vpop.f32.mrb[0].mxu0
      %754 = vmatprep.mubr.f32.mxu0 0.0
      %755 = vmatmul.mubr.f32.gmra.mrb[0].mxu0 %v594
      %v756 = vpop.f32.mrb[0].mxu0
      %v757 = vadd.f32 %v465, %v756
      %v758 = vpop.f32.mrb[0].mxu0
      %759 = vmatprep.mubr.f32.mxu0 0.0
      %760 = vmatmul.mubr.f32.gmra.mrb[0].mxu0 %v597
      %v761 = vpop.f32.mrb[0].mxu0
      %v762 = vadd.f32 %v470, %v761
      %v763 = vpop.f32.mrb[0].mxu0
      %764 = vmatprep.mubr.f32.mxu0 0.0
      %765 = vmatmul.mubr.f32.gmra.mrb[0].mxu0 %v600
      %v766 = vpop.f32.mrb[0].mxu0
      %v767 = vadd.f32 %v475, %v766
      %v768 = vpop.f32.mrb[0].mxu0
      %769 = vmatprep.mubr.f32.mxu0 0.0
      %770 = vmatmul.mubr.f32.gmra.mrb[0].mxu0 %v603
      %v771 = vpop.f32.mrb[0].mxu0
      %v772 = vadd.f32 %v480, %v771
      %v773 = vpop.f32.mrb[0].mxu0
      %774 = vmatprep.mubr.f32.mxu0 0.0
      %775 = vmatmul.mubr.f32.gmra.mrb[0].mxu0 %v606
      %v776 = vpop.f32.mrb[0].mxu0
      %v777 = vadd.f32 %v485, %v776
      %v778 = vpop.f32.mrb[0].mxu0
      %779 = vmatprep.mubr.f32.mxu0 0.0
      %780 = vmatmul.mubr.f32.gmra.mrb[0].mxu0 %v609
      %v781 = vpop.f32.mrb[0].mxu0
      %v782 = vadd.f32 %v490, %v781
      %v783 = vpop.f32.mrb[0].mxu0
      %784 = vmatprep.mubr.f32.mxu0 0.0
      %785 = vmatmul.mubr.f32.gmra.mrb[0].mxu0 %v612
      %v786 = vpop.f32.mrb[0].mxu0
      %v787 = vadd.f32 %v495, %v786
      %v788 = vpop.f32.mrb[0].mxu0
      %789 = vmatprep.mubr.f32.mxu0 0.0
      %790 = vmatmul.mubr.f32.gmra.mrb[0].mxu0 %v615
      %v791 = vpop.f32.mrb[0].mxu0
      %v792 = vadd.f32 %v500, %v791
      %v793 = vpop.f32.mrb[0].mxu0
      %794 = vmatprep.mubr.f32.mxu0 0.0
      %795 = vmatmul.mubr.f32.gmra.mrb[0].mxu0 %v618
      %v796 = vpop.f32.mrb[0].mxu0
      %v797 = vadd.f32 %v505, %v796
      %v798 = vpop.f32.mrb[0].mxu0
      %799 = vmatprep.mubr.f32.mxu0 0.0
      %800 = vmatmul.mubr.f32.gmra.mrb[0].mxu0 %v621
      %v801 = vpop.f32.mrb[0].mxu0
      %v802 = vadd.f32 %v510, %v801
      %v803 = vpop.f32.mrb[0].mxu0
      %804 = vmatprep.mubr.f32.mxu0 0.0
      %805 = vmatmul.mubr.f32.gmra.mrb[0].mxu0 %v624
      %v806 = vpop.f32.mrb[0].mxu0
      %v807 = vadd.f32 %v515, %v806
      %v808 = vpop.f32.mrb[0].mxu0
      %809 = vmatprep.mubr.f32.mxu0 0.0
      %810 = vmatmul.mubr.f32.gmra.mrb[0].mxu0 %v627
      %v811 = vpop.f32.mrb[0].mxu0
      %v812 = vadd.f32 %v520, %v811
      %v813 = vpop.f32.mrb[0].mxu0
      %814 = vmatprep.mubr.f32.mxu0 0.0
      %815 = vmatmul.mubr.f32.gmra.mrb[0].mxu0 %v630
      %v816 = vpop.f32.mrb[0].mxu0
      %v817 = vadd.f32 %v525, %v816
      %v818 = vpop.f32.mrb[0].mxu0
      %819 = vmatprep.mubr.f32.mxu0 0.0
      %820 = vmatmul.mubr.f32.gmra.mrb[0].mxu0 %v633
      %v821 = vpop.f32.mrb[0].mxu0
      %v822 = vadd.f32 %v530, %v821
      %v823 = vpop.f32.mrb[0].mxu0
      %824 = vmatprep.mubr.f32.mxu0 0.0
      %825 = vmatmul.mubr.f32.gmra.mrb[0].mxu0 %v636
      %v826 = vpop.f32.mrb[0].mxu0
      %v827 = vadd.f32 %v535, %v826
      %v828 = vpop.f32.mrb[0].mxu0
      %829 = vmatprep.mubr.f32.mxu0 0.0
      %830 = vmatmul.mubr.f32.gmra.mrb[0].mxu0 %v639
      %v831 = vpop.f32.mrb[0].mxu0
      %v832 = vadd.f32 %v540, %v831
      %v833 = vpop.f32.mrb[0].mxu0
      %834 = vmatprep.mubr.f32.mxu0 0.0
      %835 = vmatmul.mubr.f32.gmra.mrb[0].mxu0 %v642
      %v836 = vpop.f32.mrb[0].mxu0
      %v837 = vadd.f32 %v545, %v836
      %v838 = vpop.f32.mrb[0].mxu0
      %839 = vmatprep.mubr.f32.mxu0 0.0
      %840 = vmatmul.mubr.f32.gmra.mrb[0].mxu0 %v645
      %v841 = vpop.f32.mrb[0].mxu0
      %v842 = vadd.f32 %v550, %v841
      %v843 = vpop.f32.mrb[0].mxu0
      %844 = vmatprep.mubr.f32.mxu0 0.0
      %845 = vmatmul.mubr.f32.gmra.mrb[0].mxu0 %v648
      %v846 = vpop.f32.mrb[0].mxu0
      %v847 = vadd.f32 %v555, %v846
      %v848 = vpop.f32.mrb[0].mxu0
      %849 = vmatprep.mubr.f32.mxu0 0.0
      %850 = vmatmul.mubr.f32.gmra.mrb[0].mxu0 %v651
      %v851 = vpop.f32.mrb[0].mxu0
      %v852 = vadd.f32 %v560, %v851
      %v853 = vpop.f32.mrb[0].mxu0
      %854 = vmatprep.mubr.f32.mxu0 0.0
      %855 = vmatmul.mubr.f32.gmra.mrb[0].mxu0 %v654
      %v856 = vpop.f32.mrb[0].mxu0
      %v857 = vadd.f32 %v565, %v856
      %v858 = vpop.f32.mrb[0].mxu0
      %859 = vmatprep.mubr.f32.mxu0 0.0
      %860 = vmatmul.mubr.f32.gmra.mrb[0].mxu0 %v657
      %v861 = vpop.f32.mrb[0].mxu0
      %v862 = vadd.f32 %v570, %v861
      %v863 = vpop.f32.mrb[0].mxu0
      %864 = vmatprep.mubr.f32.mxu0 0.0
      %865 = vmatmul.mubr.f32.gmra.mrb[0].mxu0 %v660
      %v866 = vpop.f32.mrb[0].mxu0
      %v867 = vadd.f32 %v575, %v866
      %v868 = vpop.f32.mrb[0].mxu0
      %869 = vdwg.mxu0
      %v870 = vld [vmem:[%s219 + $0x2] sm:$0xff]
      %v871 = vld [vmem:[%s219 + $0xa] sm:$0xff]
      %v872 = vld [vmem:[%s219 + $0x12] sm:$0xff]
      %v873 = vld [vmem:[%s219 + $0x1a] sm:$0xff]
      %v874 = vld [vmem:[%s219 + $0x22] sm:$0xff]
      %v875 = vld [vmem:[%s219 + $0x2a] sm:$0xff]
      %v876 = vld [vmem:[%s219 + $0x32] sm:$0xff]
      %v877 = vld [vmem:[%s219 + $0x3a] sm:$0xff]
      %v878 = vld [vmem:[%s219 + $0x42] sm:$0xff]
      %v879 = vld [vmem:[%s219 + $0x4a] sm:$0xff]
      %v880 = vld [vmem:[%s219 + $0x52] sm:$0xff]
      %v881 = vld [vmem:[%s219 + $0x5a] sm:$0xff]
      %v882 = vld [vmem:[%s219 + $0x62] sm:$0xff]
      %v883 = vld [vmem:[%s219 + $0x6a] sm:$0xff]
      %v884 = vld [vmem:[%s219 + $0x72] sm:$0xff]
      %v885 = vld [vmem:[%s219 + $0x7a] sm:$0xff]
      %v886 = vld [vmem:[%s219 + $0x82] sm:$0xff]
      %v887 = vld [vmem:[%s219 + $0x8a] sm:$0xff]
      %v888 = vld [vmem:[%s219 + $0x92] sm:$0xff]
      %v889 = vld [vmem:[%s219 + $0x9a] sm:$0xff]
      %v890 = vld [vmem:[%s219 + $0xa2] sm:$0xff]
      %v891 = vld [vmem:[%s219 + $0xaa] sm:$0xff]
      %v892 = vld [vmem:[%s219 + $0xb2] sm:$0xff]
      %v893 = vld [vmem:[%s219 + $0xba] sm:$0xff]
      %v894 = vld [vmem:[%s219 + $0xc2] sm:$0xff]
      %v895 = vld [vmem:[%s219 + $0xca] sm:$0xff]
      %v896 = vld [vmem:[%s219 + $0xd2] sm:$0xff]
      %v897 = vld [vmem:[%s219 + $0xda] sm:$0xff]
      %s898 = scalar_lea.vmem %s1, 8
      %v899 = vld [vmem:[%s898] sm:$0x7]
      %v901 = vsel %vm284, %v870, 0
      %v904 = vsel %vm284, %v871, 0
      %v907 = vsel %vm284, %v872, 0
      %v910 = vsel %vm284, %v873, 0
      %v913 = vsel %vm284, %v874, 0
      %v916 = vsel %vm284, %v875, 0
      %v919 = vsel %vm284, %v876, 0
      %v922 = vsel %vm284, %v877, 0
      %v925 = vsel %vm284, %v878, 0
      %v928 = vsel %vm284, %v879, 0
      %v931 = vsel %vm284, %v880, 0
      %v934 = vsel %vm284, %v881, 0
      %v937 = vsel %vm284, %v882, 0
      %v940 = vsel %vm284, %v883, 0
      %v943 = vsel %vm284, %v884, 0
      %v946 = vsel %vm284, %v885, 0
      %v949 = vsel %vm284, %v886, 0
      %v952 = vsel %vm284, %v887, 0
      %v955 = vsel %vm284, %v888, 0
      %v958 = vsel %vm284, %v889, 0
      %v961 = vsel %vm284, %v890, 0
      %v964 = vsel %vm284, %v891, 0
      %v967 = vsel %vm284, %v892, 0
      %v970 = vsel %vm284, %v893, 0
      %v973 = vsel %vm284, %v894, 0
      %v976 = vsel %vm284, %v895, 0
      %v979 = vsel %vm284, %v896, 0
      %v982 = vsel %vm284, %v897, 0
      %v985 = vsel %vm369, %v899, 0
      %987 = vmatprep.subr.mxu0 0.0
      %988 = vmatpush1.msra.mxu0 %v985
      %989 = vmatprep.subr.mxu0 0.0
      %990 = vmatpush1.msra.mxu0 0.0
      %991 = vmatprep.subr.mxu0 0.0
      %992 = vmatpush1.msra.mxu0 0.0
      %993 = vmatprep.subr.mxu0 0.0
      %994 = vmatpush1.msra.mxu0 0.0
      %995 = vmatprep.subr.mxu0 0.0
      %996 = vmatpush1.msra.mxu0 0.0
      %997 = vmatprep.subr.mxu0 0.0
      %998 = vmatpush1.msra.mxu0 0.0
      %999 = vmatprep.subr.mxu0 0.0
      %1000 = vmatpush1.msra.mxu0 0.0
      %1001 = vmatprep.subr.mxu0 0.0
      %1002 = vmatpush1.msra.mxu0 0.0
      %1003 = vmatprep.subr.mxu0 0.0
      %1004 = vmatpush1.msra.mxu0 0.0
      %1005 = vmatprep.subr.mxu0 0.0
      %1006 = vmatpush1.msra.mxu0 0.0
      %1007 = vmatprep.subr.mxu0 0.0
      %1008 = vmatpush1.msra.mxu0 0.0
      %1009 = vmatprep.subr.mxu0 0.0
      %1010 = vmatpush1.msra.mxu0 0.0
      %1011 = vmatprep.subr.mxu0 0.0
      %1012 = vmatpush1.msra.mxu0 0.0
      %1013 = vmatprep.subr.mxu0 0.0
      %1014 = vmatpush1.msra.mxu0 0.0
      %1015 = vmatprep.subr.mxu0 0.0
      %1016 = vmatpush1.msra.mxu0 0.0
      %1017 = vmatprep.subr.mxu0 0.0
      %1018 = vmatpush1.msra.mxu0 0.0
      %1019 = vmatprep.subr.mxu0 0.0
      %1020 = vmatpush1.msra.mxu0 0.0
      %1021 = vmatprep.subr.mxu0 0.0
      %1022 = vmatpush1.msra.mxu0 0.0
      %1023 = vmatprep.subr.mxu0 0.0
      %1024 = vmatpush1.msra.mxu0 0.0
      %1025 = vmatprep.subr.mxu0 0.0
      %1026 = vmatpush1.msra.mxu0 0.0
      %1027 = vmatprep.subr.mxu0 0.0
      %1028 = vmatpush1.msra.mxu0 0.0
      %1029 = vmatprep.subr.mxu0 0.0
      %1030 = vmatpush1.msra.mxu0 0.0
      %1031 = vmatprep.subr.mxu0 0.0
      %1032 = vmatpush1.msra.mxu0 0.0
      %1033 = vmatprep.subr.mxu0 0.0
      %1034 = vmatpush1.msra.mxu0 0.0
      %1035 = vmatprep.subr.mxu0 0.0
      %1036 = vmatpush1.msra.mxu0 0.0
      %1037 = vmatprep.subr.mxu0 0.0
      %1038 = vmatpush1.msra.mxu0 0.0
      %1039 = vmatprep.subr.mxu0 0.0
      %1040 = vmatpush1.msra.mxu0 0.0
      %1041 = vmatprep.subr.mxu0 0.0
      %1042 = vmatpush1.msra.mxu0 0.0
      %1043 = vmatprep.subr.mxu0 0.0
      %1044 = vmatpush1.msra.mxu0 0.0
      %1045 = vmatprep.subr.mxu0 0.0
      %1046 = vmatpush1.msra.mxu0 0.0
      %1047 = vmatprep.subr.mxu0 0.0
      %1048 = vmatpush1.msra.mxu0 0.0
      %1049 = vmatprep.subr.mxu0 0.0
      %1050 = vmatpush1.msra.mxu0 0.0
      %1051 = vmatprep.mubr.f32.mxu0 0.0
      %1052 = vmatmul.mubr.f32.gmra.mrb[0].mxu0 %v901
      %v1053 = vpop.f32.mrb[0].mxu0
      %v1054 = vadd.f32 0.0, %v1053
      %v1055 = vpop.f32.mrb[0].mxu0
      %1056 = vmatprep.mubr.f32.mxu0 0.0
      %1057 = vmatmul.mubr.f32.gmra.mrb[0].mxu0 %v904
      %v1058 = vpop.f32.mrb[0].mxu0
      %v1059 = vadd.f32 0.0, %v1058
      %v1060 = vpop.f32.mrb[0].mxu0
      %1061 = vmatprep.mubr.f32.mxu0 0.0
      %1062 = vmatmul.mubr.f32.gmra.mrb[0].mxu0 %v907
      %v1063 = vpop.f32.mrb[0].mxu0
      %v1064 = vadd.f32 0.0, %v1063
      %v1065 = vpop.f32.mrb[0].mxu0
      %1066 = vmatprep.mubr.f32.mxu0 0.0
      %1067 = vmatmul.mubr.f32.gmra.mrb[0].mxu0 %v910
      %v1068 = vpop.f32.mrb[0].mxu0
      %v1069 = vadd.f32 0.0, %v1068
      %v1070 = vpop.f32.mrb[0].mxu0
      %1071 = vmatprep.mubr.f32.mxu0 0.0
      %1072 = vmatmul.mubr.f32.gmra.mrb[0].mxu0 %v913
      %v1073 = vpop.f32.mrb[0].mxu0
      %v1074 = vadd.f32 0.0, %v1073
      %v1075 = vpop.f32.mrb[0].mxu0
      %1076 = vmatprep.mubr.f32.mxu0 0.0
      %1077 = vmatmul.mubr.f32.gmra.mrb[0].mxu0 %v916
      %v1078 = vpop.f32.mrb[0].mxu0
      %v1079 = vadd.f32 0.0, %v1078
      %v1080 = vpop.f32.mrb[0].mxu0
      %1081 = vmatprep.mubr.f32.mxu0 0.0
      %1082 = vmatmul.mubr.f32.gmra.mrb[0].mxu0 %v919
      %v1083 = vpop.f32.mrb[0].mxu0
      %v1084 = vadd.f32 0.0, %v1083
      %v1085 = vpop.f32.mrb[0].mxu0
      %1086 = vmatprep.mubr.f32.mxu0 0.0
      %1087 = vmatmul.mubr.f32.gmra.mrb[0].mxu0 %v922
      %v1088 = vpop.f32.mrb[0].mxu0
      %v1089 = vadd.f32 0.0, %v1088
      %v1090 = vpop.f32.mrb[0].mxu0
      %1091 = vmatprep.mubr.f32.mxu0 0.0
      %1092 = vmatmul.mubr.f32.gmra.mrb[0].mxu0 %v925
      %v1093 = vpop.f32.mrb[0].mxu0
      %v1094 = vadd.f32 0.0, %v1093
      %v1095 = vpop.f32.mrb[0].mxu0
      %1096 = vmatprep.mubr.f32.mxu0 0.0
      %1097 = vmatmul.mubr.f32.gmra.mrb[0].mxu0 %v928
      %v1098 = vpop.f32.mrb[0].mxu0
      %v1099 = vadd.f32 0.0, %v1098
      %v1100 = vpop.f32.mrb[0].mxu0
      %1101 = vmatprep.mubr.f32.mxu0 0.0
      %1102 = vmatmul.mubr.f32.gmra.mrb[0].mxu0 %v931
      %v1103 = vpop.f32.mrb[0].mxu0
      %v1104 = vadd.f32 0.0, %v1103
      %v1105 = vpop.f32.mrb[0].mxu0
      %1106 = vmatprep.mubr.f32.mxu0 0.0
      %1107 = vmatmul.mubr.f32.gmra.mrb[0].mxu0 %v934
      %v1108 = vpop.f32.mrb[0].mxu0
      %v1109 = vadd.f32 0.0, %v1108
      %v1110 = vpop.f32.mrb[0].mxu0
      %1111 = vmatprep.mubr.f32.mxu0 0.0
      %1112 = vmatmul.mubr.f32.gmra.mrb[0].mxu0 %v937
      %v1113 = vpop.f32.mrb[0].mxu0
      %v1114 = vadd.f32 0.0, %v1113
      %v1115 = vpop.f32.mrb[0].mxu0
      %1116 = vmatprep.mubr.f32.mxu0 0.0
      %1117 = vmatmul.mubr.f32.gmra.mrb[0].mxu0 %v940
      %v1118 = vpop.f32.mrb[0].mxu0
      %v1119 = vadd.f32 0.0, %v1118
      %v1120 = vpop.f32.mrb[0].mxu0
      %1121 = vmatprep.mubr.f32.mxu0 0.0
      %1122 = vmatmul.mubr.f32.gmra.mrb[0].mxu0 %v943
      %v1123 = vpop.f32.mrb[0].mxu0
      %v1124 = vadd.f32 0.0, %v1123
      %v1125 = vpop.f32.mrb[0].mxu0
      %1126 = vmatprep.mubr.f32.mxu0 0.0
      %1127 = vmatmul.mubr.f32.gmra.mrb[0].mxu0 %v946
      %v1128 = vpop.f32.mrb[0].mxu0
      %v1129 = vadd.f32 0.0, %v1128
      %v1130 = vpop.f32.mrb[0].mxu0
      %1131 = vmatprep.mubr.f32.mxu0 0.0
      %1132 = vmatmul.mubr.f32.gmra.mrb[0].mxu0 %v949
      %v1133 = vpop.f32.mrb[0].mxu0
      %v1134 = vadd.f32 0.0, %v1133
      %v1135 = vpop.f32.mrb[0].mxu0
      %1136 = vmatprep.mubr.f32.mxu0 0.0
      %1137 = vmatmul.mubr.f32.gmra.mrb[0].mxu0 %v952
      %v1138 = vpop.f32.mrb[0].mxu0
      %v1139 = vadd.f32 0.0, %v1138
      %v1140 = vpop.f32.mrb[0].mxu0
      %1141 = vmatprep.mubr.f32.mxu0 0.0
      %1142 = vmatmul.mubr.f32.gmra.mrb[0].mxu0 %v955
      %v1143 = vpop.f32.mrb[0].mxu0
      %v1144 = vadd.f32 0.0, %v1143
      %v1145 = vpop.f32.mrb[0].mxu0
      %1146 = vmatprep.mubr.f32.mxu0 0.0
      %1147 = vmatmul.mubr.f32.gmra.mrb[0].mxu0 %v958
      %v1148 = vpop.f32.mrb[0].mxu0
      %v1149 = vadd.f32 0.0, %v1148
      %v1150 = vpop.f32.mrb[0].mxu0
      %1151 = vmatprep.mubr.f32.mxu0 0.0
      %1152 = vmatmul.mubr.f32.gmra.mrb[0].mxu0 %v961
      %v1153 = vpop.f32.mrb[0].mxu0
      %v1154 = vadd.f32 0.0, %v1153
      %v1155 = vpop.f32.mrb[0].mxu0
      %1156 = vmatprep.mubr.f32.mxu0 0.0
      %1157 = vmatmul.mubr.f32.gmra.mrb[0].mxu0 %v964
      %v1158 = vpop.f32.mrb[0].mxu0
      %v1159 = vadd.f32 0.0, %v1158
      %v1160 = vpop.f32.mrb[0].mxu0
      %1161 = vmatprep.mubr.f32.mxu0 0.0
      %1162 = vmatmul.mubr.f32.gmra.mrb[0].mxu0 %v967
      %v1163 = vpop.f32.mrb[0].mxu0
      %v1164 = vadd.f32 0.0, %v1163
      %v1165 = vpop.f32.mrb[0].mxu0
      %1166 = vmatprep.mubr.f32.mxu0 0.0
      %1167 = vmatmul.mubr.f32.gmra.mrb[0].mxu0 %v970
      %v1168 = vpop.f32.mrb[0].mxu0
      %v1169 = vadd.f32 0.0, %v1168
      %v1170 = vpop.f32.mrb[0].mxu0
      %1171 = vmatprep.mubr.f32.mxu0 0.0
      %1172 = vmatmul.mubr.f32.gmra.mrb[0].mxu0 %v973
      %v1173 = vpop.f32.mrb[0].mxu0
      %v1174 = vadd.f32 0.0, %v1173
      %v1175 = vpop.f32.mrb[0].mxu0
      %1176 = vmatprep.mubr.f32.mxu0 0.0
      %1177 = vmatmul.mubr.f32.gmra.mrb[0].mxu0 %v976
      %v1178 = vpop.f32.mrb[0].mxu0
      %v1179 = vadd.f32 0.0, %v1178
      %v1180 = vpop.f32.mrb[0].mxu0
      %1181 = vmatprep.mubr.f32.mxu0 0.0
      %1182 = vmatmul.mubr.f32.gmra.mrb[0].mxu0 %v979
      %v1183 = vpop.f32.mrb[0].mxu0
      %v1184 = vadd.f32 0.0, %v1183
      %v1185 = vpop.f32.mrb[0].mxu0
      %1186 = vmatprep.mubr.f32.mxu0 0.0
      %1187 = vmatmul.mubr.f32.gmra.mrb[0].mxu0 %v982
      %v1188 = vpop.f32.mrb[0].mxu0
      %v1189 = vadd.f32 0.0, %v1188
      %v1190 = vpop.f32.mrb[0].mxu0
      %1191 = vdwg.mxu0
      %v1192 = vadd.f32 %v732, %v1054
      %v1193 = vadd.f32 %v737, %v1059
      %v1194 = vadd.f32 %v742, %v1064
      %v1195 = vadd.f32 %v747, %v1069
      %v1196 = vadd.f32 %v752, %v1074
      %v1197 = vadd.f32 %v757, %v1079
      %v1198 = vadd.f32 %v762, %v1084
      %v1199 = vadd.f32 %v767, %v1089
      %v1200 = vadd.f32 %v772, %v1094
      %v1201 = vadd.f32 %v777, %v1099
      %v1202 = vadd.f32 %v782, %v1104
      %v1203 = vadd.f32 %v787, %v1109
      %v1204 = vadd.f32 %v792, %v1114
      %v1205 = vadd.f32 %v797, %v1119
      %v1206 = vadd.f32 %v802, %v1124
      %v1207 = vadd.f32 %v807, %v1129
      %v1208 = vadd.f32 %v812, %v1134
      %v1209 = vadd.f32 %v817, %v1139
      %v1210 = vadd.f32 %v822, %v1144
      %v1211 = vadd.f32 %v827, %v1149
      %v1212 = vadd.f32 %v832, %v1154
      %v1213 = vadd.f32 %v837, %v1159
      %v1214 = vadd.f32 %v842, %v1164
      %v1215 = vadd.f32 %v847, %v1169
      %v1216 = vadd.f32 %v852, %v1174
      %v1217 = vadd.f32 %v857, %v1179
      %v1218 = vadd.f32 %v862, %v1184
      %v1219 = vadd.f32 %v867, %v1189
      %v1220 = vld [vmem:[%s219 + $0x10] sm:$0xff]
      %v1221 = vld [vmem:[%s219 + $0x18] sm:$0xff]
      %v1222 = vld [vmem:[%s219 + $0x20] sm:$0xff]
      %v1223 = vld [vmem:[%s219 + $0x28] sm:$0xff]
      %v1224 = vld [vmem:[%s219 + $0x30] sm:$0xff]
      %v1225 = vld [vmem:[%s219 + $0x38] sm:$0xff]
      %v1226 = vld [vmem:[%s219 + $0x40] sm:$0xff]
      %v1227 = vld [vmem:[%s219 + $0x48] sm:$0xff]
      %v1228 = vld [vmem:[%s219 + $0x50] sm:$0xff]
      %v1229 = vld [vmem:[%s219 + $0x58] sm:$0xff]
      %v1230 = vld [vmem:[%s219 + $0x60] sm:$0xff]
      %v1231 = vld [vmem:[%s219 + $0x68] sm:$0xff]
      %v1232 = vld [vmem:[%s219 + $0x70] sm:$0xff]
      %v1233 = vld [vmem:[%s219 + $0x78] sm:$0xff]
      %v1234 = vld [vmem:[%s219 + $0x80] sm:$0xff]
      %v1235 = vld [vmem:[%s219 + $0x88] sm:$0xff]
      %v1236 = vld [vmem:[%s219 + $0x90] sm:$0xff]
      %v1237 = vld [vmem:[%s219 + $0x98] sm:$0xff]
      %v1238 = vld [vmem:[%s219 + $0xa0] sm:$0xff]
      %v1239 = vld [vmem:[%s219 + $0xa8] sm:$0xff]
      %v1240 = vld [vmem:[%s219 + $0xb0] sm:$0xff]
      %v1241 = vld [vmem:[%s219 + $0xb8] sm:$0xff]
      %v1242 = vld [vmem:[%s219 + $0xc0] sm:$0xff]
      %v1243 = vld [vmem:[%s219 + $0xc8] sm:$0xff]
      %v1244 = vld [vmem:[%s219 + $0xd0] sm:$0xff]
      %v1245 = vld [vmem:[%s219 + $0xd8] sm:$0xff]
      %v1246 = vld [vmem:[%s219 + $0xe0] sm:$0xff]
      %v1247 = vld [vmem:[%s219 + $0xe8] sm:$0xff]
      %s1248 = scalar_lea.vmem %s1, 12
      %v1249 = vld [vmem:[%s1248] sm:$0x7]
      %v1251 = vsel %vm284, %v1220, 0
      %v1254 = vsel %vm284, %v1221, 0
      %v1257 = vsel %vm284, %v1222, 0
      %v1260 = vsel %vm284, %v1223, 0
      %v1263 = vsel %vm284, %v1224, 0
      %v1266 = vsel %vm284, %v1225, 0
      %v1269 = vsel %vm284, %v1226, 0
      %v1272 = vsel %vm284, %v1227, 0
      %v1275 = vsel %vm284, %v1228, 0
      %v1278 = vsel %vm284, %v1229, 0
      %v1281 = vsel %vm284, %v1230, 0
      %v1284 = vsel %vm284, %v1231, 0
      %v1287 = vsel %vm284, %v1232, 0
      %v1290 = vsel %vm284, %v1233, 0
      %v1293 = vsel %vm284, %v1234, 0
      %v1296 = vsel %vm284, %v1235, 0
      %v1299 = vsel %vm284, %v1236, 0
      %v1302 = vsel %vm284, %v1237, 0
      %v1305 = vsel %vm284, %v1238, 0
      %v1308 = vsel %vm284, %v1239, 0
      %v1311 = vsel %vm284, %v1240, 0
      %v1314 = vsel %vm284, %v1241, 0
      %v1317 = vsel %vm284, %v1242, 0
      %v1320 = vsel %vm284, %v1243, 0
      %v1323 = vsel %vm284, %v1244, 0
      %v1326 = vsel %vm284, %v1245, 0
      %v1329 = vsel %vm284, %v1246, 0
      %v1332 = vsel %vm284, %v1247, 0
      %v1335 = vsel %vm369, %v1249, 0
      %1337 = vmatprep.subr.mxu0 0.0
      %1338 = vmatpush1.msra.mxu0 %v1335
      %1339 = vmatprep.subr.mxu0 0.0
      %1340 = vmatpush1.msra.mxu0 0.0
      %1341 = vmatprep.subr.mxu0 0.0
      %1342 = vmatpush1.msra.mxu0 0.0
      %1343 = vmatprep.subr.mxu0 0.0
      %1344 = vmatpush1.msra.mxu0 0.0
      %1345 = vmatprep.subr.mxu0 0.0
      %1346 = vmatpush1.msra.mxu0 0.0
      %1347 = vmatprep.subr.mxu0 0.0
      %1348 = vmatpush1.msra.mxu0 0.0
      %1349 = vmatprep.subr.mxu0 0.0
      %1350 = vmatpush1.msra.mxu0 0.0
      %1351 = vmatprep.subr.mxu0 0.0
      %1352 = vmatpush1.msra.mxu0 0.0
      %1353 = vmatprep.subr.mxu0 0.0
      %1354 = vmatpush1.msra.mxu0 0.0
      %1355 = vmatprep.subr.mxu0 0.0
      %1356 = vmatpush1.msra.mxu0 0.0
      %1357 = vmatprep.subr.mxu0 0.0
      %1358 = vmatpush1.msra.mxu0 0.0
      %1359 = vmatprep.subr.mxu0 0.0
      %1360 = vmatpush1.msra.mxu0 0.0
      %1361 = vmatprep.subr.mxu0 0.0
      %1362 = vmatpush1.msra.mxu0 0.0
      %1363 = vmatprep.subr.mxu0 0.0
      %1364 = vmatpush1.msra.mxu0 0.0
      %1365 = vmatprep.subr.mxu0 0.0
      %1366 = vmatpush1.msra.mxu0 0.0
      %1367 = vmatprep.subr.mxu0 0.0
      %1368 = vmatpush1.msra.mxu0 0.0
      %1369 = vmatprep.subr.mxu0 0.0
      %1370 = vmatpush1.msra.mxu0 0.0
      %1371 = vmatprep.subr.mxu0 0.0
      %1372 = vmatpush1.msra.mxu0 0.0
      %1373 = vmatprep.subr.mxu0 0.0
      %1374 = vmatpush1.msra.mxu0 0.0
      %1375 = vmatprep.subr.mxu0 0.0
      %1376 = vmatpush1.msra.mxu0 0.0
      %1377 = vmatprep.subr.mxu0 0.0
      %1378 = vmatpush1.msra.mxu0 0.0
      %1379 = vmatprep.subr.mxu0 0.0
      %1380 = vmatpush1.msra.mxu0 0.0
      %1381 = vmatprep.subr.mxu0 0.0
      %1382 = vmatpush1.msra.mxu0 0.0
      %1383 = vmatprep.subr.mxu0 0.0
      %1384 = vmatpush1.msra.mxu0 0.0
      %1385 = vmatprep.subr.mxu0 0.0
      %1386 = vmatpush1.msra.mxu0 0.0
      %1387 = vmatprep.subr.mxu0 0.0
      %1388 = vmatpush1.msra.mxu0 0.0
      %1389 = vmatprep.subr.mxu0 0.0
      %1390 = vmatpush1.msra.mxu0 0.0
      %1391 = vmatprep.subr.mxu0 0.0
      %1392 = vmatpush1.msra.mxu0 0.0
      %1393 = vmatprep.subr.mxu0 0.0
      %1394 = vmatpush1.msra.mxu0 0.0
      %1395 = vmatprep.subr.mxu0 0.0
      %1396 = vmatpush1.msra.mxu0 0.0
      %1397 = vmatprep.subr.mxu0 0.0
      %1398 = vmatpush1.msra.mxu0 0.0
      %1399 = vmatprep.subr.mxu0 0.0
      %1400 = vmatpush1.msra.mxu0 0.0
      %1401 = vmatprep.mubr.f32.mxu0 0.0
      %1402 = vmatmul.mubr.f32.gmra.mrb[0].mxu0 %v1251
      %v1403 = vpop.f32.mrb[0].mxu0
      %v1404 = vadd.f32 0.0, %v1403
      %v1405 = vpop.f32.mrb[0].mxu0
      %1406 = vmatprep.mubr.f32.mxu0 0.0
      %1407 = vmatmul.mubr.f32.gmra.mrb[0].mxu0 %v1254
      %v1408 = vpop.f32.mrb[0].mxu0
      %v1409 = vadd.f32 0.0, %v1408
      %v1410 = vpop.f32.mrb[0].mxu0
      %1411 = vmatprep.mubr.f32.mxu0 0.0
      %1412 = vmatmul.mubr.f32.gmra.mrb[0].mxu0 %v1257
      %v1413 = vpop.f32.mrb[0].mxu0
      %v1414 = vadd.f32 0.0, %v1413
      %v1415 = vpop.f32.mrb[0].mxu0
      %1416 = vmatprep.mubr.f32.mxu0 0.0
      %1417 = vmatmul.mubr.f32.gmra.mrb[0].mxu0 %v1260
      %v1418 = vpop.f32.mrb[0].mxu0
      %v1419 = vadd.f32 0.0, %v1418
      %v1420 = vpop.f32.mrb[0].mxu0
      %1421 = vmatprep.mubr.f32.mxu0 0.0
      %1422 = vmatmul.mubr.f32.gmra.mrb[0].mxu0 %v1263
      %v1423 = vpop.f32.mrb[0].mxu0
      %v1424 = vadd.f32 0.0, %v1423
      %v1425 = vpop.f32.mrb[0].mxu0
      %1426 = vmatprep.mubr.f32.mxu0 0.0
      %1427 = vmatmul.mubr.f32.gmra.mrb[0].mxu0 %v1266
      %v1428 = vpop.f32.mrb[0].mxu0
      %v1429 = vadd.f32 0.0, %v1428
      %v1430 = vpop.f32.mrb[0].mxu0
      %1431 = vmatprep.mubr.f32.mxu0 0.0
      %1432 = vmatmul.mubr.f32.gmra.mrb[0].mxu0 %v1269
      %v1433 = vpop.f32.mrb[0].mxu0
      %v1434 = vadd.f32 0.0, %v1433
      %v1435 = vpop.f32.mrb[0].mxu0
      %1436 = vmatprep.mubr.f32.mxu0 0.0
      %1437 = vmatmul.mubr.f32.gmra.mrb[0].mxu0 %v1272
      %v1438 = vpop.f32.mrb[0].mxu0
      %v1439 = vadd.f32 0.0, %v1438
      %v1440 = vpop.f32.mrb[0].mxu0
      %1441 = vmatprep.mubr.f32.mxu0 0.0
      %1442 = vmatmul.mubr.f32.gmra.mrb[0].mxu0 %v1275
      %v1443 = vpop.f32.mrb[0].mxu0
      %v1444 = vadd.f32 0.0, %v1443
      %v1445 = vpop.f32.mrb[0].mxu0
      %1446 = vmatprep.mubr.f32.mxu0 0.0
      %1447 = vmatmul.mubr.f32.gmra.mrb[0].mxu0 %v1278
      %v1448 = vpop.f32.mrb[0].mxu0
      %v1449 = vadd.f32 0.0, %v1448
      %v1450 = vpop.f32.mrb[0].mxu0
      %1451 = vmatprep.mubr.f32.mxu0 0.0
      %1452 = vmatmul.mubr.f32.gmra.mrb[0].mxu0 %v1281
      %v1453 = vpop.f32.mrb[0].mxu0
      %v1454 = vadd.f32 0.0, %v1453
      %v1455 = vpop.f32.mrb[0].mxu0
      %1456 = vmatprep.mubr.f32.mxu0 0.0
      %1457 = vmatmul.mubr.f32.gmra.mrb[0].mxu0 %v1284
      %v1458 = vpop.f32.mrb[0].mxu0
      %v1459 = vadd.f32 0.0, %v1458
      %v1460 = vpop.f32.mrb[0].mxu0
      %1461 = vmatprep.mubr.f32.mxu0 0.0
      %1462 = vmatmul.mubr.f32.gmra.mrb[0].mxu0 %v1287
      %v1463 = vpop.f32.mrb[0].mxu0
      %v1464 = vadd.f32 0.0, %v1463
      %v1465 = vpop.f32.mrb[0].mxu0
      %1466 = vmatprep.mubr.f32.mxu0 0.0
      %1467 = vmatmul.mubr.f32.gmra.mrb[0].mxu0 %v1290
      %v1468 = vpop.f32.mrb[0].mxu0
      %v1469 = vadd.f32 0.0, %v1468
      %v1470 = vpop.f32.mrb[0].mxu0
      %1471 = vmatprep.mubr.f32.mxu0 0.0
      %1472 = vmatmul.mubr.f32.gmra.mrb[0].mxu0 %v1293
      %v1473 = vpop.f32.mrb[0].mxu0
      %v1474 = vadd.f32 0.0, %v1473
      %v1475 = vpop.f32.mrb[0].mxu0
      %1476 = vmatprep.mubr.f32.mxu0 0.0
      %1477 = vmatmul.mubr.f32.gmra.mrb[0].mxu0 %v1296
      %v1478 = vpop.f32.mrb[0].mxu0
      %v1479 = vadd.f32 0.0, %v1478
      %v1480 = vpop.f32.mrb[0].mxu0
      %1481 = vmatprep.mubr.f32.mxu0 0.0
      %1482 = vmatmul.mubr.f32.gmra.mrb[0].mxu0 %v1299
      %v1483 = vpop.f32.mrb[0].mxu0
      %v1484 = vadd.f32 0.0, %v1483
      %v1485 = vpop.f32.mrb[0].mxu0
      %1486 = vmatprep.mubr.f32.mxu0 0.0
      %1487 = vmatmul.mubr.f32.gmra.mrb[0].mxu0 %v1302
      %v1488 = vpop.f32.mrb[0].mxu0
      %v1489 = vadd.f32 0.0, %v1488
      %v1490 = vpop.f32.mrb[0].mxu0
      %1491 = vmatprep.mubr.f32.mxu0 0.0
      %1492 = vmatmul.mubr.f32.gmra.mrb[0].mxu0 %v1305
      %v1493 = vpop.f32.mrb[0].mxu0
      %v1494 = vadd.f32 0.0, %v1493
      %v1495 = vpop.f32.mrb[0].mxu0
      %1496 = vmatprep.mubr.f32.mxu0 0.0
      %1497 = vmatmul.mubr.f32.gmra.mrb[0].mxu0 %v1308
      %v1498 = vpop.f32.mrb[0].mxu0
      %v1499 = vadd.f32 0.0, %v1498
      %v1500 = vpop.f32.mrb[0].mxu0
      %1501 = vmatprep.mubr.f32.mxu0 0.0
      %1502 = vmatmul.mubr.f32.gmra.mrb[0].mxu0 %v1311
      %v1503 = vpop.f32.mrb[0].mxu0
      %v1504 = vadd.f32 0.0, %v1503
      %v1505 = vpop.f32.mrb[0].mxu0
      %1506 = vmatprep.mubr.f32.mxu0 0.0
      %1507 = vmatmul.mubr.f32.gmra.mrb[0].mxu0 %v1314
      %v1508 = vpop.f32.mrb[0].mxu0
      %v1509 = vadd.f32 0.0, %v1508
      %v1510 = vpop.f32.mrb[0].mxu0
      %1511 = vmatprep.mubr.f32.mxu0 0.0
      %1512 = vmatmul.mubr.f32.gmra.mrb[0].mxu0 %v1317
      %v1513 = vpop.f32.mrb[0].mxu0
      %v1514 = vadd.f32 0.0, %v1513
      %v1515 = vpop.f32.mrb[0].mxu0
      %1516 = vmatprep.mubr.f32.mxu0 0.0
      %1517 = vmatmul.mubr.f32.gmra.mrb[0].mxu0 %v1320
      %v1518 = vpop.f32.mrb[0].mxu0
      %v1519 = vadd.f32 0.0, %v1518
      %v1520 = vpop.f32.mrb[0].mxu0
      %1521 = vmatprep.mubr.f32.mxu0 0.0
      %1522 = vmatmul.mubr.f32.gmra.mrb[0].mxu0 %v1323
      %v1523 = vpop.f32.mrb[0].mxu0
      %v1524 = vadd.f32 0.0, %v1523
      %v1525 = vpop.f32.mrb[0].mxu0
      %1526 = vmatprep.mubr.f32.mxu0 0.0
      %1527 = vmatmul.mubr.f32.gmra.mrb[0].mxu0 %v1326
      %v1528 = vpop.f32.mrb[0].mxu0
      %v1529 = vadd.f32 0.0, %v1528
      %v1530 = vpop.f32.mrb[0].mxu0
      %1531 = vmatprep.mubr.f32.mxu0 0.0
      %1532 = vmatmul.mubr.f32.gmra.mrb[0].mxu0 %v1329
      %v1533 = vpop.f32.mrb[0].mxu0
      %v1534 = vadd.f32 0.0, %v1533
      %v1535 = vpop.f32.mrb[0].mxu0
      %1536 = vmatprep.mubr.f32.mxu0 0.0
      %1537 = vmatmul.mubr.f32.gmra.mrb[0].mxu0 %v1332
      %v1538 = vpop.f32.mrb[0].mxu0
      %v1539 = vadd.f32 0.0, %v1538
      %v1540 = vpop.f32.mrb[0].mxu0
      %1541 = vdwg.mxu0
      %v1542 = vadd.f32 %v1192, %v1404
      %v1543 = vadd.f32 %v1193, %v1409
      %v1544 = vadd.f32 %v1194, %v1414
      %v1545 = vadd.f32 %v1195, %v1419
      %v1546 = vadd.f32 %v1196, %v1424
      %v1547 = vadd.f32 %v1197, %v1429
      %v1548 = vadd.f32 %v1198, %v1434
      %v1549 = vadd.f32 %v1199, %v1439
      %v1550 = vadd.f32 %v1200, %v1444
      %v1551 = vadd.f32 %v1201, %v1449
      %v1552 = vadd.f32 %v1202, %v1454
      %v1553 = vadd.f32 %v1203, %v1459
      %v1554 = vadd.f32 %v1204, %v1464
      %v1555 = vadd.f32 %v1205, %v1469
      %v1556 = vadd.f32 %v1206, %v1474
      %v1557 = vadd.f32 %v1207, %v1479
      %v1558 = vadd.f32 %v1208, %v1484
      %v1559 = vadd.f32 %v1209, %v1489
      %v1560 = vadd.f32 %v1210, %v1494
      %v1561 = vadd.f32 %v1211, %v1499
      %v1562 = vadd.f32 %v1212, %v1504
      %v1563 = vadd.f32 %v1213, %v1509
      %v1564 = vadd.f32 %v1214, %v1514
      %v1565 = vadd.f32 %v1215, %v1519
      %v1566 = vadd.f32 %v1216, %v1524
      %v1567 = vadd.f32 %v1217, %v1529
      %v1568 = vadd.f32 %v1218, %v1534
      %v1569 = vadd.f32 %v1219, %v1539
      %v1570 = vld [vmem:[%s219 + $0x11] sm:$0xff]
      %v1571 = vld [vmem:[%s219 + $0x19] sm:$0xff]
      %v1572 = vld [vmem:[%s219 + $0x21] sm:$0xff]
      %v1573 = vld [vmem:[%s219 + $0x29] sm:$0xff]
      %v1574 = vld [vmem:[%s219 + $0x31] sm:$0xff]
      %v1575 = vld [vmem:[%s219 + $0x39] sm:$0xff]
      %v1576 = vld [vmem:[%s219 + $0x41] sm:$0xff]
      %v1577 = vld [vmem:[%s219 + $0x49] sm:$0xff]
      %v1578 = vld [vmem:[%s219 + $0x51] sm:$0xff]
      %v1579 = vld [vmem:[%s219 + $0x59] sm:$0xff]
      %v1580 = vld [vmem:[%s219 + $0x61] sm:$0xff]
      %v1581 = vld [vmem:[%s219 + $0x69] sm:$0xff]
      %v1582 = vld [vmem:[%s219 + $0x71] sm:$0xff]
      %v1583 = vld [vmem:[%s219 + $0x79] sm:$0xff]
      %v1584 = vld [vmem:[%s219 + $0x81] sm:$0xff]
      %v1585 = vld [vmem:[%s219 + $0x89] sm:$0xff]
      %v1586 = vld [vmem:[%s219 + $0x91] sm:$0xff]
      %v1587 = vld [vmem:[%s219 + $0x99] sm:$0xff]
      %v1588 = vld [vmem:[%s219 + $0xa1] sm:$0xff]
      %v1589 = vld [vmem:[%s219 + $0xa9] sm:$0xff]
      %v1590 = vld [vmem:[%s219 + $0xb1] sm:$0xff]
      %v1591 = vld [vmem:[%s219 + $0xb9] sm:$0xff]
      %v1592 = vld [vmem:[%s219 + $0xc1] sm:$0xff]
      %v1593 = vld [vmem:[%s219 + $0xc9] sm:$0xff]
      %v1594 = vld [vmem:[%s219 + $0xd1] sm:$0xff]
      %v1595 = vld [vmem:[%s219 + $0xd9] sm:$0xff]
      %v1596 = vld [vmem:[%s219 + $0xe1] sm:$0xff]
      %v1597 = vld [vmem:[%s219 + $0xe9] sm:$0xff]
      %s1598 = scalar_lea.vmem %s1, 16
      %v1599 = vld [vmem:[%s1598] sm:$0x7]
      %v1601 = vsel %vm284, %v1570, 0
      %v1604 = vsel %vm284, %v1571, 0
      %v1607 = vsel %vm284, %v1572, 0
      %v1610 = vsel %vm284, %v1573, 0
      %v1613 = vsel %vm284, %v1574, 0
      %v1616 = vsel %vm284, %v1575, 0
      %v1619 = vsel %vm284, %v1576, 0
      %v1622 = vsel %vm284, %v1577, 0
      %v1625 = vsel %vm284, %v1578, 0
      %v1628 = vsel %vm284, %v1579, 0
      %v1631 = vsel %vm284, %v1580, 0
      %v1634 = vsel %vm284, %v1581, 0
      %v1637 = vsel %vm284, %v1582, 0
      %v1640 = vsel %vm284, %v1583, 0
      %v1643 = vsel %vm284, %v1584, 0
      %v1646 = vsel %vm284, %v1585, 0
      %v1649 = vsel %vm284, %v1586, 0
      %v1652 = vsel %vm284, %v1587, 0
      %v1655 = vsel %vm284, %v1588, 0
      %v1658 = vsel %vm284, %v1589, 0
      %v1661 = vsel %vm284, %v1590, 0
      %v1664 = vsel %vm284, %v1591, 0
      %v1667 = vsel %vm284, %v1592, 0
      %v1670 = vsel %vm284, %v1593, 0
      %v1673 = vsel %vm284, %v1594, 0
      %v1676 = vsel %vm284, %v1595, 0
      %v1679 = vsel %vm284, %v1596, 0
      %v1682 = vsel %vm284, %v1597, 0
      %v1685 = vsel %vm369, %v1599, 0
      %1687 = vmatprep.subr.mxu0 0.0
      %1688 = vmatpush1.msra.mxu0 %v1685
      %1689 = vmatprep.subr.mxu0 0.0
      %1690 = vmatpush1.msra.mxu0 0.0
      %1691 = vmatprep.subr.mxu0 0.0
      %1692 = vmatpush1.msra.mxu0 0.0
      %1693 = vmatprep.subr.mxu0 0.0
      %1694 = vmatpush1.msra.mxu0 0.0
      %1695 = vmatprep.subr.mxu0 0.0
      %1696 = vmatpush1.msra.mxu0 0.0
      %1697 = vmatprep.subr.mxu0 0.0
      %1698 = vmatpush1.msra.mxu0 0.0
      %1699 = vmatprep.subr.mxu0 0.0
      %1700 = vmatpush1.msra.mxu0 0.0
      %1701 = vmatprep.subr.mxu0 0.0
      %1702 = vmatpush1.msra.mxu0 0.0
      %1703 = vmatprep.subr.mxu0 0.0
      %1704 = vmatpush1.msra.mxu0 0.0
      %1705 = vmatprep.subr.mxu0 0.0
      %1706 = vmatpush1.msra.mxu0 0.0
      %1707 = vmatprep.subr.mxu0 0.0
      %1708 = vmatpush1.msra.mxu0 0.0
      %1709 = vmatprep.subr.mxu0 0.0
      %1710 = vmatpush1.msra.mxu0 0.0
      %1711 = vmatprep.subr.mxu0 0.0
      %1712 = vmatpush1.msra.mxu0 0.0
      %1713 = vmatprep.subr.mxu0 0.0
      %1714 = vmatpush1.msra.mxu0 0.0
      %1715 = vmatprep.subr.mxu0 0.0
      %1716 = vmatpush1.msra.mxu0 0.0
      %1717 = vmatprep.subr.mxu0 0.0
      %1718 = vmatpush1.msra.mxu0 0.0
      %1719 = vmatprep.subr.mxu0 0.0
      %1720 = vmatpush1.msra.mxu0 0.0
      %1721 = vmatprep.subr.mxu0 0.0
      %1722 = vmatpush1.msra.mxu0 0.0
      %1723 = vmatprep.subr.mxu0 0.0
      %1724 = vmatpush1.msra.mxu0 0.0
      %1725 = vmatprep.subr.mxu0 0.0
      %1726 = vmatpush1.msra.mxu0 0.0
      %1727 = vmatprep.subr.mxu0 0.0
      %1728 = vmatpush1.msra.mxu0 0.0
      %1729 = vmatprep.subr.mxu0 0.0
      %1730 = vmatpush1.msra.mxu0 0.0
      %1731 = vmatprep.subr.mxu0 0.0
      %1732 = vmatpush1.msra.mxu0 0.0
      %1733 = vmatprep.subr.mxu0 0.0
      %1734 = vmatpush1.msra.mxu0 0.0
      %1735 = vmatprep.subr.mxu0 0.0
      %1736 = vmatpush1.msra.mxu0 0.0
      %1737 = vmatprep.subr.mxu0 0.0
      %1738 = vmatpush1.msra.mxu0 0.0
      %1739 = vmatprep.subr.mxu0 0.0
      %1740 = vmatpush1.msra.mxu0 0.0
      %1741 = vmatprep.subr.mxu0 0.0
      %1742 = vmatpush1.msra.mxu0 0.0
      %1743 = vmatprep.subr.mxu0 0.0
      %1744 = vmatpush1.msra.mxu0 0.0
      %1745 = vmatprep.subr.mxu0 0.0
      %1746 = vmatpush1.msra.mxu0 0.0
      %1747 = vmatprep.subr.mxu0 0.0
      %1748 = vmatpush1.msra.mxu0 0.0
      %1749 = vmatprep.subr.mxu0 0.0
      %1750 = vmatpush1.msra.mxu0 0.0
      %1751 = vmatprep.mubr.f32.mxu0 0.0
      %1752 = vmatmul.mubr.f32.gmra.mrb[0].mxu0 %v1601
      %v1753 = vpop.f32.mrb[0].mxu0
      %v1754 = vadd.f32 0.0, %v1753
      %v1755 = vpop.f32.mrb[0].mxu0
      %1756 = vmatprep.mubr.f32.mxu0 0.0
      %1757 = vmatmul.mubr.f32.gmra.mrb[0].mxu0 %v1604
      %v1758 = vpop.f32.mrb[0].mxu0
      %v1759 = vadd.f32 0.0, %v1758
      %v1760 = vpop.f32.mrb[0].mxu0
      %1761 = vmatprep.mubr.f32.mxu0 0.0
      %1762 = vmatmul.mubr.f32.gmra.mrb[0].mxu0 %v1607
      %v1763 = vpop.f32.mrb[0].mxu0
      %v1764 = vadd.f32 0.0, %v1763
      %v1765 = vpop.f32.mrb[0].mxu0
      %1766 = vmatprep.mubr.f32.mxu0 0.0
      %1767 = vmatmul.mubr.f32.gmra.mrb[0].mxu0 %v1610
      %v1768 = vpop.f32.mrb[0].mxu0
      %v1769 = vadd.f32 0.0, %v1768
      %v1770 = vpop.f32.mrb[0].mxu0
      %1771 = vmatprep.mubr.f32.mxu0 0.0
      %1772 = vmatmul.mubr.f32.gmra.mrb[0].mxu0 %v1613
      %v1773 = vpop.f32.mrb[0].mxu0
      %v1774 = vadd.f32 0.0, %v1773
      %v1775 = vpop.f32.mrb[0].mxu0
      %1776 = vmatprep.mubr.f32.mxu0 0.0
      %1777 = vmatmul.mubr.f32.gmra.mrb[0].mxu0 %v1616
      %v1778 = vpop.f32.mrb[0].mxu0
      %v1779 = vadd.f32 0.0, %v1778
      %v1780 = vpop.f32.mrb[0].mxu0
      %1781 = vmatprep.mubr.f32.mxu0 0.0
      %1782 = vmatmul.mubr.f32.gmra.mrb[0].mxu0 %v1619
      %v1783 = vpop.f32.mrb[0].mxu0
      %v1784 = vadd.f32 0.0, %v1783
      %v1785 = vpop.f32.mrb[0].mxu0
      %1786 = vmatprep.mubr.f32.mxu0 0.0
      %1787 = vmatmul.mubr.f32.gmra.mrb[0].mxu0 %v1622
      %v1788 = vpop.f32.mrb[0].mxu0
      %v1789 = vadd.f32 0.0, %v1788
      %v1790 = vpop.f32.mrb[0].mxu0
      %1791 = vmatprep.mubr.f32.mxu0 0.0
      %1792 = vmatmul.mubr.f32.gmra.mrb[0].mxu0 %v1625
      %v1793 = vpop.f32.mrb[0].mxu0
      %v1794 = vadd.f32 0.0, %v1793
      %v1795 = vpop.f32.mrb[0].mxu0
      %1796 = vmatprep.mubr.f32.mxu0 0.0
      %1797 = vmatmul.mubr.f32.gmra.mrb[0].mxu0 %v1628
      %v1798 = vpop.f32.mrb[0].mxu0
      %v1799 = vadd.f32 0.0, %v1798
      %v1800 = vpop.f32.mrb[0].mxu0
      %1801 = vmatprep.mubr.f32.mxu0 0.0
      %1802 = vmatmul.mubr.f32.gmra.mrb[0].mxu0 %v1631
      %v1803 = vpop.f32.mrb[0].mxu0
      %v1804 = vadd.f32 0.0, %v1803
      %v1805 = vpop.f32.mrb[0].mxu0
      %1806 = vmatprep.mubr.f32.mxu0 0.0
      %1807 = vmatmul.mubr.f32.gmra.mrb[0].mxu0 %v1634
      %v1808 = vpop.f32.mrb[0].mxu0
      %v1809 = vadd.f32 0.0, %v1808
      %v1810 = vpop.f32.mrb[0].mxu0
      %1811 = vmatprep.mubr.f32.mxu0 0.0
      %1812 = vmatmul.mubr.f32.gmra.mrb[0].mxu0 %v1637
      %v1813 = vpop.f32.mrb[0].mxu0
      %v1814 = vadd.f32 0.0, %v1813
      %v1815 = vpop.f32.mrb[0].mxu0
      %1816 = vmatprep.mubr.f32.mxu0 0.0
      %1817 = vmatmul.mubr.f32.gmra.mrb[0].mxu0 %v1640
      %v1818 = vpop.f32.mrb[0].mxu0
      %v1819 = vadd.f32 0.0, %v1818
      %v1820 = vpop.f32.mrb[0].mxu0
      %1821 = vmatprep.mubr.f32.mxu0 0.0
      %1822 = vmatmul.mubr.f32.gmra.mrb[0].mxu0 %v1643
      %v1823 = vpop.f32.mrb[0].mxu0
      %v1824 = vadd.f32 0.0, %v1823
      %v1825 = vpop.f32.mrb[0].mxu0
      %1826 = vmatprep.mubr.f32.mxu0 0.0
      %1827 = vmatmul.mubr.f32.gmra.mrb[0].mxu0 %v1646
      %v1828 = vpop.f32.mrb[0].mxu0
      %v1829 = vadd.f32 0.0, %v1828
      %v1830 = vpop.f32.mrb[0].mxu0
      %1831 = vmatprep.mubr.f32.mxu0 0.0
      %1832 = vmatmul.mubr.f32.gmra.mrb[0].mxu0 %v1649
      %v1833 = vpop.f32.mrb[0].mxu0
      %v1834 = vadd.f32 0.0, %v1833
      %v1835 = vpop.f32.mrb[0].mxu0
      %1836 = vmatprep.mubr.f32.mxu0 0.0
      %1837 = vmatmul.mubr.f32.gmra.mrb[0].mxu0 %v1652
      %v1838 = vpop.f32.mrb[0].mxu0
      %v1839 = vadd.f32 0.0, %v1838
      %v1840 = vpop.f32.mrb[0].mxu0
      %1841 = vmatprep.mubr.f32.mxu0 0.0
      %1842 = vmatmul.mubr.f32.gmra.mrb[0].mxu0 %v1655
      %v1843 = vpop.f32.mrb[0].mxu0
      %v1844 = vadd.f32 0.0, %v1843
      %v1845 = vpop.f32.mrb[0].mxu0
      %1846 = vmatprep.mubr.f32.mxu0 0.0
      %1847 = vmatmul.mubr.f32.gmra.mrb[0].mxu0 %v1658
      %v1848 = vpop.f32.mrb[0].mxu0
      %v1849 = vadd.f32 0.0, %v1848
      %v1850 = vpop.f32.mrb[0].mxu0
      %1851 = vmatprep.mubr.f32.mxu0 0.0
      %1852 = vmatmul.mubr.f32.gmra.mrb[0].mxu0 %v1661
      %v1853 = vpop.f32.mrb[0].mxu0
      %v1854 = vadd.f32 0.0, %v1853
      %v1855 = vpop.f32.mrb[0].mxu0
      %1856 = vmatprep.mubr.f32.mxu0 0.0
      %1857 = vmatmul.mubr.f32.gmra.mrb[0].mxu0 %v1664
      %v1858 = vpop.f32.mrb[0].mxu0
      %v1859 = vadd.f32 0.0, %v1858
      %v1860 = vpop.f32.mrb[0].mxu0
      %1861 = vmatprep.mubr.f32.mxu0 0.0
      %1862 = vmatmul.mubr.f32.gmra.mrb[0].mxu0 %v1667
      %v1863 = vpop.f32.mrb[0].mxu0
      %v1864 = vadd.f32 0.0, %v1863
      %v1865 = vpop.f32.mrb[0].mxu0
      %1866 = vmatprep.mubr.f32.mxu0 0.0
      %1867 = vmatmul.mubr.f32.gmra.mrb[0].mxu0 %v1670
      %v1868 = vpop.f32.mrb[0].mxu0
      %v1869 = vadd.f32 0.0, %v1868
      %v1870 = vpop.f32.mrb[0].mxu0
      %1871 = vmatprep.mubr.f32.mxu0 0.0
      %1872 = vmatmul.mubr.f32.gmra.mrb[0].mxu0 %v1673
      %v1873 = vpop.f32.mrb[0].mxu0
      %v1874 = vadd.f32 0.0, %v1873
      %v1875 = vpop.f32.mrb[0].mxu0
      %1876 = vmatprep.mubr.f32.mxu0 0.0
      %1877 = vmatmul.mubr.f32.gmra.mrb[0].mxu0 %v1676
      %v1878 = vpop.f32.mrb[0].mxu0
      %v1879 = vadd.f32 0.0, %v1878
      %v1880 = vpop.f32.mrb[0].mxu0
      %1881 = vmatprep.mubr.f32.mxu0 0.0
      %1882 = vmatmul.mubr.f32.gmra.mrb[0].mxu0 %v1679
      %v1883 = vpop.f32.mrb[0].mxu0
      %v1884 = vadd.f32 0.0, %v1883
      %v1885 = vpop.f32.mrb[0].mxu0
      %1886 = vmatprep.mubr.f32.mxu0 0.0
      %1887 = vmatmul.mubr.f32.gmra.mrb[0].mxu0 %v1682
      %v1888 = vpop.f32.mrb[0].mxu0
      %v1889 = vadd.f32 0.0, %v1888
      %v1890 = vpop.f32.mrb[0].mxu0
      %1891 = vdwg.mxu0
      %v1892 = vadd.f32 %v1542, %v1754
      %v1893 = vadd.f32 %v1543, %v1759
      %v1894 = vadd.f32 %v1544, %v1764
      %v1895 = vadd.f32 %v1545, %v1769
      %v1896 = vadd.f32 %v1546, %v1774
      %v1897 = vadd.f32 %v1547, %v1779
      %v1898 = vadd.f32 %v1548, %v1784
      %v1899 = vadd.f32 %v1549, %v1789
      %v1900 = vadd.f32 %v1550, %v1794
      %v1901 = vadd.f32 %v1551, %v1799
      %v1902 = vadd.f32 %v1552, %v1804
      %v1903 = vadd.f32 %v1553, %v1809
      %v1904 = vadd.f32 %v1554, %v1814
      %v1905 = vadd.f32 %v1555, %v1819
      %v1906 = vadd.f32 %v1556, %v1824
      %v1907 = vadd.f32 %v1557, %v1829
      %v1908 = vadd.f32 %v1558, %v1834
      %v1909 = vadd.f32 %v1559, %v1839
      %v1910 = vadd.f32 %v1560, %v1844
      %v1911 = vadd.f32 %v1561, %v1849
      %v1912 = vadd.f32 %v1562, %v1854
      %v1913 = vadd.f32 %v1563, %v1859
      %v1914 = vadd.f32 %v1564, %v1864
      %v1915 = vadd.f32 %v1565, %v1869
      %v1916 = vadd.f32 %v1566, %v1874
      %v1917 = vadd.f32 %v1567, %v1879
      %v1918 = vadd.f32 %v1568, %v1884
      %v1919 = vadd.f32 %v1569, %v1889
      %v1920 = vld [vmem:[%s219 + $0x12] sm:$0xff]
      %v1921 = vld [vmem:[%s219 + $0x1a] sm:$0xff]
      %v1922 = vld [vmem:[%s219 + $0x22] sm:$0xff]
      %v1923 = vld [vmem:[%s219 + $0x2a] sm:$0xff]
      %v1924 = vld [vmem:[%s219 + $0x32] sm:$0xff]
      %v1925 = vld [vmem:[%s219 + $0x3a] sm:$0xff]
      %v1926 = vld [vmem:[%s219 + $0x42] sm:$0xff]
      %v1927 = vld [vmem:[%s219 + $0x4a] sm:$0xff]
      %v1928 = vld [vmem:[%s219 + $0x52] sm:$0xff]
      %v1929 = vld [vmem:[%s219 + $0x5a] sm:$0xff]
      %v1930 = vld [vmem:[%s219 + $0x62] sm:$0xff]
      %v1931 = vld [vmem:[%s219 + $0x6a] sm:$0xff]
      %v1932 = vld [vmem:[%s219 + $0x72] sm:$0xff]
      %v1933 = vld [vmem:[%s219 + $0x7a] sm:$0xff]
      %v1934 = vld [vmem:[%s219 + $0x82] sm:$0xff]
      %v1935 = vld [vmem:[%s219 + $0x8a] sm:$0xff]
      %v1936 = vld [vmem:[%s219 + $0x92] sm:$0xff]
      %v1937 = vld [vmem:[%s219 + $0x9a] sm:$0xff]
      %v1938 = vld [vmem:[%s219 + $0xa2] sm:$0xff]
      %v1939 = vld [vmem:[%s219 + $0xaa] sm:$0xff]
      %v1940 = vld [vmem:[%s219 + $0xb2] sm:$0xff]
      %v1941 = vld [vmem:[%s219 + $0xba] sm:$0xff]
      %v1942 = vld [vmem:[%s219 + $0xc2] sm:$0xff]
      %v1943 = vld [vmem:[%s219 + $0xca] sm:$0xff]
      %v1944 = vld [vmem:[%s219 + $0xd2] sm:$0xff]
      %v1945 = vld [vmem:[%s219 + $0xda] sm:$0xff]
      %v1946 = vld [vmem:[%s219 + $0xe2] sm:$0xff]
      %v1947 = vld [vmem:[%s219 + $0xea] sm:$0xff]
      %s1948 = scalar_lea.vmem %s1, 20
      %v1949 = vld [vmem:[%s1948] sm:$0x7]
      %v1951 = vsel %vm284, %v1920, 0
      %v1954 = vsel %vm284, %v1921, 0
      %v1957 = vsel %vm284, %v1922, 0
      %v1960 = vsel %vm284, %v1923, 0
      %v1963 = vsel %vm284, %v1924, 0
      %v1966 = vsel %vm284, %v1925, 0
      %v1969 = vsel %vm284, %v1926, 0
      %v1972 = vsel %vm284, %v1927, 0
      %v1975 = vsel %vm284, %v1928, 0
      %v1978 = vsel %vm284, %v1929, 0
      %v1981 = vsel %vm284, %v1930, 0
      %v1984 = vsel %vm284, %v1931, 0
      %v1987 = vsel %vm284, %v1932, 0
      %v1990 = vsel %vm284, %v1933, 0
      %v1993 = vsel %vm284, %v1934, 0
      %v1996 = vsel %vm284, %v1935, 0
      %v1999 = vsel %vm284, %v1936, 0
      %v2002 = vsel %vm284, %v1937, 0
      %v2005 = vsel %vm284, %v1938, 0
      %v2008 = vsel %vm284, %v1939, 0
      %v2011 = vsel %vm284, %v1940, 0
      %v2014 = vsel %vm284, %v1941, 0
      %v2017 = vsel %vm284, %v1942, 0
      %v2020 = vsel %vm284, %v1943, 0
      %v2023 = vsel %vm284, %v1944, 0
      %v2026 = vsel %vm284, %v1945, 0
      %v2029 = vsel %vm284, %v1946, 0
      %v2032 = vsel %vm284, %v1947, 0
      %v2035 = vsel %vm369, %v1949, 0
      %2037 = vmatprep.subr.mxu0 0.0
      %2038 = vmatpush1.msra.mxu0 %v2035
      %2039 = vmatprep.subr.mxu0 0.0
      %2040 = vmatpush1.msra.mxu0 0.0
      %2041 = vmatprep.subr.mxu0 0.0
      %2042 = vmatpush1.msra.mxu0 0.0
      %2043 = vmatprep.subr.mxu0 0.0
      %2044 = vmatpush1.msra.mxu0 0.0
      %2045 = vmatprep.subr.mxu0 0.0
      %2046 = vmatpush1.msra.mxu0 0.0
      %2047 = vmatprep.subr.mxu0 0.0
      %2048 = vmatpush1.msra.mxu0 0.0
      %2049 = vmatprep.subr.mxu0 0.0
      %2050 = vmatpush1.msra.mxu0 0.0
      %2051 = vmatprep.subr.mxu0 0.0
      %2052 = vmatpush1.msra.mxu0 0.0
      %2053 = vmatprep.subr.mxu0 0.0
      %2054 = vmatpush1.msra.mxu0 0.0
      %2055 = vmatprep.subr.mxu0 0.0
      %2056 = vmatpush1.msra.mxu0 0.0
      %2057 = vmatprep.subr.mxu0 0.0
      %2058 = vmatpush1.msra.mxu0 0.0
      %2059 = vmatprep.subr.mxu0 0.0
      %2060 = vmatpush1.msra.mxu0 0.0
      %2061 = vmatprep.subr.mxu0 0.0
      %2062 = vmatpush1.msra.mxu0 0.0
      %2063 = vmatprep.subr.mxu0 0.0
      %2064 = vmatpush1.msra.mxu0 0.0
      %2065 = vmatprep.subr.mxu0 0.0
      %2066 = vmatpush1.msra.mxu0 0.0
      %2067 = vmatprep.subr.mxu0 0.0
      %2068 = vmatpush1.msra.mxu0 0.0
      %2069 = vmatprep.subr.mxu0 0.0
      %2070 = vmatpush1.msra.mxu0 0.0
      %2071 = vmatprep.subr.mxu0 0.0
      %2072 = vmatpush1.msra.mxu0 0.0
      %2073 = vmatprep.subr.mxu0 0.0
      %2074 = vmatpush1.msra.mxu0 0.0
      %2075 = vmatprep.subr.mxu0 0.0
      %2076 = vmatpush1.msra.mxu0 0.0
      %2077 = vmatprep.subr.mxu0 0.0
      %2078 = vmatpush1.msra.mxu0 0.0
      %2079 = vmatprep.subr.mxu0 0.0
      %2080 = vmatpush1.msra.mxu0 0.0
      %2081 = vmatprep.subr.mxu0 0.0
      %2082 = vmatpush1.msra.mxu0 0.0
      %2083 = vmatprep.subr.mxu0 0.0
      %2084 = vmatpush1.msra.mxu0 0.0
      %2085 = vmatprep.subr.mxu0 0.0
      %2086 = vmatpush1.msra.mxu0 0.0
      %2087 = vmatprep.subr.mxu0 0.0
      %2088 = vmatpush1.msra.mxu0 0.0
      %2089 = vmatprep.subr.mxu0 0.0
      %2090 = vmatpush1.msra.mxu0 0.0
      %2091 = vmatprep.subr.mxu0 0.0
      %2092 = vmatpush1.msra.mxu0 0.0
      %2093 = vmatprep.subr.mxu0 0.0
      %2094 = vmatpush1.msra.mxu0 0.0
      %2095 = vmatprep.subr.mxu0 0.0
      %2096 = vmatpush1.msra.mxu0 0.0
      %2097 = vmatprep.subr.mxu0 0.0
      %2098 = vmatpush1.msra.mxu0 0.0
      %2099 = vmatprep.subr.mxu0 0.0
      %2100 = vmatpush1.msra.mxu0 0.0
      %2101 = vmatprep.mubr.f32.mxu0 0.0
      %2102 = vmatmul.mubr.f32.gmra.mrb[0].mxu0 %v1951
      %v2103 = vpop.f32.mrb[0].mxu0
      %v2104 = vadd.f32 0.0, %v2103
      %v2105 = vpop.f32.mrb[0].mxu0
      %2106 = vmatprep.mubr.f32.mxu0 0.0
      %2107 = vmatmul.mubr.f32.gmra.mrb[0].mxu0 %v1954
      %v2108 = vpop.f32.mrb[0].mxu0
      %v2109 = vadd.f32 0.0, %v2108
      %v2110 = vpop.f32.mrb[0].mxu0
      %2111 = vmatprep.mubr.f32.mxu0 0.0
      %2112 = vmatmul.mubr.f32.gmra.mrb[0].mxu0 %v1957
      %v2113 = vpop.f32.mrb[0].mxu0
      %v2114 = vadd.f32 0.0, %v2113
      %v2115 = vpop.f32.mrb[0].mxu0
      %2116 = vmatprep.mubr.f32.mxu0 0.0
      %2117 = vmatmul.mubr.f32.gmra.mrb[0].mxu0 %v1960
      %v2118 = vpop.f32.mrb[0].mxu0
      %v2119 = vadd.f32 0.0, %v2118
      %v2120 = vpop.f32.mrb[0].mxu0
      %2121 = vmatprep.mubr.f32.mxu0 0.0
      %2122 = vmatmul.mubr.f32.gmra.mrb[0].mxu0 %v1963
      %v2123 = vpop.f32.mrb[0].mxu0
      %v2124 = vadd.f32 0.0, %v2123
      %v2125 = vpop.f32.mrb[0].mxu0
      %2126 = vmatprep.mubr.f32.mxu0 0.0
      %2127 = vmatmul.mubr.f32.gmra.mrb[0].mxu0 %v1966
      %v2128 = vpop.f32.mrb[0].mxu0
      %v2129 = vadd.f32 0.0, %v2128
      %v2130 = vpop.f32.mrb[0].mxu0
      %2131 = vmatprep.mubr.f32.mxu0 0.0
      %2132 = vmatmul.mubr.f32.gmra.mrb[0].mxu0 %v1969
      %v2133 = vpop.f32.mrb[0].mxu0
      %v2134 = vadd.f32 0.0, %v2133
      %v2135 = vpop.f32.mrb[0].mxu0
      %2136 = vmatprep.mubr.f32.mxu0 0.0
      %2137 = vmatmul.mubr.f32.gmra.mrb[0].mxu0 %v1972
      %v2138 = vpop.f32.mrb[0].mxu0
      %v2139 = vadd.f32 0.0, %v2138
      %v2140 = vpop.f32.mrb[0].mxu0
      %2141 = vmatprep.mubr.f32.mxu0 0.0
      %2142 = vmatmul.mubr.f32.gmra.mrb[0].mxu0 %v1975
      %v2143 = vpop.f32.mrb[0].mxu0
      %v2144 = vadd.f32 0.0, %v2143
      %v2145 = vpop.f32.mrb[0].mxu0
      %2146 = vmatprep.mubr.f32.mxu0 0.0
      %2147 = vmatmul.mubr.f32.gmra.mrb[0].mxu0 %v1978
      %v2148 = vpop.f32.mrb[0].mxu0
      %v2149 = vadd.f32 0.0, %v2148
      %v2150 = vpop.f32.mrb[0].mxu0
      %2151 = vmatprep.mubr.f32.mxu0 0.0
      %2152 = vmatmul.mubr.f32.gmra.mrb[0].mxu0 %v1981
      %v2153 = vpop.f32.mrb[0].mxu0
      %v2154 = vadd.f32 0.0, %v2153
      %v2155 = vpop.f32.mrb[0].mxu0
      %2156 = vmatprep.mubr.f32.mxu0 0.0
      %2157 = vmatmul.mubr.f32.gmra.mrb[0].mxu0 %v1984
      %v2158 = vpop.f32.mrb[0].mxu0
      %v2159 = vadd.f32 0.0, %v2158
      %v2160 = vpop.f32.mrb[0].mxu0
      %2161 = vmatprep.mubr.f32.mxu0 0.0
      %2162 = vmatmul.mubr.f32.gmra.mrb[0].mxu0 %v1987
      %v2163 = vpop.f32.mrb[0].mxu0
      %v2164 = vadd.f32 0.0, %v2163
      %v2165 = vpop.f32.mrb[0].mxu0
      %2166 = vmatprep.mubr.f32.mxu0 0.0
      %2167 = vmatmul.mubr.f32.gmra.mrb[0].mxu0 %v1990
      %v2168 = vpop.f32.mrb[0].mxu0
      %v2169 = vadd.f32 0.0, %v2168
      %v2170 = vpop.f32.mrb[0].mxu0
      %2171 = vmatprep.mubr.f32.mxu0 0.0
      %2172 = vmatmul.mubr.f32.gmra.mrb[0].mxu0 %v1993
      %v2173 = vpop.f32.mrb[0].mxu0
      %v2174 = vadd.f32 0.0, %v2173
      %v2175 = vpop.f32.mrb[0].mxu0
      %2176 = vmatprep.mubr.f32.mxu0 0.0
      %2177 = vmatmul.mubr.f32.gmra.mrb[0].mxu0 %v1996
      %v2178 = vpop.f32.mrb[0].mxu0
      %v2179 = vadd.f32 0.0, %v2178
      %v2180 = vpop.f32.mrb[0].mxu0
      %2181 = vmatprep.mubr.f32.mxu0 0.0
      %2182 = vmatmul.mubr.f32.gmra.mrb[0].mxu0 %v1999
      %v2183 = vpop.f32.mrb[0].mxu0
      %v2184 = vadd.f32 0.0, %v2183
      %v2185 = vpop.f32.mrb[0].mxu0
      %2186 = vmatprep.mubr.f32.mxu0 0.0
      %2187 = vmatmul.mubr.f32.gmra.mrb[0].mxu0 %v2002
      %v2188 = vpop.f32.mrb[0].mxu0
      %v2189 = vadd.f32 0.0, %v2188
      %v2190 = vpop.f32.mrb[0].mxu0
      %2191 = vmatprep.mubr.f32.mxu0 0.0
      %2192 = vmatmul.mubr.f32.gmra.mrb[0].mxu0 %v2005
      %v2193 = vpop.f32.mrb[0].mxu0
      %v2194 = vadd.f32 0.0, %v2193
      %v2195 = vpop.f32.mrb[0].mxu0
      %2196 = vmatprep.mubr.f32.mxu0 0.0
      %2197 = vmatmul.mubr.f32.gmra.mrb[0].mxu0 %v2008
      %v2198 = vpop.f32.mrb[0].mxu0
      %v2199 = vadd.f32 0.0, %v2198
      %v2200 = vpop.f32.mrb[0].mxu0
      %2201 = vmatprep.mubr.f32.mxu0 0.0
      %2202 = vmatmul.mubr.f32.gmra.mrb[0].mxu0 %v2011
      %v2203 = vpop.f32.mrb[0].mxu0
      %v2204 = vadd.f32 0.0, %v2203
      %v2205 = vpop.f32.mrb[0].mxu0
      %2206 = vmatprep.mubr.f32.mxu0 0.0
      %2207 = vmatmul.mubr.f32.gmra.mrb[0].mxu0 %v2014
      %v2208 = vpop.f32.mrb[0].mxu0
      %v2209 = vadd.f32 0.0, %v2208
      %v2210 = vpop.f32.mrb[0].mxu0
      %2211 = vmatprep.mubr.f32.mxu0 0.0
      %2212 = vmatmul.mubr.f32.gmra.mrb[0].mxu0 %v2017
      %v2213 = vpop.f32.mrb[0].mxu0
      %v2214 = vadd.f32 0.0, %v2213
      %v2215 = vpop.f32.mrb[0].mxu0
      %2216 = vmatprep.mubr.f32.mxu0 0.0
      %2217 = vmatmul.mubr.f32.gmra.mrb[0].mxu0 %v2020
      %v2218 = vpop.f32.mrb[0].mxu0
      %v2219 = vadd.f32 0.0, %v2218
      %v2220 = vpop.f32.mrb[0].mxu0
      %2221 = vmatprep.mubr.f32.mxu0 0.0
      %2222 = vmatmul.mubr.f32.gmra.mrb[0].mxu0 %v2023
      %v2223 = vpop.f32.mrb[0].mxu0
      %v2224 = vadd.f32 0.0, %v2223
      %v2225 = vpop.f32.mrb[0].mxu0
      %2226 = vmatprep.mubr.f32.mxu0 0.0
      %2227 = vmatmul.mubr.f32.gmra.mrb[0].mxu0 %v2026
      %v2228 = vpop.f32.mrb[0].mxu0
      %v2229 = vadd.f32 0.0, %v2228
      %v2230 = vpop.f32.mrb[0].mxu0
      %2231 = vmatprep.mubr.f32.mxu0 0.0
      %2232 = vmatmul.mubr.f32.gmra.mrb[0].mxu0 %v2029
      %v2233 = vpop.f32.mrb[0].mxu0
      %v2234 = vadd.f32 0.0, %v2233
      %v2235 = vpop.f32.mrb[0].mxu0
      %2236 = vmatprep.mubr.f32.mxu0 0.0
      %2237 = vmatmul.mubr.f32.gmra.mrb[0].mxu0 %v2032
      %v2238 = vpop.f32.mrb[0].mxu0
      %v2239 = vadd.f32 0.0, %v2238
      %v2240 = vpop.f32.mrb[0].mxu0
      %2241 = vdwg.mxu0
      %v2242 = vadd.f32 %v1892, %v2104
      %v2243 = vadd.f32 %v1893, %v2109
      %v2244 = vadd.f32 %v1894, %v2114
      %v2245 = vadd.f32 %v1895, %v2119
      %v2246 = vadd.f32 %v1896, %v2124
      %v2247 = vadd.f32 %v1897, %v2129
      %v2248 = vadd.f32 %v1898, %v2134
      %v2249 = vadd.f32 %v1899, %v2139
      %v2250 = vadd.f32 %v1900, %v2144
      %v2251 = vadd.f32 %v1901, %v2149
      %v2252 = vadd.f32 %v1902, %v2154
      %v2253 = vadd.f32 %v1903, %v2159
      %v2254 = vadd.f32 %v1904, %v2164
      %v2255 = vadd.f32 %v1905, %v2169
      %v2256 = vadd.f32 %v1906, %v2174
      %v2257 = vadd.f32 %v1907, %v2179
      %v2258 = vadd.f32 %v1908, %v2184
      %v2259 = vadd.f32 %v1909, %v2189
      %v2260 = vadd.f32 %v1910, %v2194
      %v2261 = vadd.f32 %v1911, %v2199
      %v2262 = vadd.f32 %v1912, %v2204
      %v2263 = vadd.f32 %v1913, %v2209
      %v2264 = vadd.f32 %v1914, %v2214
      %v2265 = vadd.f32 %v1915, %v2219
      %v2266 = vadd.f32 %v1916, %v2224
      %v2267 = vadd.f32 %v1917, %v2229
      %v2268 = vadd.f32 %v1918, %v2234
      %v2269 = vadd.f32 %v1919, %v2239
      %v2270 = vld [vmem:[%s219 + $0x20] sm:$0xff]
      %v2271 = vld [vmem:[%s219 + $0x28] sm:$0xff]
      %v2272 = vld [vmem:[%s219 + $0x30] sm:$0xff]
      %v2273 = vld [vmem:[%s219 + $0x38] sm:$0xff]
      %v2274 = vld [vmem:[%s219 + $0x40] sm:$0xff]
      %v2275 = vld [vmem:[%s219 + $0x48] sm:$0xff]
      %v2276 = vld [vmem:[%s219 + $0x50] sm:$0xff]
      %v2277 = vld [vmem:[%s219 + $0x58] sm:$0xff]
      %v2278 = vld [vmem:[%s219 + $0x60] sm:$0xff]
      %v2279 = vld [vmem:[%s219 + $0x68] sm:$0xff]
      %v2280 = vld [vmem:[%s219 + $0x70] sm:$0xff]
      %v2281 = vld [vmem:[%s219 + $0x78] sm:$0xff]
      %v2282 = vld [vmem:[%s219 + $0x80] sm:$0xff]
      %v2283 = vld [vmem:[%s219 + $0x88] sm:$0xff]
      %v2284 = vld [vmem:[%s219 + $0x90] sm:$0xff]
      %v2285 = vld [vmem:[%s219 + $0x98] sm:$0xff]
      %v2286 = vld [vmem:[%s219 + $0xa0] sm:$0xff]
      %v2287 = vld [vmem:[%s219 + $0xa8] sm:$0xff]
      %v2288 = vld [vmem:[%s219 + $0xb0] sm:$0xff]
      %v2289 = vld [vmem:[%s219 + $0xb8] sm:$0xff]
      %v2290 = vld [vmem:[%s219 + $0xc0] sm:$0xff]
      %v2291 = vld [vmem:[%s219 + $0xc8] sm:$0xff]
      %v2292 = vld [vmem:[%s219 + $0xd0] sm:$0xff]
      %v2293 = vld [vmem:[%s219 + $0xd8] sm:$0xff]
      %v2294 = vld [vmem:[%s219 + $0xe0] sm:$0xff]
      %v2295 = vld [vmem:[%s219 + $0xe8] sm:$0xff]
      %v2296 = vld [vmem:[%s219 + $0xf0] sm:$0xff]
      %v2297 = vld [vmem:[%s219 + $0xf8] sm:$0xff]
      %s2298 = scalar_lea.vmem %s1, 24
      %v2299 = vld [vmem:[%s2298] sm:$0x7]
      %v2301 = vsel %vm284, %v2270, 0
      %v2304 = vsel %vm284, %v2271, 0
      %v2307 = vsel %vm284, %v2272, 0
      %v2310 = vsel %vm284, %v2273, 0
      %v2313 = vsel %vm284, %v2274, 0
      %v2316 = vsel %vm284, %v2275, 0
      %v2319 = vsel %vm284, %v2276, 0
      %v2322 = vsel %vm284, %v2277, 0
      %v2325 = vsel %vm284, %v2278, 0
      %v2328 = vsel %vm284, %v2279, 0
      %v2331 = vsel %vm284, %v2280, 0
      %v2334 = vsel %vm284, %v2281, 0
      %v2337 = vsel %vm284, %v2282, 0
      %v2340 = vsel %vm284, %v2283, 0
      %v2343 = vsel %vm284, %v2284, 0
      %v2346 = vsel %vm284, %v2285, 0
      %v2349 = vsel %vm284, %v2286, 0
      %v2352 = vsel %vm284, %v2287, 0
      %v2355 = vsel %vm284, %v2288, 0
      %v2358 = vsel %vm284, %v2289, 0
      %v2361 = vsel %vm284, %v2290, 0
      %v2364 = vsel %vm284, %v2291, 0
      %v2367 = vsel %vm284, %v2292, 0
      %v2370 = vsel %vm284, %v2293, 0
      %v2373 = vsel %vm284, %v2294, 0
      %v2376 = vsel %vm284, %v2295, 0
      %v2379 = vsel %vm284, %v2296, 0
      %v2382 = vsel %vm284, %v2297, 0
      %v2385 = vsel %vm369, %v2299, 0
      %2387 = vmatprep.subr.mxu0 0.0
      %2388 = vmatpush1.msra.mxu0 %v2385
      %2389 = vmatprep.subr.mxu0 0.0
      %2390 = vmatpush1.msra.mxu0 0.0
      %2391 = vmatprep.subr.mxu0 0.0
      %2392 = vmatpush1.msra.mxu0 0.0
      %2393 = vmatprep.subr.mxu0 0.0
      %2394 = vmatpush1.msra.mxu0 0.0
      %2395 = vmatprep.subr.mxu0 0.0
      %2396 = vmatpush1.msra.mxu0 0.0
      %2397 = vmatprep.subr.mxu0 0.0
      %2398 = vmatpush1.msra.mxu0 0.0
      %2399 = vmatprep.subr.mxu0 0.0
      %2400 = vmatpush1.msra.mxu0 0.0
      %2401 = vmatprep.subr.mxu0 0.0
      %2402 = vmatpush1.msra.mxu0 0.0
      %2403 = vmatprep.subr.mxu0 0.0
      %2404 = vmatpush1.msra.mxu0 0.0
      %2405 = vmatprep.subr.mxu0 0.0
      %2406 = vmatpush1.msra.mxu0 0.0
      %2407 = vmatprep.subr.mxu0 0.0
      %2408 = vmatpush1.msra.mxu0 0.0
      %2409 = vmatprep.subr.mxu0 0.0
      %2410 = vmatpush1.msra.mxu0 0.0
      %2411 = vmatprep.subr.mxu0 0.0
      %2412 = vmatpush1.msra.mxu0 0.0
      %2413 = vmatprep.subr.mxu0 0.0
      %2414 = vmatpush1.msra.mxu0 0.0
      %2415 = vmatprep.subr.mxu0 0.0
      %2416 = vmatpush1.msra.mxu0 0.0
      %2417 = vmatprep.subr.mxu0 0.0
      %2418 = vmatpush1.msra.mxu0 0.0
      %2419 = vmatprep.subr.mxu0 0.0
      %2420 = vmatpush1.msra.mxu0 0.0
      %2421 = vmatprep.subr.mxu0 0.0
      %2422 = vmatpush1.msra.mxu0 0.0
      %2423 = vmatprep.subr.mxu0 0.0
      %2424 = vmatpush1.msra.mxu0 0.0
      %2425 = vmatprep.subr.mxu0 0.0
      %2426 = vmatpush1.msra.mxu0 0.0
      %2427 = vmatprep.subr.mxu0 0.0
      %2428 = vmatpush1.msra.mxu0 0.0
      %2429 = vmatprep.subr.mxu0 0.0
      %2430 = vmatpush1.msra.mxu0 0.0
      %2431 = vmatprep.subr.mxu0 0.0
      %2432 = vmatpush1.msra.mxu0 0.0
      %2433 = vmatprep.subr.mxu0 0.0
      %2434 = vmatpush1.msra.mxu0 0.0
      %2435 = vmatprep.subr.mxu0 0.0
      %2436 = vmatpush1.msra.mxu0 0.0
      %2437 = vmatprep.subr.mxu0 0.0
      %2438 = vmatpush1.msra.mxu0 0.0
      %2439 = vmatprep.subr.mxu0 0.0
      %2440 = vmatpush1.msra.mxu0 0.0
      %2441 = vmatprep.subr.mxu0 0.0
      %2442 = vmatpush1.msra.mxu0 0.0
      %2443 = vmatprep.subr.mxu0 0.0
      %2444 = vmatpush1.msra.mxu0 0.0
      %2445 = vmatprep.subr.mxu0 0.0
      %2446 = vmatpush1.msra.mxu0 0.0
      %2447 = vmatprep.subr.mxu0 0.0
      %2448 = vmatpush1.msra.mxu0 0.0
      %2449 = vmatprep.subr.mxu0 0.0
      %2450 = vmatpush1.msra.mxu0 0.0
      %2451 = vmatprep.mubr.f32.mxu0 0.0
      %2452 = vmatmul.mubr.f32.gmra.mrb[0].mxu0 %v2301
      %v2453 = vpop.f32.mrb[0].mxu0
      %v2454 = vadd.f32 0.0, %v2453
      %v2455 = vpop.f32.mrb[0].mxu0
      %2456 = vmatprep.mubr.f32.mxu0 0.0
      %2457 = vmatmul.mubr.f32.gmra.mrb[0].mxu0 %v2304
      %v2458 = vpop.f32.mrb[0].mxu0
      %v2459 = vadd.f32 0.0, %v2458
      %v2460 = vpop.f32.mrb[0].mxu0
      %2461 = vmatprep.mubr.f32.mxu0 0.0
      %2462 = vmatmul.mubr.f32.gmra.mrb[0].mxu0 %v2307
      %v2463 = vpop.f32.mrb[0].mxu0
      %v2464 = vadd.f32 0.0, %v2463
      %v2465 = vpop.f32.mrb[0].mxu0
      %2466 = vmatprep.mubr.f32.mxu0 0.0
      %2467 = vmatmul.mubr.f32.gmra.mrb[0].mxu0 %v2310
      %v2468 = vpop.f32.mrb[0].mxu0
      %v2469 = vadd.f32 0.0, %v2468
      %v2470 = vpop.f32.mrb[0].mxu0
      %2471 = vmatprep.mubr.f32.mxu0 0.0
      %2472 = vmatmul.mubr.f32.gmra.mrb[0].mxu0 %v2313
      %v2473 = vpop.f32.mrb[0].mxu0
      %v2474 = vadd.f32 0.0, %v2473
      %v2475 = vpop.f32.mrb[0].mxu0
      %2476 = vmatprep.mubr.f32.mxu0 0.0
      %2477 = vmatmul.mubr.f32.gmra.mrb[0].mxu0 %v2316
      %v2478 = vpop.f32.mrb[0].mxu0
      %v2479 = vadd.f32 0.0, %v2478
      %v2480 = vpop.f32.mrb[0].mxu0
      %2481 = vmatprep.mubr.f32.mxu0 0.0
      %2482 = vmatmul.mubr.f32.gmra.mrb[0].mxu0 %v2319
      %v2483 = vpop.f32.mrb[0].mxu0
      %v2484 = vadd.f32 0.0, %v2483
      %v2485 = vpop.f32.mrb[0].mxu0
      %2486 = vmatprep.mubr.f32.mxu0 0.0
      %2487 = vmatmul.mubr.f32.gmra.mrb[0].mxu0 %v2322
      %v2488 = vpop.f32.mrb[0].mxu0
      %v2489 = vadd.f32 0.0, %v2488
      %v2490 = vpop.f32.mrb[0].mxu0
      %2491 = vmatprep.mubr.f32.mxu0 0.0
      %2492 = vmatmul.mubr.f32.gmra.mrb[0].mxu0 %v2325
      %v2493 = vpop.f32.mrb[0].mxu0
      %v2494 = vadd.f32 0.0, %v2493
      %v2495 = vpop.f32.mrb[0].mxu0
      %2496 = vmatprep.mubr.f32.mxu0 0.0
      %2497 = vmatmul.mubr.f32.gmra.mrb[0].mxu0 %v2328
      %v2498 = vpop.f32.mrb[0].mxu0
      %v2499 = vadd.f32 0.0, %v2498
      %v2500 = vpop.f32.mrb[0].mxu0
      %2501 = vmatprep.mubr.f32.mxu0 0.0
      %2502 = vmatmul.mubr.f32.gmra.mrb[0].mxu0 %v2331
      %v2503 = vpop.f32.mrb[0].mxu0
      %v2504 = vadd.f32 0.0, %v2503
      %v2505 = vpop.f32.mrb[0].mxu0
      %2506 = vmatprep.mubr.f32.mxu0 0.0
      %2507 = vmatmul.mubr.f32.gmra.mrb[0].mxu0 %v2334
      %v2508 = vpop.f32.mrb[0].mxu0
      %v2509 = vadd.f32 0.0, %v2508
      %v2510 = vpop.f32.mrb[0].mxu0
      %2511 = vmatprep.mubr.f32.mxu0 0.0
      %2512 = vmatmul.mubr.f32.gmra.mrb[0].mxu0 %v2337
      %v2513 = vpop.f32.mrb[0].mxu0
      %v2514 = vadd.f32 0.0, %v2513
      %v2515 = vpop.f32.mrb[0].mxu0
      %2516 = vmatprep.mubr.f32.mxu0 0.0
      %2517 = vmatmul.mubr.f32.gmra.mrb[0].mxu0 %v2340
      %v2518 = vpop.f32.mrb[0].mxu0
      %v2519 = vadd.f32 0.0, %v2518
      %v2520 = vpop.f32.mrb[0].mxu0
      %2521 = vmatprep.mubr.f32.mxu0 0.0
      %2522 = vmatmul.mubr.f32.gmra.mrb[0].mxu0 %v2343
      %v2523 = vpop.f32.mrb[0].mxu0
      %v2524 = vadd.f32 0.0, %v2523
      %v2525 = vpop.f32.mrb[0].mxu0
      %2526 = vmatprep.mubr.f32.mxu0 0.0
      %2527 = vmatmul.mubr.f32.gmra.mrb[0].mxu0 %v2346
      %v2528 = vpop.f32.mrb[0].mxu0
      %v2529 = vadd.f32 0.0, %v2528
      %v2530 = vpop.f32.mrb[0].mxu0
      %2531 = vmatprep.mubr.f32.mxu0 0.0
      %2532 = vmatmul.mubr.f32.gmra.mrb[0].mxu0 %v2349
      %v2533 = vpop.f32.mrb[0].mxu0
      %v2534 = vadd.f32 0.0, %v2533
      %v2535 = vpop.f32.mrb[0].mxu0
      %2536 = vmatprep.mubr.f32.mxu0 0.0
      %2537 = vmatmul.mubr.f32.gmra.mrb[0].mxu0 %v2352
      %v2538 = vpop.f32.mrb[0].mxu0
      %v2539 = vadd.f32 0.0, %v2538
      %v2540 = vpop.f32.mrb[0].mxu0
      %2541 = vmatprep.mubr.f32.mxu0 0.0
      %2542 = vmatmul.mubr.f32.gmra.mrb[0].mxu0 %v2355
      %v2543 = vpop.f32.mrb[0].mxu0
      %v2544 = vadd.f32 0.0, %v2543
      %v2545 = vpop.f32.mrb[0].mxu0
      %2546 = vmatprep.mubr.f32.mxu0 0.0
      %2547 = vmatmul.mubr.f32.gmra.mrb[0].mxu0 %v2358
      %v2548 = vpop.f32.mrb[0].mxu0
      %v2549 = vadd.f32 0.0, %v2548
      %v2550 = vpop.f32.mrb[0].mxu0
      %2551 = vmatprep.mubr.f32.mxu0 0.0
      %2552 = vmatmul.mubr.f32.gmra.mrb[0].mxu0 %v2361
      %v2553 = vpop.f32.mrb[0].mxu0
      %v2554 = vadd.f32 0.0, %v2553
      %v2555 = vpop.f32.mrb[0].mxu0
      %2556 = vmatprep.mubr.f32.mxu0 0.0
      %2557 = vmatmul.mubr.f32.gmra.mrb[0].mxu0 %v2364
      %v2558 = vpop.f32.mrb[0].mxu0
      %v2559 = vadd.f32 0.0, %v2558
      %v2560 = vpop.f32.mrb[0].mxu0
      %2561 = vmatprep.mubr.f32.mxu0 0.0
      %2562 = vmatmul.mubr.f32.gmra.mrb[0].mxu0 %v2367
      %v2563 = vpop.f32.mrb[0].mxu0
      %v2564 = vadd.f32 0.0, %v2563
      %v2565 = vpop.f32.mrb[0].mxu0
      %2566 = vmatprep.mubr.f32.mxu0 0.0
      %2567 = vmatmul.mubr.f32.gmra.mrb[0].mxu0 %v2370
      %v2568 = vpop.f32.mrb[0].mxu0
      %v2569 = vadd.f32 0.0, %v2568
      %v2570 = vpop.f32.mrb[0].mxu0
      %2571 = vmatprep.mubr.f32.mxu0 0.0
      %2572 = vmatmul.mubr.f32.gmra.mrb[0].mxu0 %v2373
      %v2573 = vpop.f32.mrb[0].mxu0
      %v2574 = vadd.f32 0.0, %v2573
      %v2575 = vpop.f32.mrb[0].mxu0
      %2576 = vmatprep.mubr.f32.mxu0 0.0
      %2577 = vmatmul.mubr.f32.gmra.mrb[0].mxu0 %v2376
      %v2578 = vpop.f32.mrb[0].mxu0
      %v2579 = vadd.f32 0.0, %v2578
      %v2580 = vpop.f32.mrb[0].mxu0
      %2581 = vmatprep.mubr.f32.mxu0 0.0
      %2582 = vmatmul.mubr.f32.gmra.mrb[0].mxu0 %v2379
      %v2583 = vpop.f32.mrb[0].mxu0
      %v2584 = vadd.f32 0.0, %v2583
      %v2585 = vpop.f32.mrb[0].mxu0
      %2586 = vmatprep.mubr.f32.mxu0 0.0
      %2587 = vmatmul.mubr.f32.gmra.mrb[0].mxu0 %v2382
      %v2588 = vpop.f32.mrb[0].mxu0
      %v2589 = vadd.f32 0.0, %v2588
      %v2590 = vpop.f32.mrb[0].mxu0
      %2591 = vdwg.mxu0
      %v2592 = vadd.f32 %v2242, %v2454
      %v2593 = vadd.f32 %v2243, %v2459
      %v2594 = vadd.f32 %v2244, %v2464
      %v2595 = vadd.f32 %v2245, %v2469
      %v2596 = vadd.f32 %v2246, %v2474
      %v2597 = vadd.f32 %v2247, %v2479
      %v2598 = vadd.f32 %v2248, %v2484
      %v2599 = vadd.f32 %v2249, %v2489
      %v2600 = vadd.f32 %v2250, %v2494
      %v2601 = vadd.f32 %v2251, %v2499
      %v2602 = vadd.f32 %v2252, %v2504
      %v2603 = vadd.f32 %v2253, %v2509
      %v2604 = vadd.f32 %v2254, %v2514
      %v2605 = vadd.f32 %v2255, %v2519
      %v2606 = vadd.f32 %v2256, %v2524
      %v2607 = vadd.f32 %v2257, %v2529
      %v2608 = vadd.f32 %v2258, %v2534
      %v2609 = vadd.f32 %v2259, %v2539
      %v2610 = vadd.f32 %v2260, %v2544
      %v2611 = vadd.f32 %v2261, %v2549
      %v2612 = vadd.f32 %v2262, %v2554
      %v2613 = vadd.f32 %v2263, %v2559
      %v2614 = vadd.f32 %v2264, %v2564
      %v2615 = vadd.f32 %v2265, %v2569
      %v2616 = vadd.f32 %v2266, %v2574
      %v2617 = vadd.f32 %v2267, %v2579
      %v2618 = vadd.f32 %v2268, %v2584
      %v2619 = vadd.f32 %v2269, %v2589
      %v2620 = vld [vmem:[%s219 + $0x21] sm:$0xff]
      %v2621 = vld [vmem:[%s219 + $0x29] sm:$0xff]
      %v2622 = vld [vmem:[%s219 + $0x31] sm:$0xff]
      %v2623 = vld [vmem:[%s219 + $0x39] sm:$0xff]
      %v2624 = vld [vmem:[%s219 + $0x41] sm:$0xff]
      %v2625 = vld [vmem:[%s219 + $0x49] sm:$0xff]
      %v2626 = vld [vmem:[%s219 + $0x51] sm:$0xff]
      %v2627 = vld [vmem:[%s219 + $0x59] sm:$0xff]
      %v2628 = vld [vmem:[%s219 + $0x61] sm:$0xff]
      %v2629 = vld [vmem:[%s219 + $0x69] sm:$0xff]
      %v2630 = vld [vmem:[%s219 + $0x71] sm:$0xff]
      %v2631 = vld [vmem:[%s219 + $0x79] sm:$0xff]
      %v2632 = vld [vmem:[%s219 + $0x81] sm:$0xff]
      %v2633 = vld [vmem:[%s219 + $0x89] sm:$0xff]
      %v2634 = vld [vmem:[%s219 + $0x91] sm:$0xff]
      %v2635 = vld [vmem:[%s219 + $0x99] sm:$0xff]
      %v2636 = vld [vmem:[%s219 + $0xa1] sm:$0xff]
      %v2637 = vld [vmem:[%s219 + $0xa9] sm:$0xff]
      %v2638 = vld [vmem:[%s219 + $0xb1] sm:$0xff]
      %v2639 = vld [vmem:[%s219 + $0xb9] sm:$0xff]
      %v2640 = vld [vmem:[%s219 + $0xc1] sm:$0xff]
      %v2641 = vld [vmem:[%s219 + $0xc9] sm:$0xff]
      %v2642 = vld [vmem:[%s219 + $0xd1] sm:$0xff]
      %v2643 = vld [vmem:[%s219 + $0xd9] sm:$0xff]
      %v2644 = vld [vmem:[%s219 + $0xe1] sm:$0xff]
      %v2645 = vld [vmem:[%s219 + $0xe9] sm:$0xff]
      %v2646 = vld [vmem:[%s219 + $0xf1] sm:$0xff]
      %v2647 = vld [vmem:[%s219 + $0xf9] sm:$0xff]
      %s2648 = scalar_lea.vmem %s1, 28
      %v2649 = vld [vmem:[%s2648] sm:$0x7]
      %v2651 = vsel %vm284, %v2620, 0
      %v2654 = vsel %vm284, %v2621, 0
      %v2657 = vsel %vm284, %v2622, 0
      %v2660 = vsel %vm284, %v2623, 0
      %v2663 = vsel %vm284, %v2624, 0
      %v2666 = vsel %vm284, %v2625, 0
      %v2669 = vsel %vm284, %v2626, 0
      %v2672 = vsel %vm284, %v2627, 0
      %v2675 = vsel %vm284, %v2628, 0
      %v2678 = vsel %vm284, %v2629, 0
      %v2681 = vsel %vm284, %v2630, 0
      %v2684 = vsel %vm284, %v2631, 0
      %v2687 = vsel %vm284, %v2632, 0
      %v2690 = vsel %vm284, %v2633, 0
      %v2693 = vsel %vm284, %v2634, 0
      %v2696 = vsel %vm284, %v2635, 0
      %v2699 = vsel %vm284, %v2636, 0
      %v2702 = vsel %vm284, %v2637, 0
      %v2705 = vsel %vm284, %v2638, 0
      %v2708 = vsel %vm284, %v2639, 0
      %v2711 = vsel %vm284, %v2640, 0
      %v2714 = vsel %vm284, %v2641, 0
      %v2717 = vsel %vm284, %v2642, 0
      %v2720 = vsel %vm284, %v2643, 0
      %v2723 = vsel %vm284, %v2644, 0
      %v2726 = vsel %vm284, %v2645, 0
      %v2729 = vsel %vm284, %v2646, 0
      %v2732 = vsel %vm284, %v2647, 0
      %v2735 = vsel %vm369, %v2649, 0
      %2737 = vmatprep.subr.mxu0 0.0
      %2738 = vmatpush1.msra.mxu0 %v2735
      %2739 = vmatprep.subr.mxu0 0.0
      %2740 = vmatpush1.msra.mxu0 0.0
      %2741 = vmatprep.subr.mxu0 0.0
      %2742 = vmatpush1.msra.mxu0 0.0
      %2743 = vmatprep.subr.mxu0 0.0
      %2744 = vmatpush1.msra.mxu0 0.0
      %2745 = vmatprep.subr.mxu0 0.0
      %2746 = vmatpush1.msra.mxu0 0.0
      %2747 = vmatprep.subr.mxu0 0.0
      %2748 = vmatpush1.msra.mxu0 0.0
      %2749 = vmatprep.subr.mxu0 0.0
      %2750 = vmatpush1.msra.mxu0 0.0
      %2751 = vmatprep.subr.mxu0 0.0
      %2752 = vmatpush1.msra.mxu0 0.0
      %2753 = vmatprep.subr.mxu0 0.0
      %2754 = vmatpush1.msra.mxu0 0.0
      %2755 = vmatprep.subr.mxu0 0.0
      %2756 = vmatpush1.msra.mxu0 0.0
      %2757 = vmatprep.subr.mxu0 0.0
      %2758 = vmatpush1.msra.mxu0 0.0
      %2759 = vmatprep.subr.mxu0 0.0
      %2760 = vmatpush1.msra.mxu0 0.0
      %2761 = vmatprep.subr.mxu0 0.0
      %2762 = vmatpush1.msra.mxu0 0.0
      %2763 = vmatprep.subr.mxu0 0.0
      %2764 = vmatpush1.msra.mxu0 0.0
      %2765 = vmatprep.subr.mxu0 0.0
      %2766 = vmatpush1.msra.mxu0 0.0
      %2767 = vmatprep.subr.mxu0 0.0
      %2768 = vmatpush1.msra.mxu0 0.0
      %2769 = vmatprep.subr.mxu0 0.0
      %2770 = vmatpush1.msra.mxu0 0.0
      %2771 = vmatprep.subr.mxu0 0.0
      %2772 = vmatpush1.msra.mxu0 0.0
      %2773 = vmatprep.subr.mxu0 0.0
      %2774 = vmatpush1.msra.mxu0 0.0
      %2775 = vmatprep.subr.mxu0 0.0
      %2776 = vmatpush1.msra.mxu0 0.0
      %2777 = vmatprep.subr.mxu0 0.0
      %2778 = vmatpush1.msra.mxu0 0.0
      %2779 = vmatprep.subr.mxu0 0.0
      %2780 = vmatpush1.msra.mxu0 0.0
      %2781 = vmatprep.subr.mxu0 0.0
      %2782 = vmatpush1.msra.mxu0 0.0
      %2783 = vmatprep.subr.mxu0 0.0
      %2784 = vmatpush1.msra.mxu0 0.0
      %2785 = vmatprep.subr.mxu0 0.0
      %2786 = vmatpush1.msra.mxu0 0.0
      %2787 = vmatprep.subr.mxu0 0.0
      %2788 = vmatpush1.msra.mxu0 0.0
      %2789 = vmatprep.subr.mxu0 0.0
      %2790 = vmatpush1.msra.mxu0 0.0
      %2791 = vmatprep.subr.mxu0 0.0
      %2792 = vmatpush1.msra.mxu0 0.0
      %2793 = vmatprep.subr.mxu0 0.0
      %2794 = vmatpush1.msra.mxu0 0.0
      %2795 = vmatprep.subr.mxu0 0.0
      %2796 = vmatpush1.msra.mxu0 0.0
      %2797 = vmatprep.subr.mxu0 0.0
      %2798 = vmatpush1.msra.mxu0 0.0
      %2799 = vmatprep.subr.mxu0 0.0
      %2800 = vmatpush1.msra.mxu0 0.0
      %2801 = vmatprep.mubr.f32.mxu0 0.0
      %2802 = vmatmul.mubr.f32.gmra.mrb[0].mxu0 %v2651
      %v2803 = vpop.f32.mrb[0].mxu0
      %v2804 = vadd.f32 0.0, %v2803
      %v2805 = vpop.f32.mrb[0].mxu0
      %2806 = vmatprep.mubr.f32.mxu0 0.0
      %2807 = vmatmul.mubr.f32.gmra.mrb[0].mxu0 %v2654
      %v2808 = vpop.f32.mrb[0].mxu0
      %v2809 = vadd.f32 0.0, %v2808
      %v2810 = vpop.f32.mrb[0].mxu0
      %2811 = vmatprep.mubr.f32.mxu0 0.0
      %2812 = vmatmul.mubr.f32.gmra.mrb[0].mxu0 %v2657
      %v2813 = vpop.f32.mrb[0].mxu0
      %v2814 = vadd.f32 0.0, %v2813
      %v2815 = vpop.f32.mrb[0].mxu0
      %2816 = vmatprep.mubr.f32.mxu0 0.0
      %2817 = vmatmul.mubr.f32.gmra.mrb[0].mxu0 %v2660
      %v2818 = vpop.f32.mrb[0].mxu0
      %v2819 = vadd.f32 0.0, %v2818
      %v2820 = vpop.f32.mrb[0].mxu0
      %2821 = vmatprep.mubr.f32.mxu0 0.0
      %2822 = vmatmul.mubr.f32.gmra.mrb[0].mxu0 %v2663
      %v2823 = vpop.f32.mrb[0].mxu0
      %v2824 = vadd.f32 0.0, %v2823
      %v2825 = vpop.f32.mrb[0].mxu0
      %2826 = vmatprep.mubr.f32.mxu0 0.0
      %2827 = vmatmul.mubr.f32.gmra.mrb[0].mxu0 %v2666
      %v2828 = vpop.f32.mrb[0].mxu0
      %v2829 = vadd.f32 0.0, %v2828
      %v2830 = vpop.f32.mrb[0].mxu0
      %2831 = vmatprep.mubr.f32.mxu0 0.0
      %2832 = vmatmul.mubr.f32.gmra.mrb[0].mxu0 %v2669
      %v2833 = vpop.f32.mrb[0].mxu0
      %v2834 = vadd.f32 0.0, %v2833
      %v2835 = vpop.f32.mrb[0].mxu0
      %2836 = vmatprep.mubr.f32.mxu0 0.0
      %2837 = vmatmul.mubr.f32.gmra.mrb[0].mxu0 %v2672
      %v2838 = vpop.f32.mrb[0].mxu0
      %v2839 = vadd.f32 0.0, %v2838
      %v2840 = vpop.f32.mrb[0].mxu0
      %2841 = vmatprep.mubr.f32.mxu0 0.0
      %2842 = vmatmul.mubr.f32.gmra.mrb[0].mxu0 %v2675
      %v2843 = vpop.f32.mrb[0].mxu0
      %v2844 = vadd.f32 0.0, %v2843
      %v2845 = vpop.f32.mrb[0].mxu0
      %2846 = vmatprep.mubr.f32.mxu0 0.0
      %2847 = vmatmul.mubr.f32.gmra.mrb[0].mxu0 %v2678
      %v2848 = vpop.f32.mrb[0].mxu0
      %v2849 = vadd.f32 0.0, %v2848
      %v2850 = vpop.f32.mrb[0].mxu0
      %2851 = vmatprep.mubr.f32.mxu0 0.0
      %2852 = vmatmul.mubr.f32.gmra.mrb[0].mxu0 %v2681
      %v2853 = vpop.f32.mrb[0].mxu0
      %v2854 = vadd.f32 0.0, %v2853
      %v2855 = vpop.f32.mrb[0].mxu0
      %2856 = vmatprep.mubr.f32.mxu0 0.0
      %2857 = vmatmul.mubr.f32.gmra.mrb[0].mxu0 %v2684
      %v2858 = vpop.f32.mrb[0].mxu0
      %v2859 = vadd.f32 0.0, %v2858
      %v2860 = vpop.f32.mrb[0].mxu0
      %2861 = vmatprep.mubr.f32.mxu0 0.0
      %2862 = vmatmul.mubr.f32.gmra.mrb[0].mxu0 %v2687
      %v2863 = vpop.f32.mrb[0].mxu0
      %v2864 = vadd.f32 0.0, %v2863
      %v2865 = vpop.f32.mrb[0].mxu0
      %2866 = vmatprep.mubr.f32.mxu0 0.0
      %2867 = vmatmul.mubr.f32.gmra.mrb[0].mxu0 %v2690
      %v2868 = vpop.f32.mrb[0].mxu0
      %v2869 = vadd.f32 0.0, %v2868
      %v2870 = vpop.f32.mrb[0].mxu0
      %2871 = vmatprep.mubr.f32.mxu0 0.0
      %2872 = vmatmul.mubr.f32.gmra.mrb[0].mxu0 %v2693
      %v2873 = vpop.f32.mrb[0].mxu0
      %v2874 = vadd.f32 0.0, %v2873
      %v2875 = vpop.f32.mrb[0].mxu0
      %2876 = vmatprep.mubr.f32.mxu0 0.0
      %2877 = vmatmul.mubr.f32.gmra.mrb[0].mxu0 %v2696
      %v2878 = vpop.f32.mrb[0].mxu0
      %v2879 = vadd.f32 0.0, %v2878
      %v2880 = vpop.f32.mrb[0].mxu0
      %2881 = vmatprep.mubr.f32.mxu0 0.0
      %2882 = vmatmul.mubr.f32.gmra.mrb[0].mxu0 %v2699
      %v2883 = vpop.f32.mrb[0].mxu0
      %v2884 = vadd.f32 0.0, %v2883
      %v2885 = vpop.f32.mrb[0].mxu0
      %2886 = vmatprep.mubr.f32.mxu0 0.0
      %2887 = vmatmul.mubr.f32.gmra.mrb[0].mxu0 %v2702
      %v2888 = vpop.f32.mrb[0].mxu0
      %v2889 = vadd.f32 0.0, %v2888
      %v2890 = vpop.f32.mrb[0].mxu0
      %2891 = vmatprep.mubr.f32.mxu0 0.0
      %2892 = vmatmul.mubr.f32.gmra.mrb[0].mxu0 %v2705
      %v2893 = vpop.f32.mrb[0].mxu0
      %v2894 = vadd.f32 0.0, %v2893
      %v2895 = vpop.f32.mrb[0].mxu0
      %2896 = vmatprep.mubr.f32.mxu0 0.0
      %2897 = vmatmul.mubr.f32.gmra.mrb[0].mxu0 %v2708
      %v2898 = vpop.f32.mrb[0].mxu0
      %v2899 = vadd.f32 0.0, %v2898
      %v2900 = vpop.f32.mrb[0].mxu0
      %2901 = vmatprep.mubr.f32.mxu0 0.0
      %2902 = vmatmul.mubr.f32.gmra.mrb[0].mxu0 %v2711
      %v2903 = vpop.f32.mrb[0].mxu0
      %v2904 = vadd.f32 0.0, %v2903
      %v2905 = vpop.f32.mrb[0].mxu0
      %2906 = vmatprep.mubr.f32.mxu0 0.0
      %2907 = vmatmul.mubr.f32.gmra.mrb[0].mxu0 %v2714
      %v2908 = vpop.f32.mrb[0].mxu0
      %v2909 = vadd.f32 0.0, %v2908
      %v2910 = vpop.f32.mrb[0].mxu0
      %2911 = vmatprep.mubr.f32.mxu0 0.0
      %2912 = vmatmul.mubr.f32.gmra.mrb[0].mxu0 %v2717
      %v2913 = vpop.f32.mrb[0].mxu0
      %v2914 = vadd.f32 0.0, %v2913
      %v2915 = vpop.f32.mrb[0].mxu0
      %2916 = vmatprep.mubr.f32.mxu0 0.0
      %2917 = vmatmul.mubr.f32.gmra.mrb[0].mxu0 %v2720
      %v2918 = vpop.f32.mrb[0].mxu0
      %v2919 = vadd.f32 0.0, %v2918
      %v2920 = vpop.f32.mrb[0].mxu0
      %2921 = vmatprep.mubr.f32.mxu0 0.0
      %2922 = vmatmul.mubr.f32.gmra.mrb[0].mxu0 %v2723
      %v2923 = vpop.f32.mrb[0].mxu0
      %v2924 = vadd.f32 0.0, %v2923
      %v2925 = vpop.f32.mrb[0].mxu0
      %2926 = vmatprep.mubr.f32.mxu0 0.0
      %2927 = vmatmul.mubr.f32.gmra.mrb[0].mxu0 %v2726
      %v2928 = vpop.f32.mrb[0].mxu0
      %v2929 = vadd.f32 0.0, %v2928
      %v2930 = vpop.f32.mrb[0].mxu0
      %2931 = vmatprep.mubr.f32.mxu0 0.0
      %2932 = vmatmul.mubr.f32.gmra.mrb[0].mxu0 %v2729
      %v2933 = vpop.f32.mrb[0].mxu0
      %v2934 = vadd.f32 0.0, %v2933
      %v2935 = vpop.f32.mrb[0].mxu0
      %2936 = vmatprep.mubr.f32.mxu0 0.0
      %2937 = vmatmul.mubr.f32.gmra.mrb[0].mxu0 %v2732
      %v2938 = vpop.f32.mrb[0].mxu0
      %v2939 = vadd.f32 0.0, %v2938
      %v2940 = vpop.f32.mrb[0].mxu0
      %2941 = vdwg.mxu0
      %v2942 = vadd.f32 %v2592, %v2804
      %v2943 = vadd.f32 %v2593, %v2809
      %v2944 = vadd.f32 %v2594, %v2814
      %v2945 = vadd.f32 %v2595, %v2819
      %v2946 = vadd.f32 %v2596, %v2824
      %v2947 = vadd.f32 %v2597, %v2829
      %v2948 = vadd.f32 %v2598, %v2834
      %v2949 = vadd.f32 %v2599, %v2839
      %v2950 = vadd.f32 %v2600, %v2844
      %v2951 = vadd.f32 %v2601, %v2849
      %v2952 = vadd.f32 %v2602, %v2854
      %v2953 = vadd.f32 %v2603, %v2859
      %v2954 = vadd.f32 %v2604, %v2864
      %v2955 = vadd.f32 %v2605, %v2869
      %v2956 = vadd.f32 %v2606, %v2874
      %v2957 = vadd.f32 %v2607, %v2879
      %v2958 = vadd.f32 %v2608, %v2884
      %v2959 = vadd.f32 %v2609, %v2889
      %v2960 = vadd.f32 %v2610, %v2894
      %v2961 = vadd.f32 %v2611, %v2899
      %v2962 = vadd.f32 %v2612, %v2904
      %v2963 = vadd.f32 %v2613, %v2909
      %v2964 = vadd.f32 %v2614, %v2914
      %v2965 = vadd.f32 %v2615, %v2919
      %v2966 = vadd.f32 %v2616, %v2924
      %v2967 = vadd.f32 %v2617, %v2929
      %v2968 = vadd.f32 %v2618, %v2934
      %v2969 = vadd.f32 %v2619, %v2939
      %v2970 = vld [vmem:[%s219 + $0x22] sm:$0xff]
      %v2971 = vld [vmem:[%s219 + $0x2a] sm:$0xff]
      %v2972 = vld [vmem:[%s219 + $0x32] sm:$0xff]
      %v2973 = vld [vmem:[%s219 + $0x3a] sm:$0xff]
      %v2974 = vld [vmem:[%s219 + $0x42] sm:$0xff]
      %v2975 = vld [vmem:[%s219 + $0x4a] sm:$0xff]
      %v2976 = vld [vmem:[%s219 + $0x52] sm:$0xff]
      %v2977 = vld [vmem:[%s219 + $0x5a] sm:$0xff]
      %v2978 = vld [vmem:[%s219 + $0x62] sm:$0xff]
      %v2979 = vld [vmem:[%s219 + $0x6a] sm:$0xff]
      %v2980 = vld [vmem:[%s219 + $0x72] sm:$0xff]
      %v2981 = vld [vmem:[%s219 + $0x7a] sm:$0xff]
      %v2982 = vld [vmem:[%s219 + $0x82] sm:$0xff]
      %v2983 = vld [vmem:[%s219 + $0x8a] sm:$0xff]
      %v2984 = vld [vmem:[%s219 + $0x92] sm:$0xff]
      %v2985 = vld [vmem:[%s219 + $0x9a] sm:$0xff]
      %v2986 = vld [vmem:[%s219 + $0xa2] sm:$0xff]
      %v2987 = vld [vmem:[%s219 + $0xaa] sm:$0xff]
      %v2988 = vld [vmem:[%s219 + $0xb2] sm:$0xff]
      %v2989 = vld [vmem:[%s219 + $0xba] sm:$0xff]
      %v2990 = vld [vmem:[%s219 + $0xc2] sm:$0xff]
      %v2991 = vld [vmem:[%s219 + $0xca] sm:$0xff]
      %v2992 = vld [vmem:[%s219 + $0xd2] sm:$0xff]
      %v2993 = vld [vmem:[%s219 + $0xda] sm:$0xff]
      %v2994 = vld [vmem:[%s219 + $0xe2] sm:$0xff]
      %v2995 = vld [vmem:[%s219 + $0xea] sm:$0xff]
      %v2996 = vld [vmem:[%s219 + $0xf2] sm:$0xff]
      %v2997 = vld [vmem:[%s219 + $0xfa] sm:$0xff]
      %s2998 = scalar_lea.vmem %s1, 32
      %v2999 = vld [vmem:[%s2998] sm:$0x7]
      %v3001 = vsel %vm284, %v2970, 0
      %v3004 = vsel %vm284, %v2971, 0
      %v3007 = vsel %vm284, %v2972, 0
      %v3010 = vsel %vm284, %v2973, 0
      %v3013 = vsel %vm284, %v2974, 0
      %v3016 = vsel %vm284, %v2975, 0
      %v3019 = vsel %vm284, %v2976, 0
      %v3022 = vsel %vm284, %v2977, 0
      %v3025 = vsel %vm284, %v2978, 0
      %v3028 = vsel %vm284, %v2979, 0
      %v3031 = vsel %vm284, %v2980, 0
      %v3034 = vsel %vm284, %v2981, 0
      %v3037 = vsel %vm284, %v2982, 0
      %v3040 = vsel %vm284, %v2983, 0
      %v3043 = vsel %vm284, %v2984, 0
      %v3046 = vsel %vm284, %v2985, 0
      %v3049 = vsel %vm284, %v2986, 0
      %v3052 = vsel %vm284, %v2987, 0
      %v3055 = vsel %vm284, %v2988, 0
      %v3058 = vsel %vm284, %v2989, 0
      %v3061 = vsel %vm284, %v2990, 0
      %v3064 = vsel %vm284, %v2991, 0
      %v3067 = vsel %vm284, %v2992, 0
      %v3070 = vsel %vm284, %v2993, 0
      %v3073 = vsel %vm284, %v2994, 0
      %v3076 = vsel %vm284, %v2995, 0
      %v3079 = vsel %vm284, %v2996, 0
      %v3082 = vsel %vm284, %v2997, 0
      %v3085 = vsel %vm369, %v2999, 0
      %3087 = vmatprep.subr.mxu0 0.0
      %3088 = vmatpush1.msra.mxu0 %v3085
      %3089 = vmatprep.subr.mxu0 0.0
      %3090 = vmatpush1.msra.mxu0 0.0
      %3091 = vmatprep.subr.mxu0 0.0
      %3092 = vmatpush1.msra.mxu0 0.0
      %3093 = vmatprep.subr.mxu0 0.0
      %3094 = vmatpush1.msra.mxu0 0.0
      %3095 = vmatprep.subr.mxu0 0.0
      %3096 = vmatpush1.msra.mxu0 0.0
      %3097 = vmatprep.subr.mxu0 0.0
      %3098 = vmatpush1.msra.mxu0 0.0
      %3099 = vmatprep.subr.mxu0 0.0
      %3100 = vmatpush1.msra.mxu0 0.0
      %3101 = vmatprep.subr.mxu0 0.0
      %3102 = vmatpush1.msra.mxu0 0.0
      %3103 = vmatprep.subr.mxu0 0.0
      %3104 = vmatpush1.msra.mxu0 0.0
      %3105 = vmatprep.subr.mxu0 0.0
      %3106 = vmatpush1.msra.mxu0 0.0
      %3107 = vmatprep.subr.mxu0 0.0
      %3108 = vmatpush1.msra.mxu0 0.0
      %3109 = vmatprep.subr.mxu0 0.0
      %3110 = vmatpush1.msra.mxu0 0.0
      %3111 = vmatprep.subr.mxu0 0.0
      %3112 = vmatpush1.msra.mxu0 0.0
      %3113 = vmatprep.subr.mxu0 0.0
      %3114 = vmatpush1.msra.mxu0 0.0
      %3115 = vmatprep.subr.mxu0 0.0
      %3116 = vmatpush1.msra.mxu0 0.0
      %3117 = vmatprep.subr.mxu0 0.0
      %3118 = vmatpush1.msra.mxu0 0.0
      %3119 = vmatprep.subr.mxu0 0.0
      %3120 = vmatpush1.msra.mxu0 0.0
      %3121 = vmatprep.subr.mxu0 0.0
      %3122 = vmatpush1.msra.mxu0 0.0
      %3123 = vmatprep.subr.mxu0 0.0
      %3124 = vmatpush1.msra.mxu0 0.0
      %3125 = vmatprep.subr.mxu0 0.0
      %3126 = vmatpush1.msra.mxu0 0.0
      %3127 = vmatprep.subr.mxu0 0.0
      %3128 = vmatpush1.msra.mxu0 0.0
      %3129 = vmatprep.subr.mxu0 0.0
      %3130 = vmatpush1.msra.mxu0 0.0
      %3131 = vmatprep.subr.mxu0 0.0
      %3132 = vmatpush1.msra.mxu0 0.0
      %3133 = vmatprep.subr.mxu0 0.0
      %3134 = vmatpush1.msra.mxu0 0.0
      %3135 = vmatprep.subr.mxu0 0.0
      %3136 = vmatpush1.msra.mxu0 0.0
      %3137 = vmatprep.subr.mxu0 0.0
      %3138 = vmatpush1.msra.mxu0 0.0
      %3139 = vmatprep.subr.mxu0 0.0
      %3140 = vmatpush1.msra.mxu0 0.0
      %3141 = vmatprep.subr.mxu0 0.0
      %3142 = vmatpush1.msra.mxu0 0.0
      %3143 = vmatprep.subr.mxu0 0.0
      %3144 = vmatpush1.msra.mxu0 0.0
      %3145 = vmatprep.subr.mxu0 0.0
      %3146 = vmatpush1.msra.mxu0 0.0
      %3147 = vmatprep.subr.mxu0 0.0
      %3148 = vmatpush1.msra.mxu0 0.0
      %3149 = vmatprep.subr.mxu0 0.0
      %3150 = vmatpush1.msra.mxu0 0.0
      %3151 = vmatprep.mubr.f32.mxu0 0.0
      %3152 = vmatmul.mubr.f32.gmra.mrb[0].mxu0 %v3001
      %v3153 = vpop.f32.mrb[0].mxu0
      %v3154 = vadd.f32 0.0, %v3153
      %v3155 = vpop.f32.mrb[0].mxu0
      %3156 = vmatprep.mubr.f32.mxu0 0.0
      %3157 = vmatmul.mubr.f32.gmra.mrb[0].mxu0 %v3004
      %v3158 = vpop.f32.mrb[0].mxu0
      %v3159 = vadd.f32 0.0, %v3158
      %v3160 = vpop.f32.mrb[0].mxu0
      %3161 = vmatprep.mubr.f32.mxu0 0.0
      %3162 = vmatmul.mubr.f32.gmra.mrb[0].mxu0 %v3007
      %v3163 = vpop.f32.mrb[0].mxu0
      %v3164 = vadd.f32 0.0, %v3163
      %v3165 = vpop.f32.mrb[0].mxu0
      %3166 = vmatprep.mubr.f32.mxu0 0.0
      %3167 = vmatmul.mubr.f32.gmra.mrb[0].mxu0 %v3010
      %v3168 = vpop.f32.mrb[0].mxu0
      %v3169 = vadd.f32 0.0, %v3168
      %v3170 = vpop.f32.mrb[0].mxu0
      %3171 = vmatprep.mubr.f32.mxu0 0.0
      %3172 = vmatmul.mubr.f32.gmra.mrb[0].mxu0 %v3013
      %v3173 = vpop.f32.mrb[0].mxu0
      %v3174 = vadd.f32 0.0, %v3173
      %v3175 = vpop.f32.mrb[0].mxu0
      %3176 = vmatprep.mubr.f32.mxu0 0.0
      %3177 = vmatmul.mubr.f32.gmra.mrb[0].mxu0 %v3016
      %v3178 = vpop.f32.mrb[0].mxu0
      %v3179 = vadd.f32 0.0, %v3178
      %v3180 = vpop.f32.mrb[0].mxu0
      %3181 = vmatprep.mubr.f32.mxu0 0.0
      %3182 = vmatmul.mubr.f32.gmra.mrb[0].mxu0 %v3019
      %v3183 = vpop.f32.mrb[0].mxu0
      %v3184 = vadd.f32 0.0, %v3183
      %v3185 = vpop.f32.mrb[0].mxu0
      %3186 = vmatprep.mubr.f32.mxu0 0.0
      %3187 = vmatmul.mubr.f32.gmra.mrb[0].mxu0 %v3022
      %v3188 = vpop.f32.mrb[0].mxu0
      %v3189 = vadd.f32 0.0, %v3188
      %v3190 = vpop.f32.mrb[0].mxu0
      %3191 = vmatprep.mubr.f32.mxu0 0.0
      %3192 = vmatmul.mubr.f32.gmra.mrb[0].mxu0 %v3025
      %v3193 = vpop.f32.mrb[0].mxu0
      %v3194 = vadd.f32 0.0, %v3193
      %v3195 = vpop.f32.mrb[0].mxu0
      %3196 = vmatprep.mubr.f32.mxu0 0.0
      %3197 = vmatmul.mubr.f32.gmra.mrb[0].mxu0 %v3028
      %v3198 = vpop.f32.mrb[0].mxu0
      %v3199 = vadd.f32 0.0, %v3198
      %v3200 = vpop.f32.mrb[0].mxu0
      %3201 = vmatprep.mubr.f32.mxu0 0.0
      %3202 = vmatmul.mubr.f32.gmra.mrb[0].mxu0 %v3031
      %v3203 = vpop.f32.mrb[0].mxu0
      %v3204 = vadd.f32 0.0, %v3203
      %v3205 = vpop.f32.mrb[0].mxu0
      %3206 = vmatprep.mubr.f32.mxu0 0.0
      %3207 = vmatmul.mubr.f32.gmra.mrb[0].mxu0 %v3034
      %v3208 = vpop.f32.mrb[0].mxu0
      %v3209 = vadd.f32 0.0, %v3208
      %v3210 = vpop.f32.mrb[0].mxu0
      %3211 = vmatprep.mubr.f32.mxu0 0.0
      %3212 = vmatmul.mubr.f32.gmra.mrb[0].mxu0 %v3037
      %v3213 = vpop.f32.mrb[0].mxu0
      %v3214 = vadd.f32 0.0, %v3213
      %v3215 = vpop.f32.mrb[0].mxu0
      %3216 = vmatprep.mubr.f32.mxu0 0.0
      %3217 = vmatmul.mubr.f32.gmra.mrb[0].mxu0 %v3040
      %v3218 = vpop.f32.mrb[0].mxu0
      %v3219 = vadd.f32 0.0, %v3218
      %v3220 = vpop.f32.mrb[0].mxu0
      %3221 = vmatprep.mubr.f32.mxu0 0.0
      %3222 = vmatmul.mubr.f32.gmra.mrb[0].mxu0 %v3043
      %v3223 = vpop.f32.mrb[0].mxu0
      %v3224 = vadd.f32 0.0, %v3223
      %v3225 = vpop.f32.mrb[0].mxu0
      %3226 = vmatprep.mubr.f32.mxu0 0.0
      %3227 = vmatmul.mubr.f32.gmra.mrb[0].mxu0 %v3046
      %v3228 = vpop.f32.mrb[0].mxu0
      %v3229 = vadd.f32 0.0, %v3228
      %v3230 = vpop.f32.mrb[0].mxu0
      %3231 = vmatprep.mubr.f32.mxu0 0.0
      %3232 = vmatmul.mubr.f32.gmra.mrb[0].mxu0 %v3049
      %v3233 = vpop.f32.mrb[0].mxu0
      %v3234 = vadd.f32 0.0, %v3233
      %v3235 = vpop.f32.mrb[0].mxu0
      %3236 = vmatprep.mubr.f32.mxu0 0.0
      %3237 = vmatmul.mubr.f32.gmra.mrb[0].mxu0 %v3052
      %v3238 = vpop.f32.mrb[0].mxu0
      %v3239 = vadd.f32 0.0, %v3238
      %v3240 = vpop.f32.mrb[0].mxu0
      %3241 = vmatprep.mubr.f32.mxu0 0.0
      %3242 = vmatmul.mubr.f32.gmra.mrb[0].mxu0 %v3055
      %v3243 = vpop.f32.mrb[0].mxu0
      %v3244 = vadd.f32 0.0, %v3243
      %v3245 = vpop.f32.mrb[0].mxu0
      %3246 = vmatprep.mubr.f32.mxu0 0.0
      %3247 = vmatmul.mubr.f32.gmra.mrb[0].mxu0 %v3058
      %v3248 = vpop.f32.mrb[0].mxu0
      %v3249 = vadd.f32 0.0, %v3248
      %v3250 = vpop.f32.mrb[0].mxu0
      %3251 = vmatprep.mubr.f32.mxu0 0.0
      %3252 = vmatmul.mubr.f32.gmra.mrb[0].mxu0 %v3061
      %v3253 = vpop.f32.mrb[0].mxu0
      %v3254 = vadd.f32 0.0, %v3253
      %v3255 = vpop.f32.mrb[0].mxu0
      %3256 = vmatprep.mubr.f32.mxu0 0.0
      %3257 = vmatmul.mubr.f32.gmra.mrb[0].mxu0 %v3064
      %v3258 = vpop.f32.mrb[0].mxu0
      %v3259 = vadd.f32 0.0, %v3258
      %v3260 = vpop.f32.mrb[0].mxu0
      %3261 = vmatprep.mubr.f32.mxu0 0.0
      %3262 = vmatmul.mubr.f32.gmra.mrb[0].mxu0 %v3067
      %v3263 = vpop.f32.mrb[0].mxu0
      %v3264 = vadd.f32 0.0, %v3263
      %v3265 = vpop.f32.mrb[0].mxu0
      %3266 = vmatprep.mubr.f32.mxu0 0.0
      %3267 = vmatmul.mubr.f32.gmra.mrb[0].mxu0 %v3070
      %v3268 = vpop.f32.mrb[0].mxu0
      %v3269 = vadd.f32 0.0, %v3268
      %v3270 = vpop.f32.mrb[0].mxu0
      %3271 = vmatprep.mubr.f32.mxu0 0.0
      %3272 = vmatmul.mubr.f32.gmra.mrb[0].mxu0 %v3073
      %v3273 = vpop.f32.mrb[0].mxu0
      %v3274 = vadd.f32 0.0, %v3273
      %v3275 = vpop.f32.mrb[0].mxu0
      %3276 = vmatprep.mubr.f32.mxu0 0.0
      %3277 = vmatmul.mubr.f32.gmra.mrb[0].mxu0 %v3076
      %v3278 = vpop.f32.mrb[0].mxu0
      %v3279 = vadd.f32 0.0, %v3278
      %v3280 = vpop.f32.mrb[0].mxu0
      %3281 = vmatprep.mubr.f32.mxu0 0.0
      %3282 = vmatmul.mubr.f32.gmra.mrb[0].mxu0 %v3079
      %v3283 = vpop.f32.mrb[0].mxu0
      %v3284 = vadd.f32 0.0, %v3283
      %v3285 = vpop.f32.mrb[0].mxu0
      %3286 = vmatprep.mubr.f32.mxu0 0.0
      %3287 = vmatmul.mubr.f32.gmra.mrb[0].mxu0 %v3082
      %v3288 = vpop.f32.mrb[0].mxu0
      %v3289 = vadd.f32 0.0, %v3288
      %v3290 = vpop.f32.mrb[0].mxu0
      %3291 = vdwg.mxu0
      %v3292 = vadd.f32 %v2942, %v3154
      %v3293 = vadd.f32 %v2943, %v3159
      %v3294 = vadd.f32 %v2944, %v3164
      %v3295 = vadd.f32 %v2945, %v3169
      %v3296 = vadd.f32 %v2946, %v3174
      %v3297 = vadd.f32 %v2947, %v3179
      %v3298 = vadd.f32 %v2948, %v3184
      %v3299 = vadd.f32 %v2949, %v3189
      %v3300 = vadd.f32 %v2950, %v3194
      %v3301 = vadd.f32 %v2951, %v3199
      %v3302 = vadd.f32 %v2952, %v3204
      %v3303 = vadd.f32 %v2953, %v3209
      %v3304 = vadd.f32 %v2954, %v3214
      %v3305 = vadd.f32 %v2955, %v3219
      %v3306 = vadd.f32 %v2956, %v3224
      %v3307 = vadd.f32 %v2957, %v3229
      %v3308 = vadd.f32 %v2958, %v3234
      %v3309 = vadd.f32 %v2959, %v3239
      %v3310 = vadd.f32 %v2960, %v3244
      %v3311 = vadd.f32 %v2961, %v3249
      %v3312 = vadd.f32 %v2962, %v3254
      %v3313 = vadd.f32 %v2963, %v3259
      %v3314 = vadd.f32 %v2964, %v3264
      %v3315 = vadd.f32 %v2965, %v3269
      %v3316 = vadd.f32 %v2966, %v3274
      %v3317 = vadd.f32 %v2967, %v3279
      %v3318 = vadd.f32 %v2968, %v3284
      %v3319 = vadd.f32 %v2969, %v3289
      %v3320 = vld [vmem:[%s2] sm:$0x1]
      %v3322 = vlaneseq
      %v3323 = vshrl.u32 %v3322, 7
      %v3324 = vsub.s32 0, %v3323
      %v3325 = vrot.slane %v3320, %v3324
      %v3327 = vadd.f32 %v3292, %v3325
      %v3328 = vadd.f32 %v3293, %v3325
      %v3329 = vadd.f32 %v3294, %v3325
      %v3330 = vadd.f32 %v3295, %v3325
      %v3331 = vadd.f32 %v3296, %v3325
      %v3332 = vadd.f32 %v3297, %v3325
      %v3333 = vadd.f32 %v3298, %v3325
      %v3334 = vadd.f32 %v3299, %v3325
      %v3335 = vadd.f32 %v3300, %v3325
      %v3336 = vadd.f32 %v3301, %v3325
      %v3337 = vadd.f32 %v3302, %v3325
      %v3338 = vadd.f32 %v3303, %v3325
      %v3339 = vadd.f32 %v3304, %v3325
      %v3340 = vadd.f32 %v3305, %v3325
      %v3341 = vadd.f32 %v3306, %v3325
      %v3342 = vadd.f32 %v3307, %v3325
      %v3343 = vadd.f32 %v3308, %v3325
      %v3344 = vadd.f32 %v3309, %v3325
      %v3345 = vadd.f32 %v3310, %v3325
      %v3346 = vadd.f32 %v3311, %v3325
      %v3347 = vadd.f32 %v3312, %v3325
      %v3348 = vadd.f32 %v3313, %v3325
      %v3349 = vadd.f32 %v3314, %v3325
      %v3350 = vadd.f32 %v3315, %v3325
      %v3351 = vadd.f32 %v3316, %v3325
      %v3352 = vadd.f32 %v3317, %v3325
      %v3353 = vadd.f32 %v3318, %v3325
      %v3354 = vadd.f32 %v3319, %v3325
      %v3355 = vmax.f32 %v3327, 0.0
      %v3356 = vmax.f32 %v3328, 0.0
      %v3357 = vmax.f32 %v3329, 0.0
      %v3358 = vmax.f32 %v3330, 0.0
      %v3359 = vmax.f32 %v3331, 0.0
      %v3360 = vmax.f32 %v3332, 0.0
      %v3361 = vmax.f32 %v3333, 0.0
      %v3362 = vmax.f32 %v3334, 0.0
      %v3363 = vmax.f32 %v3335, 0.0
      %v3364 = vmax.f32 %v3336, 0.0
      %v3365 = vmax.f32 %v3337, 0.0
      %v3366 = vmax.f32 %v3338, 0.0
      %v3367 = vmax.f32 %v3339, 0.0
      %v3368 = vmax.f32 %v3340, 0.0
      %v3369 = vmax.f32 %v3341, 0.0
      %v3370 = vmax.f32 %v3342, 0.0
      %v3371 = vmax.f32 %v3343, 0.0
      %v3372 = vmax.f32 %v3344, 0.0
      %v3373 = vmax.f32 %v3345, 0.0
      %v3374 = vmax.f32 %v3346, 0.0
      %v3375 = vmax.f32 %v3347, 0.0
      %v3376 = vmax.f32 %v3348, 0.0
      %v3377 = vmax.f32 %v3349, 0.0
      %v3378 = vmax.f32 %v3350, 0.0
      %v3379 = vmax.f32 %v3351, 0.0
      %v3380 = vmax.f32 %v3352, 0.0
      %v3381 = vmax.f32 %v3353, 0.0
      %v3382 = vmax.f32 %v3354, 0.0
      %vm3383 = vcmask 261120
      %3384 = vst.msk [vmem:[#allocation2] sm:$0xff] %vm3383, %v3355
      %3385 = vst.msk [vmem:[#allocation2 + $0x8] sm:$0xff] %vm3383, %v3356
      %3386 = vst.msk [vmem:[#allocation2 + $0x10] sm:$0xff] %vm3383, %v3357
      %3387 = vst.msk [vmem:[#allocation2 + $0x18] sm:$0xff] %vm3383, %v3358
      %3388 = vst.msk [vmem:[#allocation2 + $0x20] sm:$0xff] %vm3383, %v3359
      %3389 = vst.msk [vmem:[#allocation2 + $0x28] sm:$0xff] %vm3383, %v3360
      %3390 = vst.msk [vmem:[#allocation2 + $0x30] sm:$0xff] %vm3383, %v3361
      %3391 = vst.msk [vmem:[#allocation2 + $0x38] sm:$0xff] %vm3383, %v3362
      %3392 = vst.msk [vmem:[#allocation2 + $0x40] sm:$0xff] %vm3383, %v3363
      %3393 = vst.msk [vmem:[#allocation2 + $0x48] sm:$0xff] %vm3383, %v3364
      %3394 = vst.msk [vmem:[#allocation2 + $0x50] sm:$0xff] %vm3383, %v3365
      %3395 = vst.msk [vmem:[#allocation2 + $0x58] sm:$0xff] %vm3383, %v3366
      %3396 = vst.msk [vmem:[#allocation2 + $0x60] sm:$0xff] %vm3383, %v3367
      %3397 = vst.msk [vmem:[#allocation2 + $0x68] sm:$0xff] %vm3383, %v3368
      %3398 = vst.msk [vmem:[#allocation2 + $0x70] sm:$0xff] %vm3383, %v3369
      %3399 = vst.msk [vmem:[#allocation2 + $0x78] sm:$0xff] %vm3383, %v3370
      %3400 = vst.msk [vmem:[#allocation2 + $0x80] sm:$0xff] %vm3383, %v3371
      %3401 = vst.msk [vmem:[#allocation2 + $0x88] sm:$0xff] %vm3383, %v3372
      %3402 = vst.msk [vmem:[#allocation2 + $0x90] sm:$0xff] %vm3383, %v3373
      %3403 = vst.msk [vmem:[#allocation2 + $0x98] sm:$0xff] %vm3383, %v3374
      %3404 = vst.msk [vmem:[#allocation2 + $0xa0] sm:$0xff] %vm3383, %v3375
      %3405 = vst.msk [vmem:[#allocation2 + $0xa8] sm:$0xff] %vm3383, %v3376
      %3406 = vst.msk [vmem:[#allocation2 + $0xb0] sm:$0xff] %vm3383, %v3377
      %3407 = vst.msk [vmem:[#allocation2 + $0xb8] sm:$0xff] %vm3383, %v3378
      %3408 = vst.msk [vmem:[#allocation2 + $0xc0] sm:$0xff] %vm3383, %v3379
      %3409 = vst.msk [vmem:[#allocation2 + $0xc8] sm:$0xff] %vm3383, %v3380
      %3410 = vst.msk [vmem:[#allocation2 + $0xd0] sm:$0xff] %vm3383, %v3381
      %3411 = vst.msk [vmem:[#allocation2 + $0xd8] sm:$0xff] %vm3383, %v3382
      %3412 = vst.msk [vmem:[#allocation2 + $0xe0] sm:$0xff] %vm3383, 0.0
      %3413 = vst.msk [vmem:[#allocation2 + $0xe8] sm:$0xff] %vm3383, 0.0
      %3414 = vst.msk [vmem:[#allocation2 + $0xf0] sm:$0xff] %vm3383, 0.0
      %3415 = vst.msk [vmem:[#allocation2 + $0xf8] sm:$0xff] %vm3383, 0.0
      %3416 = vst.msk [vmem:[#allocation2 + $0x100] sm:$0xff] %vm3383, 0.0
      %v3417 = vld [vmem:[#allocation2] sm:$0xff]
      %v3418 = vld [vmem:[#allocation2 + $0x8] sm:$0xff]
      %v3419 = vld [vmem:[#allocation2 + $0x10] sm:$0xff]
      %v3420 = vld [vmem:[#allocation2 + $0x18] sm:$0xff]
      %v3421 = vld [vmem:[#allocation2 + $0x20] sm:$0xff]
      %v3422 = vld [vmem:[#allocation2 + $0x28] sm:$0xff]
      %v3423 = vld [vmem:[#allocation2 + $0x30] sm:$0xff]
      %v3424 = vld [vmem:[#allocation2 + $0x38] sm:$0xff]
      %v3425 = vld [vmem:[#allocation2 + $0x40] sm:$0xff]
      %v3426 = vld [vmem:[#allocation2 + $0x48] sm:$0xff]
      %v3427 = vld [vmem:[#allocation2 + $0x50] sm:$0xff]
      %v3428 = vld [vmem:[#allocation2 + $0x58] sm:$0xff]
      %v3429 = vld [vmem:[#allocation2 + $0x60] sm:$0xff]
      %v3430 = vld [vmem:[#allocation2 + $0x68] sm:$0xff]
      %v3431 = vld [vmem:[#allocation2 + $0x70] sm:$0xff]
      %v3432 = vld [vmem:[#allocation2 + $0x78] sm:$0xff]
      %v3433 = vld [vmem:[#allocation2 + $0x80] sm:$0xff]
      %v3434 = vld [vmem:[#allocation2 + $0x88] sm:$0xff]
      %v3435 = vld [vmem:[#allocation2 + $0x90] sm:$0xff]
      %v3436 = vld [vmem:[#allocation2 + $0x98] sm:$0xff]
      %v3437 = vld [vmem:[#allocation2 + $0xa0] sm:$0xff]
      %v3438 = vld [vmem:[#allocation2 + $0xa8] sm:$0xff]
      %v3439 = vld [vmem:[#allocation2 + $0xb0] sm:$0xff]
      %v3440 = vld [vmem:[#allocation2 + $0xb8] sm:$0xff]
      %v3441 = vld [vmem:[#allocation2 + $0xc0] sm:$0xff]
      %v3442 = vld [vmem:[#allocation2 + $0xc8] sm:$0xff]
      %v3443 = vld [vmem:[#allocation2 + $0xd0] sm:$0xff]
      %v3444 = vld [vmem:[#allocation2 + $0xd8] sm:$0xff]
      %v3445 = vld [vmem:[%s3] sm:$0xff]
      %v3446 = vld [vmem:[%s3 + $0x8] sm:$0xff]
      %v3447 = vld [vmem:[%s3 + $0x10] sm:$0xff]
      %v3448 = vld [vmem:[%s3 + $0x18] sm:$0xff]
      %v3449 = vld [vmem:[#allocation2 + $0x1] sm:$0xff]
      %v3450 = vld [vmem:[#allocation2 + $0x9] sm:$0xff]
      %v3451 = vld [vmem:[#allocation2 + $0x11] sm:$0xff]
      %v3452 = vld [vmem:[#allocation2 + $0x19] sm:$0xff]
      %v3453 = vld [vmem:[#allocation2 + $0x21] sm:$0xff]
      %v3454 = vld [vmem:[#allocation2 + $0x29] sm:$0xff]
      %v3455 = vld [vmem:[#allocation2 + $0x31] sm:$0xff]
      %v3456 = vld [vmem:[#allocation2 + $0x39] sm:$0xff]
      %v3457 = vld [vmem:[#allocation2 + $0x41] sm:$0xff]
      %v3458 = vld [vmem:[#allocation2 + $0x49] sm:$0xff]
      %v3459 = vld [vmem:[#allocation2 + $0x51] sm:$0xff]
      %v3460 = vld [vmem:[#allocation2 + $0x59] sm:$0xff]
      %v3461 = vld [vmem:[#allocation2 + $0x61] sm:$0xff]
      %v3462 = vld [vmem:[#allocation2 + $0x69] sm:$0xff]
      %v3463 = vld [vmem:[#allocation2 + $0x71] sm:$0xff]
      %v3464 = vld [vmem:[#allocation2 + $0x79] sm:$0xff]
      %v3465 = vld [vmem:[#allocation2 + $0x81] sm:$0xff]
      %v3466 = vld [vmem:[#allocation2 + $0x89] sm:$0xff]
      %v3467 = vld [vmem:[#allocation2 + $0x91] sm:$0xff]
      %v3468 = vld [vmem:[#allocation2 + $0x99] sm:$0xff]
      %v3469 = vld [vmem:[#allocation2 + $0xa1] sm:$0xff]
      %v3470 = vld [vmem:[#allocation2 + $0xa9] sm:$0xff]
      %v3471 = vld [vmem:[#allocation2 + $0xb1] sm:$0xff]
      %v3472 = vld [vmem:[#allocation2 + $0xb9] sm:$0xff]
      %v3473 = vld [vmem:[#allocation2 + $0xc1] sm:$0xff]
      %v3474 = vld [vmem:[#allocation2 + $0xc9] sm:$0xff]
      %v3475 = vld [vmem:[#allocation2 + $0xd1] sm:$0xff]
      %v3476 = vld [vmem:[#allocation2 + $0xd9] sm:$0xff]
      %s3477 = scalar_lea.vmem %s3, 32
      %v3478 = vld [vmem:[%s3477] sm:$0xff]
      %v3479 = vld [vmem:[%s3477 + $0x8] sm:$0xff]
      %v3480 = vld [vmem:[%s3477 + $0x10] sm:$0xff]
      %v3481 = vld [vmem:[%s3477 + $0x18] sm:$0xff]
      %v3483 = vsel %vm3383, %v3449, 0
      %v3486 = vsel %vm3383, %v3450, 0
      %v3489 = vsel %vm3383, %v3451, 0
      %v3492 = vsel %vm3383, %v3452, 0
      %v3495 = vsel %vm3383, %v3453, 0
      %v3498 = vsel %vm3383, %v3454, 0
      %v3501 = vsel %vm3383, %v3455, 0
      %v3504 = vsel %vm3383, %v3456, 0
      %v3507 = vsel %vm3383, %v3457, 0
      %v3510 = vsel %vm3383, %v3458, 0
      %v3513 = vsel %vm3383, %v3459, 0
      %v3516 = vsel %vm3383, %v3460, 0
      %v3519 = vsel %vm3383, %v3461, 0
      %v3522 = vsel %vm3383, %v3462, 0
      %v3525 = vsel %vm3383, %v3463, 0
      %v3528 = vsel %vm3383, %v3464, 0
      %v3531 = vsel %vm3383, %v3465, 0
      %v3534 = vsel %vm3383, %v3466, 0
      %v3537 = vsel %vm3383, %v3467, 0
      %v3540 = vsel %vm3383, %v3468, 0
      %v3543 = vsel %vm3383, %v3469, 0
      %v3546 = vsel %vm3383, %v3470, 0
      %v3549 = vsel %vm3383, %v3471, 0
      %v3552 = vsel %vm3383, %v3472, 0
      %v3555 = vsel %vm3383, %v3473, 0
      %v3558 = vsel %vm3383, %v3474, 0
      %v3561 = vsel %vm3383, %v3475, 0
      %v3564 = vsel %vm3383, %v3476, 0
      %3566 = vmatprep.subr.mxu0 0.0
      %3567 = vmatpush1.msra.mxu0 %v3478
      %3568 = vmatprep.subr.mxu0 0.0
      %3569 = vmatpush1.msra.mxu0 %v3479
      %3570 = vmatprep.subr.mxu0 0.0
      %3571 = vmatpush1.msra.mxu0 %v3480
      %3572 = vmatprep.subr.mxu0 0.0
      %3573 = vmatpush1.msra.mxu0 %v3481
      %3574 = vmatprep.subr.mxu0 0.0
      %3575 = vmatpush1.msra.mxu0 0.0
      %3576 = vmatprep.subr.mxu0 0.0
      %3577 = vmatpush1.msra.mxu0 0.0
      %3578 = vmatprep.subr.mxu0 0.0
      %3579 = vmatpush1.msra.mxu0 0.0
      %3580 = vmatprep.subr.mxu0 0.0
      %3581 = vmatpush1.msra.mxu0 0.0
      %3582 = vmatprep.subr.mxu0 0.0
      %3583 = vmatpush1.msra.mxu0 0.0
      %3584 = vmatprep.subr.mxu0 0.0
      %3585 = vmatpush1.msra.mxu0 0.0
      %3586 = vmatprep.subr.mxu0 0.0
      %3587 = vmatpush1.msra.mxu0 0.0
      %3588 = vmatprep.subr.mxu0 0.0
      %3589 = vmatpush1.msra.mxu0 0.0
      %3590 = vmatprep.subr.mxu0 0.0
      %3591 = vmatpush1.msra.mxu0 0.0
      %3592 = vmatprep.subr.mxu0 0.0
      %3593 = vmatpush1.msra.mxu0 0.0
      %3594 = vmatprep.subr.mxu0 0.0
      %3595 = vmatpush1.msra.mxu0 0.0
      %3596 = vmatprep.subr.mxu0 0.0
      %3597 = vmatpush1.msra.mxu0 0.0
      %3598 = vmatprep.subr.mxu0 0.0
      %3599 = vmatpush1.msra.mxu0 0.0
      %3600 = vmatprep.subr.mxu0 0.0
      %3601 = vmatpush1.msra.mxu0 0.0
      %3602 = vmatprep.subr.mxu0 0.0
      %3603 = vmatpush1.msra.mxu0 0.0
      %3604 = vmatprep.subr.mxu0 0.0
      %3605 = vmatpush1.msra.mxu0 0.0
      %3606 = vmatprep.subr.mxu0 0.0
      %3607 = vmatpush1.msra.mxu0 0.0
      %3608 = vmatprep.subr.mxu0 0.0
      %3609 = vmatpush1.msra.mxu0 0.0
      %3610 = vmatprep.subr.mxu0 0.0
      %3611 = vmatpush1.msra.mxu0 0.0
      %3612 = vmatprep.subr.mxu0 0.0
      %3613 = vmatpush1.msra.mxu0 0.0
      %3614 = vmatprep.subr.mxu0 0.0
      %3615 = vmatpush1.msra.mxu0 0.0
      %3616 = vmatprep.subr.mxu0 0.0
      %3617 = vmatpush1.msra.mxu0 0.0
      %3618 = vmatprep.subr.mxu0 0.0
      %3619 = vmatpush1.msra.mxu0 0.0
      %3620 = vmatprep.subr.mxu0 0.0
      %3621 = vmatpush1.msra.mxu0 0.0
      %3622 = vmatprep.subr.mxu0 0.0
      %3623 = vmatpush1.msra.mxu0 0.0
      %3624 = vmatprep.subr.mxu0 0.0
      %3625 = vmatpush1.msra.mxu0 0.0
      %3626 = vmatprep.subr.mxu0 0.0
      %3627 = vmatpush1.msra.mxu0 0.0
      %3628 = vmatprep.subr.mxu0 0.0
      %3629 = vmatpush1.msra.mxu0 0.0
      %3630 = vmatprep.mubr.f32.mxu0 0.0
      %3631 = vmatmul.mubr.f32.gmra.mrb[0].mxu0 %v3483
      %v3632 = vpop.f32.mrb[0].mxu0
      %v3633 = vadd.f32 0.0, %v3632
      %v3634 = vpop.f32.mrb[0].mxu0
      %3635 = vmatprep.mubr.f32.mxu0 0.0
      %3636 = vmatmul.mubr.f32.gmra.mrb[0].mxu0 %v3486
      %v3637 = vpop.f32.mrb[0].mxu0
      %v3638 = vadd.f32 0.0, %v3637
      %v3639 = vpop.f32.mrb[0].mxu0
      %3640 = vmatprep.mubr.f32.mxu0 0.0
      %3641 = vmatmul.mubr.f32.gmra.mrb[0].mxu0 %v3489
      %v3642 = vpop.f32.mrb[0].mxu0
      %v3643 = vadd.f32 0.0, %v3642
      %v3644 = vpop.f32.mrb[0].mxu0
      %3645 = vmatprep.mubr.f32.mxu0 0.0
      %3646 = vmatmul.mubr.f32.gmra.mrb[0].mxu0 %v3492
      %v3647 = vpop.f32.mrb[0].mxu0
      %v3648 = vadd.f32 0.0, %v3647
      %v3649 = vpop.f32.mrb[0].mxu0
      %3650 = vmatprep.mubr.f32.mxu0 0.0
      %3651 = vmatmul.mubr.f32.gmra.mrb[0].mxu0 %v3495
      %v3652 = vpop.f32.mrb[0].mxu0
      %v3653 = vadd.f32 0.0, %v3652
      %v3654 = vpop.f32.mrb[0].mxu0
      %3655 = vmatprep.mubr.f32.mxu0 0.0
      %3656 = vmatmul.mubr.f32.gmra.mrb[0].mxu0 %v3498
      %v3657 = vpop.f32.mrb[0].mxu0
      %v3658 = vadd.f32 0.0, %v3657
      %v3659 = vpop.f32.mrb[0].mxu0
      %3660 = vmatprep.mubr.f32.mxu0 0.0
      %3661 = vmatmul.mubr.f32.gmra.mrb[0].mxu0 %v3501
      %v3662 = vpop.f32.mrb[0].mxu0
      %v3663 = vadd.f32 0.0, %v3662
      %v3664 = vpop.f32.mrb[0].mxu0
      %3665 = vmatprep.mubr.f32.mxu0 0.0
      %3666 = vmatmul.mubr.f32.gmra.mrb[0].mxu0 %v3504
      %v3667 = vpop.f32.mrb[0].mxu0
      %v3668 = vadd.f32 0.0, %v3667
      %v3669 = vpop.f32.mrb[0].mxu0
      %3670 = vmatprep.mubr.f32.mxu0 0.0
      %3671 = vmatmul.mubr.f32.gmra.mrb[0].mxu0 %v3507
      %v3672 = vpop.f32.mrb[0].mxu0
      %v3673 = vadd.f32 0.0, %v3672
      %v3674 = vpop.f32.mrb[0].mxu0
      %3675 = vmatprep.mubr.f32.mxu0 0.0
      %3676 = vmatmul.mubr.f32.gmra.mrb[0].mxu0 %v3510
      %v3677 = vpop.f32.mrb[0].mxu0
      %v3678 = vadd.f32 0.0, %v3677
      %v3679 = vpop.f32.mrb[0].mxu0
      %3680 = vmatprep.mubr.f32.mxu0 0.0
      %3681 = vmatmul.mubr.f32.gmra.mrb[0].mxu0 %v3513
      %v3682 = vpop.f32.mrb[0].mxu0
      %v3683 = vadd.f32 0.0, %v3682
      %v3684 = vpop.f32.mrb[0].mxu0
      %3685 = vmatprep.mubr.f32.mxu0 0.0
      %3686 = vmatmul.mubr.f32.gmra.mrb[0].mxu0 %v3516
      %v3687 = vpop.f32.mrb[0].mxu0
      %v3688 = vadd.f32 0.0, %v3687
      %v3689 = vpop.f32.mrb[0].mxu0
      %3690 = vmatprep.mubr.f32.mxu0 0.0
      %3691 = vmatmul.mubr.f32.gmra.mrb[0].mxu0 %v3519
      %v3692 = vpop.f32.mrb[0].mxu0
      %v3693 = vadd.f32 0.0, %v3692
      %v3694 = vpop.f32.mrb[0].mxu0
      %3695 = vmatprep.mubr.f32.mxu0 0.0
      %3696 = vmatmul.mubr.f32.gmra.mrb[0].mxu0 %v3522
      %v3697 = vpop.f32.mrb[0].mxu0
      %v3698 = vadd.f32 0.0, %v3697
      %v3699 = vpop.f32.mrb[0].mxu0
      %3700 = vmatprep.mubr.f32.mxu0 0.0
      %3701 = vmatmul.mubr.f32.gmra.mrb[0].mxu0 %v3525
      %v3702 = vpop.f32.mrb[0].mxu0
      %v3703 = vadd.f32 0.0, %v3702
      %v3704 = vpop.f32.mrb[0].mxu0
      %3705 = vmatprep.mubr.f32.mxu0 0.0
      %3706 = vmatmul.mubr.f32.gmra.mrb[0].mxu0 %v3528
      %v3707 = vpop.f32.mrb[0].mxu0
      %v3708 = vadd.f32 0.0, %v3707
      %v3709 = vpop.f32.mrb[0].mxu0
      %3710 = vmatprep.mubr.f32.mxu0 0.0
      %3711 = vmatmul.mubr.f32.gmra.mrb[0].mxu0 %v3531
      %v3712 = vpop.f32.mrb[0].mxu0
      %v3713 = vadd.f32 0.0, %v3712
      %v3714 = vpop.f32.mrb[0].mxu0
      %3715 = vmatprep.mubr.f32.mxu0 0.0
      %3716 = vmatmul.mubr.f32.gmra.mrb[0].mxu0 %v3534
      %v3717 = vpop.f32.mrb[0].mxu0
      %v3718 = vadd.f32 0.0, %v3717
      %v3719 = vpop.f32.mrb[0].mxu0
      %3720 = vmatprep.mubr.f32.mxu0 0.0
      %3721 = vmatmul.mubr.f32.gmra.mrb[0].mxu0 %v3537
      %v3722 = vpop.f32.mrb[0].mxu0
      %v3723 = vadd.f32 0.0, %v3722
      %v3724 = vpop.f32.mrb[0].mxu0
      %3725 = vmatprep.mubr.f32.mxu0 0.0
      %3726 = vmatmul.mubr.f32.gmra.mrb[0].mxu0 %v3540
      %v3727 = vpop.f32.mrb[0].mxu0
      %v3728 = vadd.f32 0.0, %v3727
      %v3729 = vpop.f32.mrb[0].mxu0
      %3730 = vmatprep.mubr.f32.mxu0 0.0
      %3731 = vmatmul.mubr.f32.gmra.mrb[0].mxu0 %v3543
      %v3732 = vpop.f32.mrb[0].mxu0
      %v3733 = vadd.f32 0.0, %v3732
      %v3734 = vpop.f32.mrb[0].mxu0
      %3735 = vmatprep.mubr.f32.mxu0 0.0
      %3736 = vmatmul.mubr.f32.gmra.mrb[0].mxu0 %v3546
      %v3737 = vpop.f32.mrb[0].mxu0
      %v3738 = vadd.f32 0.0, %v3737
      %v3739 = vpop.f32.mrb[0].mxu0
      %3740 = vmatprep.mubr.f32.mxu0 0.0
      %3741 = vmatmul.mubr.f32.gmra.mrb[0].mxu0 %v3549
      %v3742 = vpop.f32.mrb[0].mxu0
      %v3743 = vadd.f32 0.0, %v3742
      %v3744 = vpop.f32.mrb[0].mxu0
      %3745 = vmatprep.mubr.f32.mxu0 0.0
      %3746 = vmatmul.mubr.f32.gmra.mrb[0].mxu0 %v3552
      %v3747 = vpop.f32.mrb[0].mxu0
      %v3748 = vadd.f32 0.0, %v3747
      %v3749 = vpop.f32.mrb[0].mxu0
      %3750 = vmatprep.mubr.f32.mxu0 0.0
      %3751 = vmatmul.mubr.f32.gmra.mrb[0].mxu0 %v3555
      %v3752 = vpop.f32.mrb[0].mxu0
      %v3753 = vadd.f32 0.0, %v3752
      %v3754 = vpop.f32.mrb[0].mxu0
      %3755 = vmatprep.mubr.f32.mxu0 0.0
      %3756 = vmatmul.mubr.f32.gmra.mrb[0].mxu0 %v3558
      %v3757 = vpop.f32.mrb[0].mxu0
      %v3758 = vadd.f32 0.0, %v3757
      %v3759 = vpop.f32.mrb[0].mxu0
      %3760 = vmatprep.mubr.f32.mxu0 0.0
      %3761 = vmatmul.mubr.f32.gmra.mrb[0].mxu0 %v3561
      %v3762 = vpop.f32.mrb[0].mxu0
      %v3763 = vadd.f32 0.0, %v3762
      %v3764 = vpop.f32.mrb[0].mxu0
      %3765 = vmatprep.mubr.f32.mxu0 0.0
      %3766 = vmatmul.mubr.f32.gmra.mrb[0].mxu0 %v3564
      %v3767 = vpop.f32.mrb[0].mxu0
      %v3768 = vadd.f32 0.0, %v3767
      %v3769 = vpop.f32.mrb[0].mxu0
      %3770 = vdwg.mxu0
      %v3772 = vsel %vm3383, %v3417, 0
      %v3775 = vsel %vm3383, %v3418, 0
      %v3778 = vsel %vm3383, %v3419, 0
      %v3781 = vsel %vm3383, %v3420, 0
      %v3784 = vsel %vm3383, %v3421, 0
      %v3787 = vsel %vm3383, %v3422, 0
      %v3790 = vsel %vm3383, %v3423, 0
      %v3793 = vsel %vm3383, %v3424, 0
      %v3796 = vsel %vm3383, %v3425, 0
      %v3799 = vsel %vm3383, %v3426, 0
      %v3802 = vsel %vm3383, %v3427, 0
      %v3805 = vsel %vm3383, %v3428, 0
      %v3808 = vsel %vm3383, %v3429, 0
      %v3811 = vsel %vm3383, %v3430, 0
      %v3814 = vsel %vm3383, %v3431, 0
      %v3817 = vsel %vm3383, %v3432, 0
      %v3820 = vsel %vm3383, %v3433, 0
      %v3823 = vsel %vm3383, %v3434, 0
      %v3826 = vsel %vm3383, %v3435, 0
      %v3829 = vsel %vm3383, %v3436, 0
      %v3832 = vsel %vm3383, %v3437, 0
      %v3835 = vsel %vm3383, %v3438, 0
      %v3838 = vsel %vm3383, %v3439, 0
      %v3841 = vsel %vm3383, %v3440, 0
      %v3844 = vsel %vm3383, %v3441, 0
      %v3847 = vsel %vm3383, %v3442, 0
      %v3850 = vsel %vm3383, %v3443, 0
      %v3853 = vsel %vm3383, %v3444, 0
      %3855 = vmatprep.subr.mxu0 0.0
      %3856 = vmatpush1.msra.mxu0 %v3445
      %3857 = vmatprep.subr.mxu0 0.0
      %3858 = vmatpush1.msra.mxu0 %v3446
      %3859 = vmatprep.subr.mxu0 0.0
      %3860 = vmatpush1.msra.mxu0 %v3447
      %3861 = vmatprep.subr.mxu0 0.0
      %3862 = vmatpush1.msra.mxu0 %v3448
      %3863 = vmatprep.subr.mxu0 0.0
      %3864 = vmatpush1.msra.mxu0 0.0
      %3865 = vmatprep.subr.mxu0 0.0
      %3866 = vmatpush1.msra.mxu0 0.0
      %3867 = vmatprep.subr.mxu0 0.0
      %3868 = vmatpush1.msra.mxu0 0.0
      %3869 = vmatprep.subr.mxu0 0.0
      %3870 = vmatpush1.msra.mxu0 0.0
      %3871 = vmatprep.subr.mxu0 0.0
      %3872 = vmatpush1.msra.mxu0 0.0
      %3873 = vmatprep.subr.mxu0 0.0
      %3874 = vmatpush1.msra.mxu0 0.0
      %3875 = vmatprep.subr.mxu0 0.0
      %3876 = vmatpush1.msra.mxu0 0.0
      %3877 = vmatprep.subr.mxu0 0.0
      %3878 = vmatpush1.msra.mxu0 0.0
      %3879 = vmatprep.subr.mxu0 0.0
      %3880 = vmatpush1.msra.mxu0 0.0
      %3881 = vmatprep.subr.mxu0 0.0
      %3882 = vmatpush1.msra.mxu0 0.0
      %3883 = vmatprep.subr.mxu0 0.0
      %3884 = vmatpush1.msra.mxu0 0.0
      %3885 = vmatprep.subr.mxu0 0.0
      %3886 = vmatpush1.msra.mxu0 0.0
      %3887 = vmatprep.subr.mxu0 0.0
      %3888 = vmatpush1.msra.mxu0 0.0
      %3889 = vmatprep.subr.mxu0 0.0
      %3890 = vmatpush1.msra.mxu0 0.0
      %3891 = vmatprep.subr.mxu0 0.0
      %3892 = vmatpush1.msra.mxu0 0.0
      %3893 = vmatprep.subr.mxu0 0.0
      %3894 = vmatpush1.msra.mxu0 0.0
      %3895 = vmatprep.subr.mxu0 0.0
      %3896 = vmatpush1.msra.mxu0 0.0
      %3897 = vmatprep.subr.mxu0 0.0
      %3898 = vmatpush1.msra.mxu0 0.0
      %3899 = vmatprep.subr.mxu0 0.0
      %3900 = vmatpush1.msra.mxu0 0.0
      %3901 = vmatprep.subr.mxu0 0.0
      %3902 = vmatpush1.msra.mxu0 0.0
      %3903 = vmatprep.subr.mxu0 0.0
      %3904 = vmatpush1.msra.mxu0 0.0
      %3905 = vmatprep.subr.mxu0 0.0
      %3906 = vmatpush1.msra.mxu0 0.0
      %3907 = vmatprep.subr.mxu0 0.0
      %3908 = vmatpush1.msra.mxu0 0.0
      %3909 = vmatprep.subr.mxu0 0.0
      %3910 = vmatpush1.msra.mxu0 0.0
      %3911 = vmatprep.subr.mxu0 0.0
      %3912 = vmatpush1.msra.mxu0 0.0
      %3913 = vmatprep.subr.mxu0 0.0
      %3914 = vmatpush1.msra.mxu0 0.0
      %3915 = vmatprep.subr.mxu0 0.0
      %3916 = vmatpush1.msra.mxu0 0.0
      %3917 = vmatprep.subr.mxu0 0.0
      %3918 = vmatpush1.msra.mxu0 0.0
      %3919 = vmatprep.mubr.f32.mxu0 0.0
      %3920 = vmatmul.mubr.f32.gmra.mrb[0].mxu0 %v3772
      %v3921 = vpop.f32.mrb[0].mxu0
      %v3922 = vadd.f32 %v3633, %v3921
      %v3923 = vpop.f32.mrb[0].mxu0
      %3924 = vmatprep.mubr.f32.mxu0 0.0
      %3925 = vmatmul.mubr.f32.gmra.mrb[0].mxu0 %v3775
      %v3926 = vpop.f32.mrb[0].mxu0
      %v3927 = vadd.f32 %v3638, %v3926
      %v3928 = vpop.f32.mrb[0].mxu0
      %3929 = vmatprep.mubr.f32.mxu0 0.0
      %3930 = vmatmul.mubr.f32.gmra.mrb[0].mxu0 %v3778
      %v3931 = vpop.f32.mrb[0].mxu0
      %v3932 = vadd.f32 %v3643, %v3931
      %v3933 = vpop.f32.mrb[0].mxu0
      %3934 = vmatprep.mubr.f32.mxu0 0.0
      %3935 = vmatmul.mubr.f32.gmra.mrb[0].mxu0 %v3781
      %v3936 = vpop.f32.mrb[0].mxu0
      %v3937 = vadd.f32 %v3648, %v3936
      %v3938 = vpop.f32.mrb[0].mxu0
      %3939 = vmatprep.mubr.f32.mxu0 0.0
      %3940 = vmatmul.mubr.f32.gmra.mrb[0].mxu0 %v3784
      %v3941 = vpop.f32.mrb[0].mxu0
      %v3942 = vadd.f32 %v3653, %v3941
      %v3943 = vpop.f32.mrb[0].mxu0
      %3944 = vmatprep.mubr.f32.mxu0 0.0
      %3945 = vmatmul.mubr.f32.gmra.mrb[0].mxu0 %v3787
      %v3946 = vpop.f32.mrb[0].mxu0
      %v3947 = vadd.f32 %v3658, %v3946
      %v3948 = vpop.f32.mrb[0].mxu0
      %3949 = vmatprep.mubr.f32.mxu0 0.0
      %3950 = vmatmul.mubr.f32.gmra.mrb[0].mxu0 %v3790
      %v3951 = vpop.f32.mrb[0].mxu0
      %v3952 = vadd.f32 %v3663, %v3951
      %v3953 = vpop.f32.mrb[0].mxu0
      %3954 = vmatprep.mubr.f32.mxu0 0.0
      %3955 = vmatmul.mubr.f32.gmra.mrb[0].mxu0 %v3793
      %v3956 = vpop.f32.mrb[0].mxu0
      %v3957 = vadd.f32 %v3668, %v3956
      %v3958 = vpop.f32.mrb[0].mxu0
      %3959 = vmatprep.mubr.f32.mxu0 0.0
      %3960 = vmatmul.mubr.f32.gmra.mrb[0].mxu0 %v3796
      %v3961 = vpop.f32.mrb[0].mxu0
      %v3962 = vadd.f32 %v3673, %v3961
      %v3963 = vpop.f32.mrb[0].mxu0
      %3964 = vmatprep.mubr.f32.mxu0 0.0
      %3965 = vmatmul.mubr.f32.gmra.mrb[0].mxu0 %v3799
      %v3966 = vpop.f32.mrb[0].mxu0
      %v3967 = vadd.f32 %v3678, %v3966
      %v3968 = vpop.f32.mrb[0].mxu0
      %3969 = vmatprep.mubr.f32.mxu0 0.0
      %3970 = vmatmul.mubr.f32.gmra.mrb[0].mxu0 %v3802
      %v3971 = vpop.f32.mrb[0].mxu0
      %v3972 = vadd.f32 %v3683, %v3971
      %v3973 = vpop.f32.mrb[0].mxu0
      %3974 = vmatprep.mubr.f32.mxu0 0.0
      %3975 = vmatmul.mubr.f32.gmra.mrb[0].mxu0 %v3805
      %v3976 = vpop.f32.mrb[0].mxu0
      %v3977 = vadd.f32 %v3688, %v3976
      %v3978 = vpop.f32.mrb[0].mxu0
      %3979 = vmatprep.mubr.f32.mxu0 0.0
      %3980 = vmatmul.mubr.f32.gmra.mrb[0].mxu0 %v3808
      %v3981 = vpop.f32.mrb[0].mxu0
      %v3982 = vadd.f32 %v3693, %v3981
      %v3983 = vpop.f32.mrb[0].mxu0
      %3984 = vmatprep.mubr.f32.mxu0 0.0
      %3985 = vmatmul.mubr.f32.gmra.mrb[0].mxu0 %v3811
      %v3986 = vpop.f32.mrb[0].mxu0
      %v3987 = vadd.f32 %v3698, %v3986
      %v3988 = vpop.f32.mrb[0].mxu0
      %3989 = vmatprep.mubr.f32.mxu0 0.0
      %3990 = vmatmul.mubr.f32.gmra.mrb[0].mxu0 %v3814
      %v3991 = vpop.f32.mrb[0].mxu0
      %v3992 = vadd.f32 %v3703, %v3991
      %v3993 = vpop.f32.mrb[0].mxu0
      %3994 = vmatprep.mubr.f32.mxu0 0.0
      %3995 = vmatmul.mubr.f32.gmra.mrb[0].mxu0 %v3817
      %v3996 = vpop.f32.mrb[0].mxu0
      %v3997 = vadd.f32 %v3708, %v3996
      %v3998 = vpop.f32.mrb[0].mxu0
      %3999 = vmatprep.mubr.f32.mxu0 0.0
      %4000 = vmatmul.mubr.f32.gmra.mrb[0].mxu0 %v3820
      %v4001 = vpop.f32.mrb[0].mxu0
      %v4002 = vadd.f32 %v3713, %v4001
      %v4003 = vpop.f32.mrb[0].mxu0
      %4004 = vmatprep.mubr.f32.mxu0 0.0
      %4005 = vmatmul.mubr.f32.gmra.mrb[0].mxu0 %v3823
      %v4006 = vpop.f32.mrb[0].mxu0
      %v4007 = vadd.f32 %v3718, %v4006
      %v4008 = vpop.f32.mrb[0].mxu0
      %4009 = vmatprep.mubr.f32.mxu0 0.0
      %4010 = vmatmul.mubr.f32.gmra.mrb[0].mxu0 %v3826
      %v4011 = vpop.f32.mrb[0].mxu0
      %v4012 = vadd.f32 %v3723, %v4011
      %v4013 = vpop.f32.mrb[0].mxu0
      %4014 = vmatprep.mubr.f32.mxu0 0.0
      %4015 = vmatmul.mubr.f32.gmra.mrb[0].mxu0 %v3829
      %v4016 = vpop.f32.mrb[0].mxu0
      %v4017 = vadd.f32 %v3728, %v4016
      %v4018 = vpop.f32.mrb[0].mxu0
      %4019 = vmatprep.mubr.f32.mxu0 0.0
      %4020 = vmatmul.mubr.f32.gmra.mrb[0].mxu0 %v3832
      %v4021 = vpop.f32.mrb[0].mxu0
      %v4022 = vadd.f32 %v3733, %v4021
      %v4023 = vpop.f32.mrb[0].mxu0
      %4024 = vmatprep.mubr.f32.mxu0 0.0
      %4025 = vmatmul.mubr.f32.gmra.mrb[0].mxu0 %v3835
      %v4026 = vpop.f32.mrb[0].mxu0
      %v4027 = vadd.f32 %v3738, %v4026
      %v4028 = vpop.f32.mrb[0].mxu0
      %4029 = vmatprep.mubr.f32.mxu0 0.0
      %4030 = vmatmul.mubr.f32.gmra.mrb[0].mxu0 %v3838
      %v4031 = vpop.f32.mrb[0].mxu0
      %v4032 = vadd.f32 %v3743, %v4031
      %v4033 = vpop.f32.mrb[0].mxu0
      %4034 = vmatprep.mubr.f32.mxu0 0.0
      %4035 = vmatmul.mubr.f32.gmra.mrb[0].mxu0 %v3841
      %v4036 = vpop.f32.mrb[0].mxu0
      %v4037 = vadd.f32 %v3748, %v4036
      %v4038 = vpop.f32.mrb[0].mxu0
      %4039 = vmatprep.mubr.f32.mxu0 0.0
      %4040 = vmatmul.mubr.f32.gmra.mrb[0].mxu0 %v3844
      %v4041 = vpop.f32.mrb[0].mxu0
      %v4042 = vadd.f32 %v3753, %v4041
      %v4043 = vpop.f32.mrb[0].mxu0
      %4044 = vmatprep.mubr.f32.mxu0 0.0
      %4045 = vmatmul.mubr.f32.gmra.mrb[0].mxu0 %v3847
      %v4046 = vpop.f32.mrb[0].mxu0
      %v4047 = vadd.f32 %v3758, %v4046
      %v4048 = vpop.f32.mrb[0].mxu0
      %4049 = vmatprep.mubr.f32.mxu0 0.0
      %4050 = vmatmul.mubr.f32.gmra.mrb[0].mxu0 %v3850
      %v4051 = vpop.f32.mrb[0].mxu0
      %v4052 = vadd.f32 %v3763, %v4051
      %v4053 = vpop.f32.mrb[0].mxu0
      %4054 = vmatprep.mubr.f32.mxu0 0.0
      %4055 = vmatmul.mubr.f32.gmra.mrb[0].mxu0 %v3853
      %v4056 = vpop.f32.mrb[0].mxu0
      %v4057 = vadd.f32 %v3768, %v4056
      %v4058 = vpop.f32.mrb[0].mxu0
      %4059 = vdwg.mxu0
      %v4060 = vld [vmem:[#allocation2 + $0x2] sm:$0xff]
      %v4061 = vld [vmem:[#allocation2 + $0xa] sm:$0xff]
      %v4062 = vld [vmem:[#allocation2 + $0x12] sm:$0xff]
      %v4063 = vld [vmem:[#allocation2 + $0x1a] sm:$0xff]
      %v4064 = vld [vmem:[#allocation2 + $0x22] sm:$0xff]
      %v4065 = vld [vmem:[#allocation2 + $0x2a] sm:$0xff]
      %v4066 = vld [vmem:[#allocation2 + $0x32] sm:$0xff]
      %v4067 = vld [vmem:[#allocation2 + $0x3a] sm:$0xff]
      %v4068 = vld [vmem:[#allocation2 + $0x42] sm:$0xff]
      %v4069 = vld [vmem:[#allocation2 + $0x4a] sm:$0xff]
      %v4070 = vld [vmem:[#allocation2 + $0x52] sm:$0xff]
      %v4071 = vld [vmem:[#allocation2 + $0x5a] sm:$0xff]
      %v4072 = vld [vmem:[#allocation2 + $0x62] sm:$0xff]
      %v4073 = vld [vmem:[#allocation2 + $0x6a] sm:$0xff]
      %v4074 = vld [vmem:[#allocation2 + $0x72] sm:$0xff]
      %v4075 = vld [vmem:[#allocation2 + $0x7a] sm:$0xff]
      %v4076 = vld [vmem:[#allocation2 + $0x82] sm:$0xff]
      %v4077 = vld [vmem:[#allocation2 + $0x8a] sm:$0xff]
      %v4078 = vld [vmem:[#allocation2 + $0x92] sm:$0xff]
      %v4079 = vld [vmem:[#allocation2 + $0x9a] sm:$0xff]
      %v4080 = vld [vmem:[#allocation2 + $0xa2] sm:$0xff]
      %v4081 = vld [vmem:[#allocation2 + $0xaa] sm:$0xff]
      %v4082 = vld [vmem:[#allocation2 + $0xb2] sm:$0xff]
      %v4083 = vld [vmem:[#allocation2 + $0xba] sm:$0xff]
      %v4084 = vld [vmem:[#allocation2 + $0xc2] sm:$0xff]
      %v4085 = vld [vmem:[#allocation2 + $0xca] sm:$0xff]
      %v4086 = vld [vmem:[#allocation2 + $0xd2] sm:$0xff]
      %v4087 = vld [vmem:[#allocation2 + $0xda] sm:$0xff]
      %s4088 = scalar_lea.vmem %s3, 64
      %v4089 = vld [vmem:[%s4088] sm:$0xff]
      %v4090 = vld [vmem:[%s4088 + $0x8] sm:$0xff]
      %v4091 = vld [vmem:[%s4088 + $0x10] sm:$0xff]
      %v4092 = vld [vmem:[%s4088 + $0x18] sm:$0xff]
      %v4094 = vsel %vm3383, %v4060, 0
      %v4097 = vsel %vm3383, %v4061, 0
      %v4100 = vsel %vm3383, %v4062, 0
      %v4103 = vsel %vm3383, %v4063, 0
      %v4106 = vsel %vm3383, %v4064, 0
      %v4109 = vsel %vm3383, %v4065, 0
      %v4112 = vsel %vm3383, %v4066, 0
      %v4115 = vsel %vm3383, %v4067, 0
      %v4118 = vsel %vm3383, %v4068, 0
      %v4121 = vsel %vm3383, %v4069, 0
      %v4124 = vsel %vm3383, %v4070, 0
      %v4127 = vsel %vm3383, %v4071, 0
      %v4130 = vsel %vm3383, %v4072, 0
      %v4133 = vsel %vm3383, %v4073, 0
      %v4136 = vsel %vm3383, %v4074, 0
      %v4139 = vsel %vm3383, %v4075, 0
      %v4142 = vsel %vm3383, %v4076, 0
      %v4145 = vsel %vm3383, %v4077, 0
      %v4148 = vsel %vm3383, %v4078, 0
      %v4151 = vsel %vm3383, %v4079, 0
      %v4154 = vsel %vm3383, %v4080, 0
      %v4157 = vsel %vm3383, %v4081, 0
      %v4160 = vsel %vm3383, %v4082, 0
      %v4163 = vsel %vm3383, %v4083, 0
      %v4166 = vsel %vm3383, %v4084, 0
      %v4169 = vsel %vm3383, %v4085, 0
      %v4172 = vsel %vm3383, %v4086, 0
      %v4175 = vsel %vm3383, %v4087, 0
      %4177 = vmatprep.subr.mxu0 0.0
      %4178 = vmatpush1.msra.mxu0 %v4089
      %4179 = vmatprep.subr.mxu0 0.0
      %4180 = vmatpush1.msra.mxu0 %v4090
      %4181 = vmatprep.subr.mxu0 0.0
      %4182 = vmatpush1.msra.mxu0 %v4091
      %4183 = vmatprep.subr.mxu0 0.0
      %4184 = vmatpush1.msra.mxu0 %v4092
      %4185 = vmatprep.subr.mxu0 0.0
      %4186 = vmatpush1.msra.mxu0 0.0
      %4187 = vmatprep.subr.mxu0 0.0
      %4188 = vmatpush1.msra.mxu0 0.0
      %4189 = vmatprep.subr.mxu0 0.0
      %4190 = vmatpush1.msra.mxu0 0.0
      %4191 = vmatprep.subr.mxu0 0.0
      %4192 = vmatpush1.msra.mxu0 0.0
      %4193 = vmatprep.subr.mxu0 0.0
      %4194 = vmatpush1.msra.mxu0 0.0
      %4195 = vmatprep.subr.mxu0 0.0
      %4196 = vmatpush1.msra.mxu0 0.0
      %4197 = vmatprep.subr.mxu0 0.0
      %4198 = vmatpush1.msra.mxu0 0.0
      %4199 = vmatprep.subr.mxu0 0.0
      %4200 = vmatpush1.msra.mxu0 0.0
      %4201 = vmatprep.subr.mxu0 0.0
      %4202 = vmatpush1.msra.mxu0 0.0
      %4203 = vmatprep.subr.mxu0 0.0
      %4204 = vmatpush1.msra.mxu0 0.0
      %4205 = vmatprep.subr.mxu0 0.0
      %4206 = vmatpush1.msra.mxu0 0.0
      %4207 = vmatprep.subr.mxu0 0.0
      %4208 = vmatpush1.msra.mxu0 0.0
      %4209 = vmatprep.subr.mxu0 0.0
      %4210 = vmatpush1.msra.mxu0 0.0
      %4211 = vmatprep.subr.mxu0 0.0
      %4212 = vmatpush1.msra.mxu0 0.0
      %4213 = vmatprep.subr.mxu0 0.0
      %4214 = vmatpush1.msra.mxu0 0.0
      %4215 = vmatprep.subr.mxu0 0.0
      %4216 = vmatpush1.msra.mxu0 0.0
      %4217 = vmatprep.subr.mxu0 0.0
      %4218 = vmatpush1.msra.mxu0 0.0
      %4219 = vmatprep.subr.mxu0 0.0
      %4220 = vmatpush1.msra.mxu0 0.0
      %4221 = vmatprep.subr.mxu0 0.0
      %4222 = vmatpush1.msra.mxu0 0.0
      %4223 = vmatprep.subr.mxu0 0.0
      %4224 = vmatpush1.msra.mxu0 0.0
      %4225 = vmatprep.subr.mxu0 0.0
      %4226 = vmatpush1.msra.mxu0 0.0
      %4227 = vmatprep.subr.mxu0 0.0
      %4228 = vmatpush1.msra.mxu0 0.0
      %4229 = vmatprep.subr.mxu0 0.0
      %4230 = vmatpush1.msra.mxu0 0.0
      %4231 = vmatprep.subr.mxu0 0.0
      %4232 = vmatpush1.msra.mxu0 0.0
      %4233 = vmatprep.subr.mxu0 0.0
      %4234 = vmatpush1.msra.mxu0 0.0
      %4235 = vmatprep.subr.mxu0 0.0
      %4236 = vmatpush1.msra.mxu0 0.0
      %4237 = vmatprep.subr.mxu0 0.0
      %4238 = vmatpush1.msra.mxu0 0.0
      %4239 = vmatprep.subr.mxu0 0.0
      %4240 = vmatpush1.msra.mxu0 0.0
      %4241 = vmatprep.mubr.f32.mxu0 0.0
      %4242 = vmatmul.mubr.f32.gmra.mrb[0].mxu0 %v4094
      %v4243 = vpop.f32.mrb[0].mxu0
      %v4244 = vadd.f32 0.0, %v4243
      %v4245 = vpop.f32.mrb[0].mxu0
      %4246 = vmatprep.mubr.f32.mxu0 0.0
      %4247 = vmatmul.mubr.f32.gmra.mrb[0].mxu0 %v4097
      %v4248 = vpop.f32.mrb[0].mxu0
      %v4249 = vadd.f32 0.0, %v4248
      %v4250 = vpop.f32.mrb[0].mxu0
      %4251 = vmatprep.mubr.f32.mxu0 0.0
      %4252 = vmatmul.mubr.f32.gmra.mrb[0].mxu0 %v4100
      %v4253 = vpop.f32.mrb[0].mxu0
      %v4254 = vadd.f32 0.0, %v4253
      %v4255 = vpop.f32.mrb[0].mxu0
      %4256 = vmatprep.mubr.f32.mxu0 0.0
      %4257 = vmatmul.mubr.f32.gmra.mrb[0].mxu0 %v4103
      %v4258 = vpop.f32.mrb[0].mxu0
      %v4259 = vadd.f32 0.0, %v4258
      %v4260 = vpop.f32.mrb[0].mxu0
      %4261 = vmatprep.mubr.f32.mxu0 0.0
      %4262 = vmatmul.mubr.f32.gmra.mrb[0].mxu0 %v4106
      %v4263 = vpop.f32.mrb[0].mxu0
      %v4264 = vadd.f32 0.0, %v4263
      %v4265 = vpop.f32.mrb[0].mxu0
      %4266 = vmatprep.mubr.f32.mxu0 0.0
      %4267 = vmatmul.mubr.f32.gmra.mrb[0].mxu0 %v4109
      %v4268 = vpop.f32.mrb[0].mxu0
      %v4269 = vadd.f32 0.0, %v4268
      %v4270 = vpop.f32.mrb[0].mxu0
      %4271 = vmatprep.mubr.f32.mxu0 0.0
      %4272 = vmatmul.mubr.f32.gmra.mrb[0].mxu0 %v4112
      %v4273 = vpop.f32.mrb[0].mxu0
      %v4274 = vadd.f32 0.0, %v4273
      %v4275 = vpop.f32.mrb[0].mxu0
      %4276 = vmatprep.mubr.f32.mxu0 0.0
      %4277 = vmatmul.mubr.f32.gmra.mrb[0].mxu0 %v4115
      %v4278 = vpop.f32.mrb[0].mxu0
      %v4279 = vadd.f32 0.0, %v4278
      %v4280 = vpop.f32.mrb[0].mxu0
      %4281 = vmatprep.mubr.f32.mxu0 0.0
      %4282 = vmatmul.mubr.f32.gmra.mrb[0].mxu0 %v4118
      %v4283 = vpop.f32.mrb[0].mxu0
      %v4284 = vadd.f32 0.0, %v4283
      %v4285 = vpop.f32.mrb[0].mxu0
      %4286 = vmatprep.mubr.f32.mxu0 0.0
      %4287 = vmatmul.mubr.f32.gmra.mrb[0].mxu0 %v4121
      %v4288 = vpop.f32.mrb[0].mxu0
      %v4289 = vadd.f32 0.0, %v4288
      %v4290 = vpop.f32.mrb[0].mxu0
      %4291 = vmatprep.mubr.f32.mxu0 0.0
      %4292 = vmatmul.mubr.f32.gmra.mrb[0].mxu0 %v4124
      %v4293 = vpop.f32.mrb[0].mxu0
      %v4294 = vadd.f32 0.0, %v4293
      %v4295 = vpop.f32.mrb[0].mxu0
      %4296 = vmatprep.mubr.f32.mxu0 0.0
      %4297 = vmatmul.mubr.f32.gmra.mrb[0].mxu0 %v4127
      %v4298 = vpop.f32.mrb[0].mxu0
      %v4299 = vadd.f32 0.0, %v4298
      %v4300 = vpop.f32.mrb[0].mxu0
      %4301 = vmatprep.mubr.f32.mxu0 0.0
      %4302 = vmatmul.mubr.f32.gmra.mrb[0].mxu0 %v4130
      %v4303 = vpop.f32.mrb[0].mxu0
      %v4304 = vadd.f32 0.0, %v4303
      %v4305 = vpop.f32.mrb[0].mxu0
      %4306 = vmatprep.mubr.f32.mxu0 0.0
      %4307 = vmatmul.mubr.f32.gmra.mrb[0].mxu0 %v4133
      %v4308 = vpop.f32.mrb[0].mxu0
      %v4309 = vadd.f32 0.0, %v4308
      %v4310 = vpop.f32.mrb[0].mxu0
      %4311 = vmatprep.mubr.f32.mxu0 0.0
      %4312 = vmatmul.mubr.f32.gmra.mrb[0].mxu0 %v4136
      %v4313 = vpop.f32.mrb[0].mxu0
      %v4314 = vadd.f32 0.0, %v4313
      %v4315 = vpop.f32.mrb[0].mxu0
      %4316 = vmatprep.mubr.f32.mxu0 0.0
      %4317 = vmatmul.mubr.f32.gmra.mrb[0].mxu0 %v4139
      %v4318 = vpop.f32.mrb[0].mxu0
      %v4319 = vadd.f32 0.0, %v4318
      %v4320 = vpop.f32.mrb[0].mxu0
      %4321 = vmatprep.mubr.f32.mxu0 0.0
      %4322 = vmatmul.mubr.f32.gmra.mrb[0].mxu0 %v4142
      %v4323 = vpop.f32.mrb[0].mxu0
      %v4324 = vadd.f32 0.0, %v4323
      %v4325 = vpop.f32.mrb[0].mxu0
      %4326 = vmatprep.mubr.f32.mxu0 0.0
      %4327 = vmatmul.mubr.f32.gmra.mrb[0].mxu0 %v4145
      %v4328 = vpop.f32.mrb[0].mxu0
      %v4329 = vadd.f32 0.0, %v4328
      %v4330 = vpop.f32.mrb[0].mxu0
      %4331 = vmatprep.mubr.f32.mxu0 0.0
      %4332 = vmatmul.mubr.f32.gmra.mrb[0].mxu0 %v4148
      %v4333 = vpop.f32.mrb[0].mxu0
      %v4334 = vadd.f32 0.0, %v4333
      %v4335 = vpop.f32.mrb[0].mxu0
      %4336 = vmatprep.mubr.f32.mxu0 0.0
      %4337 = vmatmul.mubr.f32.gmra.mrb[0].mxu0 %v4151
      %v4338 = vpop.f32.mrb[0].mxu0
      %v4339 = vadd.f32 0.0, %v4338
      %v4340 = vpop.f32.mrb[0].mxu0
      %4341 = vmatprep.mubr.f32.mxu0 0.0
      %4342 = vmatmul.mubr.f32.gmra.mrb[0].mxu0 %v4154
      %v4343 = vpop.f32.mrb[0].mxu0
      %v4344 = vadd.f32 0.0, %v4343
      %v4345 = vpop.f32.mrb[0].mxu0
      %4346 = vmatprep.mubr.f32.mxu0 0.0
      %4347 = vmatmul.mubr.f32.gmra.mrb[0].mxu0 %v4157
      %v4348 = vpop.f32.mrb[0].mxu0
      %v4349 = vadd.f32 0.0, %v4348
      %v4350 = vpop.f32.mrb[0].mxu0
      %4351 = vmatprep.mubr.f32.mxu0 0.0
      %4352 = vmatmul.mubr.f32.gmra.mrb[0].mxu0 %v4160
      %v4353 = vpop.f32.mrb[0].mxu0
      %v4354 = vadd.f32 0.0, %v4353
      %v4355 = vpop.f32.mrb[0].mxu0
      %4356 = vmatprep.mubr.f32.mxu0 0.0
      %4357 = vmatmul.mubr.f32.gmra.mrb[0].mxu0 %v4163
      %v4358 = vpop.f32.mrb[0].mxu0
      %v4359 = vadd.f32 0.0, %v4358
      %v4360 = vpop.f32.mrb[0].mxu0
      %4361 = vmatprep.mubr.f32.mxu0 0.0
      %4362 = vmatmul.mubr.f32.gmra.mrb[0].mxu0 %v4166
      %v4363 = vpop.f32.mrb[0].mxu0
      %v4364 = vadd.f32 0.0, %v4363
      %v4365 = vpop.f32.mrb[0].mxu0
      %4366 = vmatprep.mubr.f32.mxu0 0.0
      %4367 = vmatmul.mubr.f32.gmra.mrb[0].mxu0 %v4169
      %v4368 = vpop.f32.mrb[0].mxu0
      %v4369 = vadd.f32 0.0, %v4368
      %v4370 = vpop.f32.mrb[0].mxu0
      %4371 = vmatprep.mubr.f32.mxu0 0.0
      %4372 = vmatmul.mubr.f32.gmra.mrb[0].mxu0 %v4172
      %v4373 = vpop.f32.mrb[0].mxu0
      %v4374 = vadd.f32 0.0, %v4373
      %v4375 = vpop.f32.mrb[0].mxu0
      %4376 = vmatprep.mubr.f32.mxu0 0.0
      %4377 = vmatmul.mubr.f32.gmra.mrb[0].mxu0 %v4175
      %v4378 = vpop.f32.mrb[0].mxu0
      %v4379 = vadd.f32 0.0, %v4378
      %v4380 = vpop.f32.mrb[0].mxu0
      %4381 = vdwg.mxu0
      %v4382 = vadd.f32 %v3922, %v4244
      %v4383 = vadd.f32 %v3927, %v4249
      %v4384 = vadd.f32 %v3932, %v4254
      %v4385 = vadd.f32 %v3937, %v4259
      %v4386 = vadd.f32 %v3942, %v4264
      %v4387 = vadd.f32 %v3947, %v4269
      %v4388 = vadd.f32 %v3952, %v4274
      %v4389 = vadd.f32 %v3957, %v4279
      %v4390 = vadd.f32 %v3962, %v4284
      %v4391 = vadd.f32 %v3967, %v4289
      %v4392 = vadd.f32 %v3972, %v4294
      %v4393 = vadd.f32 %v3977, %v4299
      %v4394 = vadd.f32 %v3982, %v4304
      %v4395 = vadd.f32 %v3987, %v4309
      %v4396 = vadd.f32 %v3992, %v4314
      %v4397 = vadd.f32 %v3997, %v4319
      %v4398 = vadd.f32 %v4002, %v4324
      %v4399 = vadd.f32 %v4007, %v4329
      %v4400 = vadd.f32 %v4012, %v4334
      %v4401 = vadd.f32 %v4017, %v4339
      %v4402 = vadd.f32 %v4022, %v4344
      %v4403 = vadd.f32 %v4027, %v4349
      %v4404 = vadd.f32 %v4032, %v4354
      %v4405 = vadd.f32 %v4037, %v4359
      %v4406 = vadd.f32 %v4042, %v4364
      %v4407 = vadd.f32 %v4047, %v4369
      %v4408 = vadd.f32 %v4052, %v4374
      %v4409 = vadd.f32 %v4057, %v4379
      %v4410 = vld [vmem:[#allocation2 + $0x10] sm:$0xff]
      %v4411 = vld [vmem:[#allocation2 + $0x18] sm:$0xff]
      %v4412 = vld [vmem:[#allocation2 + $0x20] sm:$0xff]
      %v4413 = vld [vmem:[#allocation2 + $0x28] sm:$0xff]
      %v4414 = vld [vmem:[#allocation2 + $0x30] sm:$0xff]
      %v4415 = vld [vmem:[#allocation2 + $0x38] sm:$0xff]
      %v4416 = vld [vmem:[#allocation2 + $0x40] sm:$0xff]
      %v4417 = vld [vmem:[#allocation2 + $0x48] sm:$0xff]
      %v4418 = vld [vmem:[#allocation2 + $0x50] sm:$0xff]
      %v4419 = vld [vmem:[#allocation2 + $0x58] sm:$0xff]
      %v4420 = vld [vmem:[#allocation2 + $0x60] sm:$0xff]
      %v4421 = vld [vmem:[#allocation2 + $0x68] sm:$0xff]
      %v4422 = vld [vmem:[#allocation2 + $0x70] sm:$0xff]
      %v4423 = vld [vmem:[#allocation2 + $0x78] sm:$0xff]
      %v4424 = vld [vmem:[#allocation2 + $0x80] sm:$0xff]
      %v4425 = vld [vmem:[#allocation2 + $0x88] sm:$0xff]
      %v4426 = vld [vmem:[#allocation2 + $0x90] sm:$0xff]
      %v4427 = vld [vmem:[#allocation2 + $0x98] sm:$0xff]
      %v4428 = vld [vmem:[#allocation2 + $0xa0] sm:$0xff]
      %v4429 = vld [vmem:[#allocation2 + $0xa8] sm:$0xff]
      %v4430 = vld [vmem:[#allocation2 + $0xb0] sm:$0xff]
      %v4431 = vld [vmem:[#allocation2 + $0xb8] sm:$0xff]
      %v4432 = vld [vmem:[#allocation2 + $0xc0] sm:$0xff]
      %v4433 = vld [vmem:[#allocation2 + $0xc8] sm:$0xff]
      %v4434 = vld [vmem:[#allocation2 + $0xd0] sm:$0xff]
      %v4435 = vld [vmem:[#allocation2 + $0xd8] sm:$0xff]
      %v4436 = vld [vmem:[#allocation2 + $0xe0] sm:$0xff]
      %v4437 = vld [vmem:[#allocation2 + $0xe8] sm:$0xff]
      %s4438 = scalar_lea.vmem %s3, 96
      %v4439 = vld [vmem:[%s4438] sm:$0xff]
      %v4440 = vld [vmem:[%s4438 + $0x8] sm:$0xff]
      %v4441 = vld [vmem:[%s4438 + $0x10] sm:$0xff]
      %v4442 = vld [vmem:[%s4438 + $0x18] sm:$0xff]
      %v4444 = vsel %vm3383, %v4410, 0
      %v4447 = vsel %vm3383, %v4411, 0
      %v4450 = vsel %vm3383, %v4412, 0
      %v4453 = vsel %vm3383, %v4413, 0
      %v4456 = vsel %vm3383, %v4414, 0
      %v4459 = vsel %vm3383, %v4415, 0
      %v4462 = vsel %vm3383, %v4416, 0
      %v4465 = vsel %vm3383, %v4417, 0
      %v4468 = vsel %vm3383, %v4418, 0
      %v4471 = vsel %vm3383, %v4419, 0
      %v4474 = vsel %vm3383, %v4420, 0
      %v4477 = vsel %vm3383, %v4421, 0
      %v4480 = vsel %vm3383, %v4422, 0
      %v4483 = vsel %vm3383, %v4423, 0
      %v4486 = vsel %vm3383, %v4424, 0
      %v4489 = vsel %vm3383, %v4425, 0
      %v4492 = vsel %vm3383, %v4426, 0
      %v4495 = vsel %vm3383, %v4427, 0
      %v4498 = vsel %vm3383, %v4428, 0
      %v4501 = vsel %vm3383, %v4429, 0
      %v4504 = vsel %vm3383, %v4430, 0
      %v4507 = vsel %vm3383, %v4431, 0
      %v4510 = vsel %vm3383, %v4432, 0
      %v4513 = vsel %vm3383, %v4433, 0
      %v4516 = vsel %vm3383, %v4434, 0
      %v4519 = vsel %vm3383, %v4435, 0
      %v4522 = vsel %vm3383, %v4436, 0
      %v4525 = vsel %vm3383, %v4437, 0
      %4527 = vmatprep.subr.mxu0 0.0
      %4528 = vmatpush1.msra.mxu0 %v4439
      %4529 = vmatprep.subr.mxu0 0.0
      %4530 = vmatpush1.msra.mxu0 %v4440
      %4531 = vmatprep.subr.mxu0 0.0
      %4532 = vmatpush1.msra.mxu0 %v4441
      %4533 = vmatprep.subr.mxu0 0.0
      %4534 = vmatpush1.msra.mxu0 %v4442
      %4535 = vmatprep.subr.mxu0 0.0
      %4536 = vmatpush1.msra.mxu0 0.0
      %4537 = vmatprep.subr.mxu0 0.0
      %4538 = vmatpush1.msra.mxu0 0.0
      %4539 = vmatprep.subr.mxu0 0.0
      %4540 = vmatpush1.msra.mxu0 0.0
      %4541 = vmatprep.subr.mxu0 0.0
      %4542 = vmatpush1.msra.mxu0 0.0
      %4543 = vmatprep.subr.mxu0 0.0
      %4544 = vmatpush1.msra.mxu0 0.0
      %4545 = vmatprep.subr.mxu0 0.0
      %4546 = vmatpush1.msra.mxu0 0.0
      %4547 = vmatprep.subr.mxu0 0.0
      %4548 = vmatpush1.msra.mxu0 0.0
      %4549 = vmatprep.subr.mxu0 0.0
      %4550 = vmatpush1.msra.mxu0 0.0
      %4551 = vmatprep.subr.mxu0 0.0
      %4552 = vmatpush1.msra.mxu0 0.0
      %4553 = vmatprep.subr.mxu0 0.0
      %4554 = vmatpush1.msra.mxu0 0.0
      %4555 = vmatprep.subr.mxu0 0.0
      %4556 = vmatpush1.msra.mxu0 0.0
      %4557 = vmatprep.subr.mxu0 0.0
      %4558 = vmatpush1.msra.mxu0 0.0
      %4559 = vmatprep.subr.mxu0 0.0
      %4560 = vmatpush1.msra.mxu0 0.0
      %4561 = vmatprep.subr.mxu0 0.0
      %4562 = vmatpush1.msra.mxu0 0.0
      %4563 = vmatprep.subr.mxu0 0.0
      %4564 = vmatpush1.msra.mxu0 0.0
      %4565 = vmatprep.subr.mxu0 0.0
      %4566 = vmatpush1.msra.mxu0 0.0
      %4567 = vmatprep.subr.mxu0 0.0
      %4568 = vmatpush1.msra.mxu0 0.0
      %4569 = vmatprep.subr.mxu0 0.0
      %4570 = vmatpush1.msra.mxu0 0.0
      %4571 = vmatprep.subr.mxu0 0.0
      %4572 = vmatpush1.msra.mxu0 0.0
      %4573 = vmatprep.subr.mxu0 0.0
      %4574 = vmatpush1.msra.mxu0 0.0
      %4575 = vmatprep.subr.mxu0 0.0
      %4576 = vmatpush1.msra.mxu0 0.0
      %4577 = vmatprep.subr.mxu0 0.0
      %4578 = vmatpush1.msra.mxu0 0.0
      %4579 = vmatprep.subr.mxu0 0.0
      %4580 = vmatpush1.msra.mxu0 0.0
      %4581 = vmatprep.subr.mxu0 0.0
      %4582 = vmatpush1.msra.mxu0 0.0
      %4583 = vmatprep.subr.mxu0 0.0
      %4584 = vmatpush1.msra.mxu0 0.0
      %4585 = vmatprep.subr.mxu0 0.0
      %4586 = vmatpush1.msra.mxu0 0.0
      %4587 = vmatprep.subr.mxu0 0.0
      %4588 = vmatpush1.msra.mxu0 0.0
      %4589 = vmatprep.subr.mxu0 0.0
      %4590 = vmatpush1.msra.mxu0 0.0
      %4591 = vmatprep.mubr.f32.mxu0 0.0
      %4592 = vmatmul.mubr.f32.gmra.mrb[0].mxu0 %v4444
      %v4593 = vpop.f32.mrb[0].mxu0
      %v4594 = vadd.f32 0.0, %v4593
      %v4595 = vpop.f32.mrb[0].mxu0
      %4596 = vmatprep.mubr.f32.mxu0 0.0
      %4597 = vmatmul.mubr.f32.gmra.mrb[0].mxu0 %v4447
      %v4598 = vpop.f32.mrb[0].mxu0
      %v4599 = vadd.f32 0.0, %v4598
      %v4600 = vpop.f32.mrb[0].mxu0
      %4601 = vmatprep.mubr.f32.mxu0 0.0
      %4602 = vmatmul.mubr.f32.gmra.mrb[0].mxu0 %v4450
      %v4603 = vpop.f32.mrb[0].mxu0
      %v4604 = vadd.f32 0.0, %v4603
      %v4605 = vpop.f32.mrb[0].mxu0
      %4606 = vmatprep.mubr.f32.mxu0 0.0
      %4607 = vmatmul.mubr.f32.gmra.mrb[0].mxu0 %v4453
      %v4608 = vpop.f32.mrb[0].mxu0
      %v4609 = vadd.f32 0.0, %v4608
      %v4610 = vpop.f32.mrb[0].mxu0
      %4611 = vmatprep.mubr.f32.mxu0 0.0
      %4612 = vmatmul.mubr.f32.gmra.mrb[0].mxu0 %v4456
      %v4613 = vpop.f32.mrb[0].mxu0
      %v4614 = vadd.f32 0.0, %v4613
      %v4615 = vpop.f32.mrb[0].mxu0
      %4616 = vmatprep.mubr.f32.mxu0 0.0
      %4617 = vmatmul.mubr.f32.gmra.mrb[0].mxu0 %v4459
      %v4618 = vpop.f32.mrb[0].mxu0
      %v4619 = vadd.f32 0.0, %v4618
      %v4620 = vpop.f32.mrb[0].mxu0
      %4621 = vmatprep.mubr.f32.mxu0 0.0
      %4622 = vmatmul.mubr.f32.gmra.mrb[0].mxu0 %v4462
      %v4623 = vpop.f32.mrb[0].mxu0
      %v4624 = vadd.f32 0.0, %v4623
      %v4625 = vpop.f32.mrb[0].mxu0
      %4626 = vmatprep.mubr.f32.mxu0 0.0
      %4627 = vmatmul.mubr.f32.gmra.mrb[0].mxu0 %v4465
      %v4628 = vpop.f32.mrb[0].mxu0
      %v4629 = vadd.f32 0.0, %v4628
      %v4630 = vpop.f32.mrb[0].mxu0
      %4631 = vmatprep.mubr.f32.mxu0 0.0
      %4632 = vmatmul.mubr.f32.gmra.mrb[0].mxu0 %v4468
      %v4633 = vpop.f32.mrb[0].mxu0
      %v4634 = vadd.f32 0.0, %v4633
      %v4635 = vpop.f32.mrb[0].mxu0
      %4636 = vmatprep.mubr.f32.mxu0 0.0
      %4637 = vmatmul.mubr.f32.gmra.mrb[0].mxu0 %v4471
      %v4638 = vpop.f32.mrb[0].mxu0
      %v4639 = vadd.f32 0.0, %v4638
      %v4640 = vpop.f32.mrb[0].mxu0
      %4641 = vmatprep.mubr.f32.mxu0 0.0
      %4642 = vmatmul.mubr.f32.gmra.mrb[0].mxu0 %v4474
      %v4643 = vpop.f32.mrb[0].mxu0
      %v4644 = vadd.f32 0.0, %v4643
      %v4645 = vpop.f32.mrb[0].mxu0
      %4646 = vmatprep.mubr.f32.mxu0 0.0
      %4647 = vmatmul.mubr.f32.gmra.mrb[0].mxu0 %v4477
      %v4648 = vpop.f32.mrb[0].mxu0
      %v4649 = vadd.f32 0.0, %v4648
      %v4650 = vpop.f32.mrb[0].mxu0
      %4651 = vmatprep.mubr.f32.mxu0 0.0
      %4652 = vmatmul.mubr.f32.gmra.mrb[0].mxu0 %v4480
      %v4653 = vpop.f32.mrb[0].mxu0
      %v4654 = vadd.f32 0.0, %v4653
      %v4655 = vpop.f32.mrb[0].mxu0
      %4656 = vmatprep.mubr.f32.mxu0 0.0
      %4657 = vmatmul.mubr.f32.gmra.mrb[0].mxu0 %v4483
      %v4658 = vpop.f32.mrb[0].mxu0
      %v4659 = vadd.f32 0.0, %v4658
      %v4660 = vpop.f32.mrb[0].mxu0
      %4661 = vmatprep.mubr.f32.mxu0 0.0
      %4662 = vmatmul.mubr.f32.gmra.mrb[0].mxu0 %v4486
      %v4663 = vpop.f32.mrb[0].mxu0
      %v4664 = vadd.f32 0.0, %v4663
      %v4665 = vpop.f32.mrb[0].mxu0
      %4666 = vmatprep.mubr.f32.mxu0 0.0
      %4667 = vmatmul.mubr.f32.gmra.mrb[0].mxu0 %v4489
      %v4668 = vpop.f32.mrb[0].mxu0
      %v4669 = vadd.f32 0.0, %v4668
      %v4670 = vpop.f32.mrb[0].mxu0
      %4671 = vmatprep.mubr.f32.mxu0 0.0
      %4672 = vmatmul.mubr.f32.gmra.mrb[0].mxu0 %v4492
      %v4673 = vpop.f32.mrb[0].mxu0
      %v4674 = vadd.f32 0.0, %v4673
      %v4675 = vpop.f32.mrb[0].mxu0
      %4676 = vmatprep.mubr.f32.mxu0 0.0
      %4677 = vmatmul.mubr.f32.gmra.mrb[0].mxu0 %v4495
      %v4678 = vpop.f32.mrb[0].mxu0
      %v4679 = vadd.f32 0.0, %v4678
      %v4680 = vpop.f32.mrb[0].mxu0
      %4681 = vmatprep.mubr.f32.mxu0 0.0
      %4682 = vmatmul.mubr.f32.gmra.mrb[0].mxu0 %v4498
      %v4683 = vpop.f32.mrb[0].mxu0
      %v4684 = vadd.f32 0.0, %v4683
      %v4685 = vpop.f32.mrb[0].mxu0
      %4686 = vmatprep.mubr.f32.mxu0 0.0
      %4687 = vmatmul.mubr.f32.gmra.mrb[0].mxu0 %v4501
      %v4688 = vpop.f32.mrb[0].mxu0
      %v4689 = vadd.f32 0.0, %v4688
      %v4690 = vpop.f32.mrb[0].mxu0
      %4691 = vmatprep.mubr.f32.mxu0 0.0
      %4692 = vmatmul.mubr.f32.gmra.mrb[0].mxu0 %v4504
      %v4693 = vpop.f32.mrb[0].mxu0
      %v4694 = vadd.f32 0.0, %v4693
      %v4695 = vpop.f32.mrb[0].mxu0
      %4696 = vmatprep.mubr.f32.mxu0 0.0
      %4697 = vmatmul.mubr.f32.gmra.mrb[0].mxu0 %v4507
      %v4698 = vpop.f32.mrb[0].mxu0
      %v4699 = vadd.f32 0.0, %v4698
      %v4700 = vpop.f32.mrb[0].mxu0
      %4701 = vmatprep.mubr.f32.mxu0 0.0
      %4702 = vmatmul.mubr.f32.gmra.mrb[0].mxu0 %v4510
      %v4703 = vpop.f32.mrb[0].mxu0
      %v4704 = vadd.f32 0.0, %v4703
      %v4705 = vpop.f32.mrb[0].mxu0
      %4706 = vmatprep.mubr.f32.mxu0 0.0
      %4707 = vmatmul.mubr.f32.gmra.mrb[0].mxu0 %v4513
      %v4708 = vpop.f32.mrb[0].mxu0
      %v4709 = vadd.f32 0.0, %v4708
      %v4710 = vpop.f32.mrb[0].mxu0
      %4711 = vmatprep.mubr.f32.mxu0 0.0
      %4712 = vmatmul.mubr.f32.gmra.mrb[0].mxu0 %v4516
      %v4713 = vpop.f32.mrb[0].mxu0
      %v4714 = vadd.f32 0.0, %v4713
      %v4715 = vpop.f32.mrb[0].mxu0
      %4716 = vmatprep.mubr.f32.mxu0 0.0
      %4717 = vmatmul.mubr.f32.gmra.mrb[0].mxu0 %v4519
      %v4718 = vpop.f32.mrb[0].mxu0
      %v4719 = vadd.f32 0.0, %v4718
      %v4720 = vpop.f32.mrb[0].mxu0
      %4721 = vmatprep.mubr.f32.mxu0 0.0
      %4722 = vmatmul.mubr.f32.gmra.mrb[0].mxu0 %v4522
      %v4723 = vpop.f32.mrb[0].mxu0
      %v4724 = vadd.f32 0.0, %v4723
      %v4725 = vpop.f32.mrb[0].mxu0
      %4726 = vmatprep.mubr.f32.mxu0 0.0
      %4727 = vmatmul.mubr.f32.gmra.mrb[0].mxu0 %v4525
      %v4728 = vpop.f32.mrb[0].mxu0
      %v4729 = vadd.f32 0.0, %v4728
      %v4730 = vpop.f32.mrb[0].mxu0
      %4731 = vdwg.mxu0
      %v4732 = vadd.f32 %v4382, %v4594
      %v4733 = vadd.f32 %v4383, %v4599
      %v4734 = vadd.f32 %v4384, %v4604
      %v4735 = vadd.f32 %v4385, %v4609
      %v4736 = vadd.f32 %v4386, %v4614
      %v4737 = vadd.f32 %v4387, %v4619
      %v4738 = vadd.f32 %v4388, %v4624
      %v4739 = vadd.f32 %v4389, %v4629
      %v4740 = vadd.f32 %v4390, %v4634
      %v4741 = vadd.f32 %v4391, %v4639
      %v4742 = vadd.f32 %v4392, %v4644
      %v4743 = vadd.f32 %v4393, %v4649
      %v4744 = vadd.f32 %v4394, %v4654
      %v4745 = vadd.f32 %v4395, %v4659
      %v4746 = vadd.f32 %v4396, %v4664
      %v4747 = vadd.f32 %v4397, %v4669
      %v4748 = vadd.f32 %v4398, %v4674
      %v4749 = vadd.f32 %v4399, %v4679
      %v4750 = vadd.f32 %v4400, %v4684
      %v4751 = vadd.f32 %v4401, %v4689
      %v4752 = vadd.f32 %v4402, %v4694
      %v4753 = vadd.f32 %v4403, %v4699
      %v4754 = vadd.f32 %v4404, %v4704
      %v4755 = vadd.f32 %v4405, %v4709
      %v4756 = vadd.f32 %v4406, %v4714
      %v4757 = vadd.f32 %v4407, %v4719
      %v4758 = vadd.f32 %v4408, %v4724
      %v4759 = vadd.f32 %v4409, %v4729
      %v4760 = vld [vmem:[#allocation2 + $0x11] sm:$0xff]
      %v4761 = vld [vmem:[#allocation2 + $0x19] sm:$0xff]
      %v4762 = vld [vmem:[#allocation2 + $0x21] sm:$0xff]
      %v4763 = vld [vmem:[#allocation2 + $0x29] sm:$0xff]
      %v4764 = vld [vmem:[#allocation2 + $0x31] sm:$0xff]
      %v4765 = vld [vmem:[#allocation2 + $0x39] sm:$0xff]
      %v4766 = vld [vmem:[#allocation2 + $0x41] sm:$0xff]
      %v4767 = vld [vmem:[#allocation2 + $0x49] sm:$0xff]
      %v4768 = vld [vmem:[#allocation2 + $0x51] sm:$0xff]
      %v4769 = vld [vmem:[#allocation2 + $0x59] sm:$0xff]
      %v4770 = vld [vmem:[#allocation2 + $0x61] sm:$0xff]
      %v4771 = vld [vmem:[#allocation2 + $0x69] sm:$0xff]
      %v4772 = vld [vmem:[#allocation2 + $0x71] sm:$0xff]
      %v4773 = vld [vmem:[#allocation2 + $0x79] sm:$0xff]
      %v4774 = vld [vmem:[#allocation2 + $0x81] sm:$0xff]
      %v4775 = vld [vmem:[#allocation2 + $0x89] sm:$0xff]
      %v4776 = vld [vmem:[#allocation2 + $0x91] sm:$0xff]
      %v4777 = vld [vmem:[#allocation2 + $0x99] sm:$0xff]
      %v4778 = vld [vmem:[#allocation2 + $0xa1] sm:$0xff]
      %v4779 = vld [vmem:[#allocation2 + $0xa9] sm:$0xff]
      %v4780 = vld [vmem:[#allocation2 + $0xb1] sm:$0xff]
      %v4781 = vld [vmem:[#allocation2 + $0xb9] sm:$0xff]
      %v4782 = vld [vmem:[#allocation2 + $0xc1] sm:$0xff]
      %v4783 = vld [vmem:[#allocation2 + $0xc9] sm:$0xff]
      %v4784 = vld [vmem:[#allocation2 + $0xd1] sm:$0xff]
      %v4785 = vld [vmem:[#allocation2 + $0xd9] sm:$0xff]
      %v4786 = vld [vmem:[#allocation2 + $0xe1] sm:$0xff]
      %v4787 = vld [vmem:[#allocation2 + $0xe9] sm:$0xff]
      %s4788 = scalar_lea.vmem %s3, 128
      %v4789 = vld [vmem:[%s4788] sm:$0xff]
      %v4790 = vld [vmem:[%s4788 + $0x8] sm:$0xff]
      %v4791 = vld [vmem:[%s4788 + $0x10] sm:$0xff]
      %v4792 = vld [vmem:[%s4788 + $0x18] sm:$0xff]
      %v4794 = vsel %vm3383, %v4760, 0
      %v4797 = vsel %vm3383, %v4761, 0
      %v4800 = vsel %vm3383, %v4762, 0
      %v4803 = vsel %vm3383, %v4763, 0
      %v4806 = vsel %vm3383, %v4764, 0
      %v4809 = vsel %vm3383, %v4765, 0
      %v4812 = vsel %vm3383, %v4766, 0
      %v4815 = vsel %vm3383, %v4767, 0
      %v4818 = vsel %vm3383, %v4768, 0
      %v4821 = vsel %vm3383, %v4769, 0
      %v4824 = vsel %vm3383, %v4770, 0
      %v4827 = vsel %vm3383, %v4771, 0
      %v4830 = vsel %vm3383, %v4772, 0
      %v4833 = vsel %vm3383, %v4773, 0
      %v4836 = vsel %vm3383, %v4774, 0
      %v4839 = vsel %vm3383, %v4775, 0
      %v4842 = vsel %vm3383, %v4776, 0
      %v4845 = vsel %vm3383, %v4777, 0
      %v4848 = vsel %vm3383, %v4778, 0
      %v4851 = vsel %vm3383, %v4779, 0
      %v4854 = vsel %vm3383, %v4780, 0
      %v4857 = vsel %vm3383, %v4781, 0
      %v4860 = vsel %vm3383, %v4782, 0
      %v4863 = vsel %vm3383, %v4783, 0
      %v4866 = vsel %vm3383, %v4784, 0
      %v4869 = vsel %vm3383, %v4785, 0
      %v4872 = vsel %vm3383, %v4786, 0
      %v4875 = vsel %vm3383, %v4787, 0
      %4877 = vmatprep.subr.mxu0 0.0
      %4878 = vmatpush1.msra.mxu0 %v4789
      %4879 = vmatprep.subr.mxu0 0.0
      %4880 = vmatpush1.msra.mxu0 %v4790
      %4881 = vmatprep.subr.mxu0 0.0
      %4882 = vmatpush1.msra.mxu0 %v4791
      %4883 = vmatprep.subr.mxu0 0.0
      %4884 = vmatpush1.msra.mxu0 %v4792
      %4885 = vmatprep.subr.mxu0 0.0
      %4886 = vmatpush1.msra.mxu0 0.0
      %4887 = vmatprep.subr.mxu0 0.0
      %4888 = vmatpush1.msra.mxu0 0.0
      %4889 = vmatprep.subr.mxu0 0.0
      %4890 = vmatpush1.msra.mxu0 0.0
      %4891 = vmatprep.subr.mxu0 0.0
      %4892 = vmatpush1.msra.mxu0 0.0
      %4893 = vmatprep.subr.mxu0 0.0
      %4894 = vmatpush1.msra.mxu0 0.0
      %4895 = vmatprep.subr.mxu0 0.0
      %4896 = vmatpush1.msra.mxu0 0.0
      %4897 = vmatprep.subr.mxu0 0.0
      %4898 = vmatpush1.msra.mxu0 0.0
      %4899 = vmatprep.subr.mxu0 0.0
      %4900 = vmatpush1.msra.mxu0 0.0
      %4901 = vmatprep.subr.mxu0 0.0
      %4902 = vmatpush1.msra.mxu0 0.0
      %4903 = vmatprep.subr.mxu0 0.0
      %4904 = vmatpush1.msra.mxu0 0.0
      %4905 = vmatprep.subr.mxu0 0.0
      %4906 = vmatpush1.msra.mxu0 0.0
      %4907 = vmatprep.subr.mxu0 0.0
      %4908 = vmatpush1.msra.mxu0 0.0
      %4909 = vmatprep.subr.mxu0 0.0
      %4910 = vmatpush1.msra.mxu0 0.0
      %4911 = vmatprep.subr.mxu0 0.0
      %4912 = vmatpush1.msra.mxu0 0.0
      %4913 = vmatprep.subr.mxu0 0.0
      %4914 = vmatpush1.msra.mxu0 0.0
      %4915 = vmatprep.subr.mxu0 0.0
      %4916 = vmatpush1.msra.mxu0 0.0
      %4917 = vmatprep.subr.mxu0 0.0
      %4918 = vmatpush1.msra.mxu0 0.0
      %4919 = vmatprep.subr.mxu0 0.0
      %4920 = vmatpush1.msra.mxu0 0.0
      %4921 = vmatprep.subr.mxu0 0.0
      %4922 = vmatpush1.msra.mxu0 0.0
      %4923 = vmatprep.subr.mxu0 0.0
      %4924 = vmatpush1.msra.mxu0 0.0
      %4925 = vmatprep.subr.mxu0 0.0
      %4926 = vmatpush1.msra.mxu0 0.0
      %4927 = vmatprep.subr.mxu0 0.0
      %4928 = vmatpush1.msra.mxu0 0.0
      %4929 = vmatprep.subr.mxu0 0.0
      %4930 = vmatpush1.msra.mxu0 0.0
      %4931 = vmatprep.subr.mxu0 0.0
      %4932 = vmatpush1.msra.mxu0 0.0
      %4933 = vmatprep.subr.mxu0 0.0
      %4934 = vmatpush1.msra.mxu0 0.0
      %4935 = vmatprep.subr.mxu0 0.0
      %4936 = vmatpush1.msra.mxu0 0.0
      %4937 = vmatprep.subr.mxu0 0.0
      %4938 = vmatpush1.msra.mxu0 0.0
      %4939 = vmatprep.subr.mxu0 0.0
      %4940 = vmatpush1.msra.mxu0 0.0
      %4941 = vmatprep.mubr.f32.mxu0 0.0
      %4942 = vmatmul.mubr.f32.gmra.mrb[0].mxu0 %v4794
      %v4943 = vpop.f32.mrb[0].mxu0
      %v4944 = vadd.f32 0.0, %v4943
      %v4945 = vpop.f32.mrb[0].mxu0
      %4946 = vmatprep.mubr.f32.mxu0 0.0
      %4947 = vmatmul.mubr.f32.gmra.mrb[0].mxu0 %v4797
      %v4948 = vpop.f32.mrb[0].mxu0
      %v4949 = vadd.f32 0.0, %v4948
      %v4950 = vpop.f32.mrb[0].mxu0
      %4951 = vmatprep.mubr.f32.mxu0 0.0
      %4952 = vmatmul.mubr.f32.gmra.mrb[0].mxu0 %v4800
      %v4953 = vpop.f32.mrb[0].mxu0
      %v4954 = vadd.f32 0.0, %v4953
      %v4955 = vpop.f32.mrb[0].mxu0
      %4956 = vmatprep.mubr.f32.mxu0 0.0
      %4957 = vmatmul.mubr.f32.gmra.mrb[0].mxu0 %v4803
      %v4958 = vpop.f32.mrb[0].mxu0
      %v4959 = vadd.f32 0.0, %v4958
      %v4960 = vpop.f32.mrb[0].mxu0
      %4961 = vmatprep.mubr.f32.mxu0 0.0
      %4962 = vmatmul.mubr.f32.gmra.mrb[0].mxu0 %v4806
      %v4963 = vpop.f32.mrb[0].mxu0
      %v4964 = vadd.f32 0.0, %v4963
      %v4965 = vpop.f32.mrb[0].mxu0
      %4966 = vmatprep.mubr.f32.mxu0 0.0
      %4967 = vmatmul.mubr.f32.gmra.mrb[0].mxu0 %v4809
      %v4968 = vpop.f32.mrb[0].mxu0
      %v4969 = vadd.f32 0.0, %v4968
      %v4970 = vpop.f32.mrb[0].mxu0
      %4971 = vmatprep.mubr.f32.mxu0 0.0
      %4972 = vmatmul.mubr.f32.gmra.mrb[0].mxu0 %v4812
      %v4973 = vpop.f32.mrb[0].mxu0
      %v4974 = vadd.f32 0.0, %v4973
      %v4975 = vpop.f32.mrb[0].mxu0
      %4976 = vmatprep.mubr.f32.mxu0 0.0
      %4977 = vmatmul.mubr.f32.gmra.mrb[0].mxu0 %v4815
      %v4978 = vpop.f32.mrb[0].mxu0
      %v4979 = vadd.f32 0.0, %v4978
      %v4980 = vpop.f32.mrb[0].mxu0
      %4981 = vmatprep.mubr.f32.mxu0 0.0
      %4982 = vmatmul.mubr.f32.gmra.mrb[0].mxu0 %v4818
      %v4983 = vpop.f32.mrb[0].mxu0
      %v4984 = vadd.f32 0.0, %v4983
      %v4985 = vpop.f32.mrb[0].mxu0
      %4986 = vmatprep.mubr.f32.mxu0 0.0
      %4987 = vmatmul.mubr.f32.gmra.mrb[0].mxu0 %v4821
      %v4988 = vpop.f32.mrb[0].mxu0
      %v4989 = vadd.f32 0.0, %v4988
      %v4990 = vpop.f32.mrb[0].mxu0
      %4991 = vmatprep.mubr.f32.mxu0 0.0
      %4992 = vmatmul.mubr.f32.gmra.mrb[0].mxu0 %v4824
      %v4993 = vpop.f32.mrb[0].mxu0
      %v4994 = vadd.f32 0.0, %v4993
      %v4995 = vpop.f32.mrb[0].mxu0
      %4996 = vmatprep.mubr.f32.mxu0 0.0
      %4997 = vmatmul.mubr.f32.gmra.mrb[0].mxu0 %v4827
      %v4998 = vpop.f32.mrb[0].mxu0
      %v4999 = vadd.f32 0.0, %v4998
      %v5000 = vpop.f32.mrb[0].mxu0
      %5001 = vmatprep.mubr.f32.mxu0 0.0
      %5002 = vmatmul.mubr.f32.gmra.mrb[0].mxu0 %v4830
      %v5003 = vpop.f32.mrb[0].mxu0
      %v5004 = vadd.f32 0.0, %v5003
      %v5005 = vpop.f32.mrb[0].mxu0
      %5006 = vmatprep.mubr.f32.mxu0 0.0
      %5007 = vmatmul.mubr.f32.gmra.mrb[0].mxu0 %v4833
      %v5008 = vpop.f32.mrb[0].mxu0
      %v5009 = vadd.f32 0.0, %v5008
      %v5010 = vpop.f32.mrb[0].mxu0
      %5011 = vmatprep.mubr.f32.mxu0 0.0
      %5012 = vmatmul.mubr.f32.gmra.mrb[0].mxu0 %v4836
      %v5013 = vpop.f32.mrb[0].mxu0
      %v5014 = vadd.f32 0.0, %v5013
      %v5015 = vpop.f32.mrb[0].mxu0
      %5016 = vmatprep.mubr.f32.mxu0 0.0
      %5017 = vmatmul.mubr.f32.gmra.mrb[0].mxu0 %v4839
      %v5018 = vpop.f32.mrb[0].mxu0
      %v5019 = vadd.f32 0.0, %v5018
      %v5020 = vpop.f32.mrb[0].mxu0
      %5021 = vmatprep.mubr.f32.mxu0 0.0
      %5022 = vmatmul.mubr.f32.gmra.mrb[0].mxu0 %v4842
      %v5023 = vpop.f32.mrb[0].mxu0
      %v5024 = vadd.f32 0.0, %v5023
      %v5025 = vpop.f32.mrb[0].mxu0
      %5026 = vmatprep.mubr.f32.mxu0 0.0
      %5027 = vmatmul.mubr.f32.gmra.mrb[0].mxu0 %v4845
      %v5028 = vpop.f32.mrb[0].mxu0
      %v5029 = vadd.f32 0.0, %v5028
      %v5030 = vpop.f32.mrb[0].mxu0
      %5031 = vmatprep.mubr.f32.mxu0 0.0
      %5032 = vmatmul.mubr.f32.gmra.mrb[0].mxu0 %v4848
      %v5033 = vpop.f32.mrb[0].mxu0
      %v5034 = vadd.f32 0.0, %v5033
      %v5035 = vpop.f32.mrb[0].mxu0
      %5036 = vmatprep.mubr.f32.mxu0 0.0
      %5037 = vmatmul.mubr.f32.gmra.mrb[0].mxu0 %v4851
      %v5038 = vpop.f32.mrb[0].mxu0
      %v5039 = vadd.f32 0.0, %v5038
      %v5040 = vpop.f32.mrb[0].mxu0
      %5041 = vmatprep.mubr.f32.mxu0 0.0
      %5042 = vmatmul.mubr.f32.gmra.mrb[0].mxu0 %v4854
      %v5043 = vpop.f32.mrb[0].mxu0
      %v5044 = vadd.f32 0.0, %v5043
      %v5045 = vpop.f32.mrb[0].mxu0
      %5046 = vmatprep.mubr.f32.mxu0 0.0
      %5047 = vmatmul.mubr.f32.gmra.mrb[0].mxu0 %v4857
      %v5048 = vpop.f32.mrb[0].mxu0
      %v5049 = vadd.f32 0.0, %v5048
      %v5050 = vpop.f32.mrb[0].mxu0
      %5051 = vmatprep.mubr.f32.mxu0 0.0
      %5052 = vmatmul.mubr.f32.gmra.mrb[0].mxu0 %v4860
      %v5053 = vpop.f32.mrb[0].mxu0
      %v5054 = vadd.f32 0.0, %v5053
      %v5055 = vpop.f32.mrb[0].mxu0
      %5056 = vmatprep.mubr.f32.mxu0 0.0
      %5057 = vmatmul.mubr.f32.gmra.mrb[0].mxu0 %v4863
      %v5058 = vpop.f32.mrb[0].mxu0
      %v5059 = vadd.f32 0.0, %v5058
      %v5060 = vpop.f32.mrb[0].mxu0
      %5061 = vmatprep.mubr.f32.mxu0 0.0
      %5062 = vmatmul.mubr.f32.gmra.mrb[0].mxu0 %v4866
      %v5063 = vpop.f32.mrb[0].mxu0
      %v5064 = vadd.f32 0.0, %v5063
      %v5065 = vpop.f32.mrb[0].mxu0
      %5066 = vmatprep.mubr.f32.mxu0 0.0
      %5067 = vmatmul.mubr.f32.gmra.mrb[0].mxu0 %v4869
      %v5068 = vpop.f32.mrb[0].mxu0
      %v5069 = vadd.f32 0.0, %v5068
      %v5070 = vpop.f32.mrb[0].mxu0
      %5071 = vmatprep.mubr.f32.mxu0 0.0
      %5072 = vmatmul.mubr.f32.gmra.mrb[0].mxu0 %v4872
      %v5073 = vpop.f32.mrb[0].mxu0
      %v5074 = vadd.f32 0.0, %v5073
      %v5075 = vpop.f32.mrb[0].mxu0
      %5076 = vmatprep.mubr.f32.mxu0 0.0
      %5077 = vmatmul.mubr.f32.gmra.mrb[0].mxu0 %v4875
      %v5078 = vpop.f32.mrb[0].mxu0
      %v5079 = vadd.f32 0.0, %v5078
      %v5080 = vpop.f32.mrb[0].mxu0
      %5081 = vdwg.mxu0
      %v5082 = vadd.f32 %v4732, %v4944
      %v5083 = vadd.f32 %v4733, %v4949
      %v5084 = vadd.f32 %v4734, %v4954
      %v5085 = vadd.f32 %v4735, %v4959
      %v5086 = vadd.f32 %v4736, %v4964
      %v5087 = vadd.f32 %v4737, %v4969
      %v5088 = vadd.f32 %v4738, %v4974
      %v5089 = vadd.f32 %v4739, %v4979
      %v5090 = vadd.f32 %v4740, %v4984
      %v5091 = vadd.f32 %v4741, %v4989
      %v5092 = vadd.f32 %v4742, %v4994
      %v5093 = vadd.f32 %v4743, %v4999
      %v5094 = vadd.f32 %v4744, %v5004
      %v5095 = vadd.f32 %v4745, %v5009
      %v5096 = vadd.f32 %v4746, %v5014
      %v5097 = vadd.f32 %v4747, %v5019
      %v5098 = vadd.f32 %v4748, %v5024
      %v5099 = vadd.f32 %v4749, %v5029
      %v5100 = vadd.f32 %v4750, %v5034
      %v5101 = vadd.f32 %v4751, %v5039
      %v5102 = vadd.f32 %v4752, %v5044
      %v5103 = vadd.f32 %v4753, %v5049
      %v5104 = vadd.f32 %v4754, %v5054
      %v5105 = vadd.f32 %v4755, %v5059
      %v5106 = vadd.f32 %v4756, %v5064
      %v5107 = vadd.f32 %v4757, %v5069
      %v5108 = vadd.f32 %v4758, %v5074
      %v5109 = vadd.f32 %v4759, %v5079
      %v5110 = vld [vmem:[#allocation2 + $0x12] sm:$0xff]
      %v5111 = vld [vmem:[#allocation2 + $0x1a] sm:$0xff]
      %v5112 = vld [vmem:[#allocation2 + $0x22] sm:$0xff]
      %v5113 = vld [vmem:[#allocation2 + $0x2a] sm:$0xff]
      %v5114 = vld [vmem:[#allocation2 + $0x32] sm:$0xff]
      %v5115 = vld [vmem:[#allocation2 + $0x3a] sm:$0xff]
      %v5116 = vld [vmem:[#allocation2 + $0x42] sm:$0xff]
      %v5117 = vld [vmem:[#allocation2 + $0x4a] sm:$0xff]
      %v5118 = vld [vmem:[#allocation2 + $0x52] sm:$0xff]
      %v5119 = vld [vmem:[#allocation2 + $0x5a] sm:$0xff]
      %v5120 = vld [vmem:[#allocation2 + $0x62] sm:$0xff]
      %v5121 = vld [vmem:[#allocation2 + $0x6a] sm:$0xff]
      %v5122 = vld [vmem:[#allocation2 + $0x72] sm:$0xff]
      %v5123 = vld [vmem:[#allocation2 + $0x7a] sm:$0xff]
      %v5124 = vld [vmem:[#allocation2 + $0x82] sm:$0xff]
      %v5125 = vld [vmem:[#allocation2 + $0x8a] sm:$0xff]
      %v5126 = vld [vmem:[#allocation2 + $0x92] sm:$0xff]
      %v5127 = vld [vmem:[#allocation2 + $0x9a] sm:$0xff]
      %v5128 = vld [vmem:[#allocation2 + $0xa2] sm:$0xff]
      %v5129 = vld [vmem:[#allocation2 + $0xaa] sm:$0xff]
      %v5130 = vld [vmem:[#allocation2 + $0xb2] sm:$0xff]
      %v5131 = vld [vmem:[#allocation2 + $0xba] sm:$0xff]
      %v5132 = vld [vmem:[#allocation2 + $0xc2] sm:$0xff]
      %v5133 = vld [vmem:[#allocation2 + $0xca] sm:$0xff]
      %v5134 = vld [vmem:[#allocation2 + $0xd2] sm:$0xff]
      %v5135 = vld [vmem:[#allocation2 + $0xda] sm:$0xff]
      %v5136 = vld [vmem:[#allocation2 + $0xe2] sm:$0xff]
      %v5137 = vld [vmem:[#allocation2 + $0xea] sm:$0xff]
      %s5138 = scalar_lea.vmem %s3, 160
      %v5139 = vld [vmem:[%s5138] sm:$0xff]
      %v5140 = vld [vmem:[%s5138 + $0x8] sm:$0xff]
      %v5141 = vld [vmem:[%s5138 + $0x10] sm:$0xff]
      %v5142 = vld [vmem:[%s5138 + $0x18] sm:$0xff]
      %v5144 = vsel %vm3383, %v5110, 0
      %v5147 = vsel %vm3383, %v5111, 0
      %v5150 = vsel %vm3383, %v5112, 0
      %v5153 = vsel %vm3383, %v5113, 0
      %v5156 = vsel %vm3383, %v5114, 0
      %v5159 = vsel %vm3383, %v5115, 0
      %v5162 = vsel %vm3383, %v5116, 0
      %v5165 = vsel %vm3383, %v5117, 0
      %v5168 = vsel %vm3383, %v5118, 0
      %v5171 = vsel %vm3383, %v5119, 0
      %v5174 = vsel %vm3383, %v5120, 0
      %v5177 = vsel %vm3383, %v5121, 0
      %v5180 = vsel %vm3383, %v5122, 0
      %v5183 = vsel %vm3383, %v5123, 0
      %v5186 = vsel %vm3383, %v5124, 0
      %v5189 = vsel %vm3383, %v5125, 0
      %v5192 = vsel %vm3383, %v5126, 0
      %v5195 = vsel %vm3383, %v5127, 0
      %v5198 = vsel %vm3383, %v5128, 0
      %v5201 = vsel %vm3383, %v5129, 0
      %v5204 = vsel %vm3383, %v5130, 0
      %v5207 = vsel %vm3383, %v5131, 0
      %v5210 = vsel %vm3383, %v5132, 0
      %v5213 = vsel %vm3383, %v5133, 0
      %v5216 = vsel %vm3383, %v5134, 0
      %v5219 = vsel %vm3383, %v5135, 0
      %v5222 = vsel %vm3383, %v5136, 0
      %v5225 = vsel %vm3383, %v5137, 0
      %5227 = vmatprep.subr.mxu0 0.0
      %5228 = vmatpush1.msra.mxu0 %v5139
      %5229 = vmatprep.subr.mxu0 0.0
      %5230 = vmatpush1.msra.mxu0 %v5140
      %5231 = vmatprep.subr.mxu0 0.0
      %5232 = vmatpush1.msra.mxu0 %v5141
      %5233 = vmatprep.subr.mxu0 0.0
      %5234 = vmatpush1.msra.mxu0 %v5142
      %5235 = vmatprep.subr.mxu0 0.0
      %5236 = vmatpush1.msra.mxu0 0.0
      %5237 = vmatprep.subr.mxu0 0.0
      %5238 = vmatpush1.msra.mxu0 0.0
      %5239 = vmatprep.subr.mxu0 0.0
      %5240 = vmatpush1.msra.mxu0 0.0
      %5241 = vmatprep.subr.mxu0 0.0
      %5242 = vmatpush1.msra.mxu0 0.0
      %5243 = vmatprep.subr.mxu0 0.0
      %5244 = vmatpush1.msra.mxu0 0.0
      %5245 = vmatprep.subr.mxu0 0.0
      %5246 = vmatpush1.msra.mxu0 0.0
      %5247 = vmatprep.subr.mxu0 0.0
      %5248 = vmatpush1.msra.mxu0 0.0
      %5249 = vmatprep.subr.mxu0 0.0
      %5250 = vmatpush1.msra.mxu0 0.0
      %5251 = vmatprep.subr.mxu0 0.0
      %5252 = vmatpush1.msra.mxu0 0.0
      %5253 = vmatprep.subr.mxu0 0.0
      %5254 = vmatpush1.msra.mxu0 0.0
      %5255 = vmatprep.subr.mxu0 0.0
      %5256 = vmatpush1.msra.mxu0 0.0
      %5257 = vmatprep.subr.mxu0 0.0
      %5258 = vmatpush1.msra.mxu0 0.0
      %5259 = vmatprep.subr.mxu0 0.0
      %5260 = vmatpush1.msra.mxu0 0.0
      %5261 = vmatprep.subr.mxu0 0.0
      %5262 = vmatpush1.msra.mxu0 0.0
      %5263 = vmatprep.subr.mxu0 0.0
      %5264 = vmatpush1.msra.mxu0 0.0
      %5265 = vmatprep.subr.mxu0 0.0
      %5266 = vmatpush1.msra.mxu0 0.0
      %5267 = vmatprep.subr.mxu0 0.0
      %5268 = vmatpush1.msra.mxu0 0.0
      %5269 = vmatprep.subr.mxu0 0.0
      %5270 = vmatpush1.msra.mxu0 0.0
      %5271 = vmatprep.subr.mxu0 0.0
      %5272 = vmatpush1.msra.mxu0 0.0
      %5273 = vmatprep.subr.mxu0 0.0
      %5274 = vmatpush1.msra.mxu0 0.0
      %5275 = vmatprep.subr.mxu0 0.0
      %5276 = vmatpush1.msra.mxu0 0.0
      %5277 = vmatprep.subr.mxu0 0.0
      %5278 = vmatpush1.msra.mxu0 0.0
      %5279 = vmatprep.subr.mxu0 0.0
      %5280 = vmatpush1.msra.mxu0 0.0
      %5281 = vmatprep.subr.mxu0 0.0
      %5282 = vmatpush1.msra.mxu0 0.0
      %5283 = vmatprep.subr.mxu0 0.0
      %5284 = vmatpush1.msra.mxu0 0.0
      %5285 = vmatprep.subr.mxu0 0.0
      %5286 = vmatpush1.msra.mxu0 0.0
      %5287 = vmatprep.subr.mxu0 0.0
      %5288 = vmatpush1.msra.mxu0 0.0
      %5289 = vmatprep.subr.mxu0 0.0
      %5290 = vmatpush1.msra.mxu0 0.0
      %5291 = vmatprep.mubr.f32.mxu0 0.0
      %5292 = vmatmul.mubr.f32.gmra.mrb[0].mxu0 %v5144
      %v5293 = vpop.f32.mrb[0].mxu0
      %v5294 = vadd.f32 0.0, %v5293
      %v5295 = vpop.f32.mrb[0].mxu0
      %5296 = vmatprep.mubr.f32.mxu0 0.0
      %5297 = vmatmul.mubr.f32.gmra.mrb[0].mxu0 %v5147
      %v5298 = vpop.f32.mrb[0].mxu0
      %v5299 = vadd.f32 0.0, %v5298
      %v5300 = vpop.f32.mrb[0].mxu0
      %5301 = vmatprep.mubr.f32.mxu0 0.0
      %5302 = vmatmul.mubr.f32.gmra.mrb[0].mxu0 %v5150
      %v5303 = vpop.f32.mrb[0].mxu0
      %v5304 = vadd.f32 0.0, %v5303
      %v5305 = vpop.f32.mrb[0].mxu0
      %5306 = vmatprep.mubr.f32.mxu0 0.0
      %5307 = vmatmul.mubr.f32.gmra.mrb[0].mxu0 %v5153
      %v5308 = vpop.f32.mrb[0].mxu0
      %v5309 = vadd.f32 0.0, %v5308
      %v5310 = vpop.f32.mrb[0].mxu0
      %5311 = vmatprep.mubr.f32.mxu0 0.0
      %5312 = vmatmul.mubr.f32.gmra.mrb[0].mxu0 %v5156
      %v5313 = vpop.f32.mrb[0].mxu0
      %v5314 = vadd.f32 0.0, %v5313
      %v5315 = vpop.f32.mrb[0].mxu0
      %5316 = vmatprep.mubr.f32.mxu0 0.0
      %5317 = vmatmul.mubr.f32.gmra.mrb[0].mxu0 %v5159
      %v5318 = vpop.f32.mrb[0].mxu0
      %v5319 = vadd.f32 0.0, %v5318
      %v5320 = vpop.f32.mrb[0].mxu0
      %5321 = vmatprep.mubr.f32.mxu0 0.0
      %5322 = vmatmul.mubr.f32.gmra.mrb[0].mxu0 %v5162
      %v5323 = vpop.f32.mrb[0].mxu0
      %v5324 = vadd.f32 0.0, %v5323
      %v5325 = vpop.f32.mrb[0].mxu0
      %5326 = vmatprep.mubr.f32.mxu0 0.0
      %5327 = vmatmul.mubr.f32.gmra.mrb[0].mxu0 %v5165
      %v5328 = vpop.f32.mrb[0].mxu0
      %v5329 = vadd.f32 0.0, %v5328
      %v5330 = vpop.f32.mrb[0].mxu0
      %5331 = vmatprep.mubr.f32.mxu0 0.0
      %5332 = vmatmul.mubr.f32.gmra.mrb[0].mxu0 %v5168
      %v5333 = vpop.f32.mrb[0].mxu0
      %v5334 = vadd.f32 0.0, %v5333
      %v5335 = vpop.f32.mrb[0].mxu0
      %5336 = vmatprep.mubr.f32.mxu0 0.0
      %5337 = vmatmul.mubr.f32.gmra.mrb[0].mxu0 %v5171
      %v5338 = vpop.f32.mrb[0].mxu0
      %v5339 = vadd.f32 0.0, %v5338
      %v5340 = vpop.f32.mrb[0].mxu0
      %5341 = vmatprep.mubr.f32.mxu0 0.0
      %5342 = vmatmul.mubr.f32.gmra.mrb[0].mxu0 %v5174
      %v5343 = vpop.f32.mrb[0].mxu0
      %v5344 = vadd.f32 0.0, %v5343
      %v5345 = vpop.f32.mrb[0].mxu0
      %5346 = vmatprep.mubr.f32.mxu0 0.0
      %5347 = vmatmul.mubr.f32.gmra.mrb[0].mxu0 %v5177
      %v5348 = vpop.f32.mrb[0].mxu0
      %v5349 = vadd.f32 0.0, %v5348
      %v5350 = vpop.f32.mrb[0].mxu0
      %5351 = vmatprep.mubr.f32.mxu0 0.0
      %5352 = vmatmul.mubr.f32.gmra.mrb[0].mxu0 %v5180
      %v5353 = vpop.f32.mrb[0].mxu0
      %v5354 = vadd.f32 0.0, %v5353
      %v5355 = vpop.f32.mrb[0].mxu0
      %5356 = vmatprep.mubr.f32.mxu0 0.0
      %5357 = vmatmul.mubr.f32.gmra.mrb[0].mxu0 %v5183
      %v5358 = vpop.f32.mrb[0].mxu0
      %v5359 = vadd.f32 0.0, %v5358
      %v5360 = vpop.f32.mrb[0].mxu0
      %5361 = vmatprep.mubr.f32.mxu0 0.0
      %5362 = vmatmul.mubr.f32.gmra.mrb[0].mxu0 %v5186
      %v5363 = vpop.f32.mrb[0].mxu0
      %v5364 = vadd.f32 0.0, %v5363
      %v5365 = vpop.f32.mrb[0].mxu0
      %5366 = vmatprep.mubr.f32.mxu0 0.0
      %5367 = vmatmul.mubr.f32.gmra.mrb[0].mxu0 %v5189
      %v5368 = vpop.f32.mrb[0].mxu0
      %v5369 = vadd.f32 0.0, %v5368
      %v5370 = vpop.f32.mrb[0].mxu0
      %5371 = vmatprep.mubr.f32.mxu0 0.0
      %5372 = vmatmul.mubr.f32.gmra.mrb[0].mxu0 %v5192
      %v5373 = vpop.f32.mrb[0].mxu0
      %v5374 = vadd.f32 0.0, %v5373
      %v5375 = vpop.f32.mrb[0].mxu0
      %5376 = vmatprep.mubr.f32.mxu0 0.0
      %5377 = vmatmul.mubr.f32.gmra.mrb[0].mxu0 %v5195
      %v5378 = vpop.f32.mrb[0].mxu0
      %v5379 = vadd.f32 0.0, %v5378
      %v5380 = vpop.f32.mrb[0].mxu0
      %5381 = vmatprep.mubr.f32.mxu0 0.0
      %5382 = vmatmul.mubr.f32.gmra.mrb[0].mxu0 %v5198
      %v5383 = vpop.f32.mrb[0].mxu0
      %v5384 = vadd.f32 0.0, %v5383
      %v5385 = vpop.f32.mrb[0].mxu0
      %5386 = vmatprep.mubr.f32.mxu0 0.0
      %5387 = vmatmul.mubr.f32.gmra.mrb[0].mxu0 %v5201
      %v5388 = vpop.f32.mrb[0].mxu0
      %v5389 = vadd.f32 0.0, %v5388
      %v5390 = vpop.f32.mrb[0].mxu0
      %5391 = vmatprep.mubr.f32.mxu0 0.0
      %5392 = vmatmul.mubr.f32.gmra.mrb[0].mxu0 %v5204
      %v5393 = vpop.f32.mrb[0].mxu0
      %v5394 = vadd.f32 0.0, %v5393
      %v5395 = vpop.f32.mrb[0].mxu0
      %5396 = vmatprep.mubr.f32.mxu0 0.0
      %5397 = vmatmul.mubr.f32.gmra.mrb[0].mxu0 %v5207
      %v5398 = vpop.f32.mrb[0].mxu0
      %v5399 = vadd.f32 0.0, %v5398
      %v5400 = vpop.f32.mrb[0].mxu0
      %5401 = vmatprep.mubr.f32.mxu0 0.0
      %5402 = vmatmul.mubr.f32.gmra.mrb[0].mxu0 %v5210
      %v5403 = vpop.f32.mrb[0].mxu0
      %v5404 = vadd.f32 0.0, %v5403
      %v5405 = vpop.f32.mrb[0].mxu0
      %5406 = vmatprep.mubr.f32.mxu0 0.0
      %5407 = vmatmul.mubr.f32.gmra.mrb[0].mxu0 %v5213
      %v5408 = vpop.f32.mrb[0].mxu0
      %v5409 = vadd.f32 0.0, %v5408
      %v5410 = vpop.f32.mrb[0].mxu0
      %5411 = vmatprep.mubr.f32.mxu0 0.0
      %5412 = vmatmul.mubr.f32.gmra.mrb[0].mxu0 %v5216
      %v5413 = vpop.f32.mrb[0].mxu0
      %v5414 = vadd.f32 0.0, %v5413
      %v5415 = vpop.f32.mrb[0].mxu0
      %5416 = vmatprep.mubr.f32.mxu0 0.0
      %5417 = vmatmul.mubr.f32.gmra.mrb[0].mxu0 %v5219
      %v5418 = vpop.f32.mrb[0].mxu0
      %v5419 = vadd.f32 0.0, %v5418
      %v5420 = vpop.f32.mrb[0].mxu0
      %5421 = vmatprep.mubr.f32.mxu0 0.0
      %5422 = vmatmul.mubr.f32.gmra.mrb[0].mxu0 %v5222
      %v5423 = vpop.f32.mrb[0].mxu0
      %v5424 = vadd.f32 0.0, %v5423
      %v5425 = vpop.f32.mrb[0].mxu0
      %5426 = vmatprep.mubr.f32.mxu0 0.0
      %5427 = vmatmul.mubr.f32.gmra.mrb[0].mxu0 %v5225
      %v5428 = vpop.f32.mrb[0].mxu0
      %v5429 = vadd.f32 0.0, %v5428
      %v5430 = vpop.f32.mrb[0].mxu0
      %5431 = vdwg.mxu0
      %v5432 = vadd.f32 %v5082, %v5294
      %v5433 = vadd.f32 %v5083, %v5299
      %v5434 = vadd.f32 %v5084, %v5304
      %v5435 = vadd.f32 %v5085, %v5309
      %v5436 = vadd.f32 %v5086, %v5314
      %v5437 = vadd.f32 %v5087, %v5319
      %v5438 = vadd.f32 %v5088, %v5324
      %v5439 = vadd.f32 %v5089, %v5329
      %v5440 = vadd.f32 %v5090, %v5334
      %v5441 = vadd.f32 %v5091, %v5339
      %v5442 = vadd.f32 %v5092, %v5344
      %v5443 = vadd.f32 %v5093, %v5349
      %v5444 = vadd.f32 %v5094, %v5354
      %v5445 = vadd.f32 %v5095, %v5359
      %v5446 = vadd.f32 %v5096, %v5364
      %v5447 = vadd.f32 %v5097, %v5369
      %v5448 = vadd.f32 %v5098, %v5374
      %v5449 = vadd.f32 %v5099, %v5379
      %v5450 = vadd.f32 %v5100, %v5384
      %v5451 = vadd.f32 %v5101, %v5389
      %v5452 = vadd.f32 %v5102, %v5394
      %v5453 = vadd.f32 %v5103, %v5399
      %v5454 = vadd.f32 %v5104, %v5404
      %v5455 = vadd.f32 %v5105, %v5409
      %v5456 = vadd.f32 %v5106, %v5414
      %v5457 = vadd.f32 %v5107, %v5419
      %v5458 = vadd.f32 %v5108, %v5424
      %v5459 = vadd.f32 %v5109, %v5429
      %v5460 = vld [vmem:[#allocation2 + $0x20] sm:$0xff]
      %v5461 = vld [vmem:[#allocation2 + $0x28] sm:$0xff]
      %v5462 = vld [vmem:[#allocation2 + $0x30] sm:$0xff]
      %v5463 = vld [vmem:[#allocation2 + $0x38] sm:$0xff]
      %v5464 = vld [vmem:[#allocation2 + $0x40] sm:$0xff]
      %v5465 = vld [vmem:[#allocation2 + $0x48] sm:$0xff]
      %v5466 = vld [vmem:[#allocation2 + $0x50] sm:$0xff]
      %v5467 = vld [vmem:[#allocation2 + $0x58] sm:$0xff]
      %v5468 = vld [vmem:[#allocation2 + $0x60] sm:$0xff]
      %v5469 = vld [vmem:[#allocation2 + $0x68] sm:$0xff]
      %v5470 = vld [vmem:[#allocation2 + $0x70] sm:$0xff]
      %v5471 = vld [vmem:[#allocation2 + $0x78] sm:$0xff]
      %v5472 = vld [vmem:[#allocation2 + $0x80] sm:$0xff]
      %v5473 = vld [vmem:[#allocation2 + $0x88] sm:$0xff]
      %v5474 = vld [vmem:[#allocation2 + $0x90] sm:$0xff]
      %v5475 = vld [vmem:[#allocation2 + $0x98] sm:$0xff]
      %v5476 = vld [vmem:[#allocation2 + $0xa0] sm:$0xff]
      %v5477 = vld [vmem:[#allocation2 + $0xa8] sm:$0xff]
      %v5478 = vld [vmem:[#allocation2 + $0xb0] sm:$0xff]
      %v5479 = vld [vmem:[#allocation2 + $0xb8] sm:$0xff]
      %v5480 = vld [vmem:[#allocation2 + $0xc0] sm:$0xff]
      %v5481 = vld [vmem:[#allocation2 + $0xc8] sm:$0xff]
      %v5482 = vld [vmem:[#allocation2 + $0xd0] sm:$0xff]
      %v5483 = vld [vmem:[#allocation2 + $0xd8] sm:$0xff]
      %v5484 = vld [vmem:[#allocation2 + $0xe0] sm:$0xff]
      %v5485 = vld [vmem:[#allocation2 + $0xe8] sm:$0xff]
      %v5486 = vld [vmem:[#allocation2 + $0xf0] sm:$0xff]
      %v5487 = vld [vmem:[#allocation2 + $0xf8] sm:$0xff]
      %s5488 = scalar_lea.vmem %s3, 192
      %v5489 = vld [vmem:[%s5488] sm:$0xff]
      %v5490 = vld [vmem:[%s5488 + $0x8] sm:$0xff]
      %v5491 = vld [vmem:[%s5488 + $0x10] sm:$0xff]
      %v5492 = vld [vmem:[%s5488 + $0x18] sm:$0xff]
      %v5494 = vsel %vm3383, %v5460, 0
      %v5497 = vsel %vm3383, %v5461, 0
      %v5500 = vsel %vm3383, %v5462, 0
      %v5503 = vsel %vm3383, %v5463, 0
      %v5506 = vsel %vm3383, %v5464, 0
      %v5509 = vsel %vm3383, %v5465, 0
      %v5512 = vsel %vm3383, %v5466, 0
      %v5515 = vsel %vm3383, %v5467, 0
      %v5518 = vsel %vm3383, %v5468, 0
      %v5521 = vsel %vm3383, %v5469, 0
      %v5524 = vsel %vm3383, %v5470, 0
      %v5527 = vsel %vm3383, %v5471, 0
      %v5530 = vsel %vm3383, %v5472, 0
      %v5533 = vsel %vm3383, %v5473, 0
      %v5536 = vsel %vm3383, %v5474, 0
      %v5539 = vsel %vm3383, %v5475, 0
      %v5542 = vsel %vm3383, %v5476, 0
      %v5545 = vsel %vm3383, %v5477, 0
      %v5548 = vsel %vm3383, %v5478, 0
      %v5551 = vsel %vm3383, %v5479, 0
      %v5554 = vsel %vm3383, %v5480, 0
      %v5557 = vsel %vm3383, %v5481, 0
      %v5560 = vsel %vm3383, %v5482, 0
      %v5563 = vsel %vm3383, %v5483, 0
      %v5566 = vsel %vm3383, %v5484, 0
      %v5569 = vsel %vm3383, %v5485, 0
      %v5572 = vsel %vm3383, %v5486, 0
      %v5575 = vsel %vm3383, %v5487, 0
      %5577 = vmatprep.subr.mxu0 0.0
      %5578 = vmatpush1.msra.mxu0 %v5489
      %5579 = vmatprep.subr.mxu0 0.0
      %5580 = vmatpush1.msra.mxu0 %v5490
      %5581 = vmatprep.subr.mxu0 0.0
      %5582 = vmatpush1.msra.mxu0 %v5491
      %5583 = vmatprep.subr.mxu0 0.0
      %5584 = vmatpush1.msra.mxu0 %v5492
      %5585 = vmatprep.subr.mxu0 0.0
      %5586 = vmatpush1.msra.mxu0 0.0
      %5587 = vmatprep.subr.mxu0 0.0
      %5588 = vmatpush1.msra.mxu0 0.0
      %5589 = vmatprep.subr.mxu0 0.0
      %5590 = vmatpush1.msra.mxu0 0.0
      %5591 = vmatprep.subr.mxu0 0.0
      %5592 = vmatpush1.msra.mxu0 0.0
      %5593 = vmatprep.subr.mxu0 0.0
      %5594 = vmatpush1.msra.mxu0 0.0
      %5595 = vmatprep.subr.mxu0 0.0
      %5596 = vmatpush1.msra.mxu0 0.0
      %5597 = vmatprep.subr.mxu0 0.0
      %5598 = vmatpush1.msra.mxu0 0.0
      %5599 = vmatprep.subr.mxu0 0.0
      %5600 = vmatpush1.msra.mxu0 0.0
      %5601 = vmatprep.subr.mxu0 0.0
      %5602 = vmatpush1.msra.mxu0 0.0
      %5603 = vmatprep.subr.mxu0 0.0
      %5604 = vmatpush1.msra.mxu0 0.0
      %5605 = vmatprep.subr.mxu0 0.0
      %5606 = vmatpush1.msra.mxu0 0.0
      %5607 = vmatprep.subr.mxu0 0.0
      %5608 = vmatpush1.msra.mxu0 0.0
      %5609 = vmatprep.subr.mxu0 0.0
      %5610 = vmatpush1.msra.mxu0 0.0
      %5611 = vmatprep.subr.mxu0 0.0
      %5612 = vmatpush1.msra.mxu0 0.0
      %5613 = vmatprep.subr.mxu0 0.0
      %5614 = vmatpush1.msra.mxu0 0.0
      %5615 = vmatprep.subr.mxu0 0.0
      %5616 = vmatpush1.msra.mxu0 0.0
      %5617 = vmatprep.subr.mxu0 0.0
      %5618 = vmatpush1.msra.mxu0 0.0
      %5619 = vmatprep.subr.mxu0 0.0
      %5620 = vmatpush1.msra.mxu0 0.0
      %5621 = vmatprep.subr.mxu0 0.0
      %5622 = vmatpush1.msra.mxu0 0.0
      %5623 = vmatprep.subr.mxu0 0.0
      %5624 = vmatpush1.msra.mxu0 0.0
      %5625 = vmatprep.subr.mxu0 0.0
      %5626 = vmatpush1.msra.mxu0 0.0
      %5627 = vmatprep.subr.mxu0 0.0
      %5628 = vmatpush1.msra.mxu0 0.0
      %5629 = vmatprep.subr.mxu0 0.0
      %5630 = vmatpush1.msra.mxu0 0.0
      %5631 = vmatprep.subr.mxu0 0.0
      %5632 = vmatpush1.msra.mxu0 0.0
      %5633 = vmatprep.subr.mxu0 0.0
      %5634 = vmatpush1.msra.mxu0 0.0
      %5635 = vmatprep.subr.mxu0 0.0
      %5636 = vmatpush1.msra.mxu0 0.0
      %5637 = vmatprep.subr.mxu0 0.0
      %5638 = vmatpush1.msra.mxu0 0.0
      %5639 = vmatprep.subr.mxu0 0.0
      %5640 = vmatpush1.msra.mxu0 0.0
      %5641 = vmatprep.mubr.f32.mxu0 0.0
      %5642 = vmatmul.mubr.f32.gmra.mrb[0].mxu0 %v5494
      %v5643 = vpop.f32.mrb[0].mxu0
      %v5644 = vadd.f32 0.0, %v5643
      %v5645 = vpop.f32.mrb[0].mxu0
      %5646 = vmatprep.mubr.f32.mxu0 0.0
      %5647 = vmatmul.mubr.f32.gmra.mrb[0].mxu0 %v5497
      %v5648 = vpop.f32.mrb[0].mxu0
      %v5649 = vadd.f32 0.0, %v5648
      %v5650 = vpop.f32.mrb[0].mxu0
      %5651 = vmatprep.mubr.f32.mxu0 0.0
      %5652 = vmatmul.mubr.f32.gmra.mrb[0].mxu0 %v5500
      %v5653 = vpop.f32.mrb[0].mxu0
      %v5654 = vadd.f32 0.0, %v5653
      %v5655 = vpop.f32.mrb[0].mxu0
      %5656 = vmatprep.mubr.f32.mxu0 0.0
      %5657 = vmatmul.mubr.f32.gmra.mrb[0].mxu0 %v5503
      %v5658 = vpop.f32.mrb[0].mxu0
      %v5659 = vadd.f32 0.0, %v5658
      %v5660 = vpop.f32.mrb[0].mxu0
      %5661 = vmatprep.mubr.f32.mxu0 0.0
      %5662 = vmatmul.mubr.f32.gmra.mrb[0].mxu0 %v5506
      %v5663 = vpop.f32.mrb[0].mxu0
      %v5664 = vadd.f32 0.0, %v5663
      %v5665 = vpop.f32.mrb[0].mxu0
      %5666 = vmatprep.mubr.f32.mxu0 0.0
      %5667 = vmatmul.mubr.f32.gmra.mrb[0].mxu0 %v5509
      %v5668 = vpop.f32.mrb[0].mxu0
      %v5669 = vadd.f32 0.0, %v5668
      %v5670 = vpop.f32.mrb[0].mxu0
      %5671 = vmatprep.mubr.f32.mxu0 0.0
      %5672 = vmatmul.mubr.f32.gmra.mrb[0].mxu0 %v5512
      %v5673 = vpop.f32.mrb[0].mxu0
      %v5674 = vadd.f32 0.0, %v5673
      %v5675 = vpop.f32.mrb[0].mxu0
      %5676 = vmatprep.mubr.f32.mxu0 0.0
      %5677 = vmatmul.mubr.f32.gmra.mrb[0].mxu0 %v5515
      %v5678 = vpop.f32.mrb[0].mxu0
      %v5679 = vadd.f32 0.0, %v5678
      %v5680 = vpop.f32.mrb[0].mxu0
      %5681 = vmatprep.mubr.f32.mxu0 0.0
      %5682 = vmatmul.mubr.f32.gmra.mrb[0].mxu0 %v5518
      %v5683 = vpop.f32.mrb[0].mxu0
      %v5684 = vadd.f32 0.0, %v5683
      %v5685 = vpop.f32.mrb[0].mxu0
      %5686 = vmatprep.mubr.f32.mxu0 0.0
      %5687 = vmatmul.mubr.f32.gmra.mrb[0].mxu0 %v5521
      %v5688 = vpop.f32.mrb[0].mxu0
      %v5689 = vadd.f32 0.0, %v5688
      %v5690 = vpop.f32.mrb[0].mxu0
      %5691 = vmatprep.mubr.f32.mxu0 0.0
      %5692 = vmatmul.mubr.f32.gmra.mrb[0].mxu0 %v5524
      %v5693 = vpop.f32.mrb[0].mxu0
      %v5694 = vadd.f32 0.0, %v5693
      %v5695 = vpop.f32.mrb[0].mxu0
      %5696 = vmatprep.mubr.f32.mxu0 0.0
      %5697 = vmatmul.mubr.f32.gmra.mrb[0].mxu0 %v5527
      %v5698 = vpop.f32.mrb[0].mxu0
      %v5699 = vadd.f32 0.0, %v5698
      %v5700 = vpop.f32.mrb[0].mxu0
      %5701 = vmatprep.mubr.f32.mxu0 0.0
      %5702 = vmatmul.mubr.f32.gmra.mrb[0].mxu0 %v5530
      %v5703 = vpop.f32.mrb[0].mxu0
      %v5704 = vadd.f32 0.0, %v5703
      %v5705 = vpop.f32.mrb[0].mxu0
      %5706 = vmatprep.mubr.f32.mxu0 0.0
      %5707 = vmatmul.mubr.f32.gmra.mrb[0].mxu0 %v5533
      %v5708 = vpop.f32.mrb[0].mxu0
      %v5709 = vadd.f32 0.0, %v5708
      %v5710 = vpop.f32.mrb[0].mxu0
      %5711 = vmatprep.mubr.f32.mxu0 0.0
      %5712 = vmatmul.mubr.f32.gmra.mrb[0].mxu0 %v5536
      %v5713 = vpop.f32.mrb[0].mxu0
      %v5714 = vadd.f32 0.0, %v5713
      %v5715 = vpop.f32.mrb[0].mxu0
      %5716 = vmatprep.mubr.f32.mxu0 0.0
      %5717 = vmatmul.mubr.f32.gmra.mrb[0].mxu0 %v5539
      %v5718 = vpop.f32.mrb[0].mxu0
      %v5719 = vadd.f32 0.0, %v5718
      %v5720 = vpop.f32.mrb[0].mxu0
      %5721 = vmatprep.mubr.f32.mxu0 0.0
      %5722 = vmatmul.mubr.f32.gmra.mrb[0].mxu0 %v5542
      %v5723 = vpop.f32.mrb[0].mxu0
      %v5724 = vadd.f32 0.0, %v5723
      %v5725 = vpop.f32.mrb[0].mxu0
      %5726 = vmatprep.mubr.f32.mxu0 0.0
      %5727 = vmatmul.mubr.f32.gmra.mrb[0].mxu0 %v5545
      %v5728 = vpop.f32.mrb[0].mxu0
      %v5729 = vadd.f32 0.0, %v5728
      %v5730 = vpop.f32.mrb[0].mxu0
      %5731 = vmatprep.mubr.f32.mxu0 0.0
      %5732 = vmatmul.mubr.f32.gmra.mrb[0].mxu0 %v5548
      %v5733 = vpop.f32.mrb[0].mxu0
      %v5734 = vadd.f32 0.0, %v5733
      %v5735 = vpop.f32.mrb[0].mxu0
      %5736 = vmatprep.mubr.f32.mxu0 0.0
      %5737 = vmatmul.mubr.f32.gmra.mrb[0].mxu0 %v5551
      %v5738 = vpop.f32.mrb[0].mxu0
      %v5739 = vadd.f32 0.0, %v5738
      %v5740 = vpop.f32.mrb[0].mxu0
      %5741 = vmatprep.mubr.f32.mxu0 0.0
      %5742 = vmatmul.mubr.f32.gmra.mrb[0].mxu0 %v5554
      %v5743 = vpop.f32.mrb[0].mxu0
      %v5744 = vadd.f32 0.0, %v5743
      %v5745 = vpop.f32.mrb[0].mxu0
      %5746 = vmatprep.mubr.f32.mxu0 0.0
      %5747 = vmatmul.mubr.f32.gmra.mrb[0].mxu0 %v5557
      %v5748 = vpop.f32.mrb[0].mxu0
      %v5749 = vadd.f32 0.0, %v5748
      %v5750 = vpop.f32.mrb[0].mxu0
      %5751 = vmatprep.mubr.f32.mxu0 0.0
      %5752 = vmatmul.mubr.f32.gmra.mrb[0].mxu0 %v5560
      %v5753 = vpop.f32.mrb[0].mxu0
      %v5754 = vadd.f32 0.0, %v5753
      %v5755 = vpop.f32.mrb[0].mxu0
      %5756 = vmatprep.mubr.f32.mxu0 0.0
      %5757 = vmatmul.mubr.f32.gmra.mrb[0].mxu0 %v5563
      %v5758 = vpop.f32.mrb[0].mxu0
      %v5759 = vadd.f32 0.0, %v5758
      %v5760 = vpop.f32.mrb[0].mxu0
      %5761 = vmatprep.mubr.f32.mxu0 0.0
      %5762 = vmatmul.mubr.f32.gmra.mrb[0].mxu0 %v5566
      %v5763 = vpop.f32.mrb[0].mxu0
      %v5764 = vadd.f32 0.0, %v5763
      %v5765 = vpop.f32.mrb[0].mxu0
      %5766 = vmatprep.mubr.f32.mxu0 0.0
      %5767 = vmatmul.mubr.f32.gmra.mrb[0].mxu0 %v5569
      %v5768 = vpop.f32.mrb[0].mxu0
      %v5769 = vadd.f32 0.0, %v5768
      %v5770 = vpop.f32.mrb[0].mxu0
      %5771 = vmatprep.mubr.f32.mxu0 0.0
      %5772 = vmatmul.mubr.f32.gmra.mrb[0].mxu0 %v5572
      %v5773 = vpop.f32.mrb[0].mxu0
      %v5774 = vadd.f32 0.0, %v5773
      %v5775 = vpop.f32.mrb[0].mxu0
      %5776 = vmatprep.mubr.f32.mxu0 0.0
      %5777 = vmatmul.mubr.f32.gmra.mrb[0].mxu0 %v5575
      %v5778 = vpop.f32.mrb[0].mxu0
      %v5779 = vadd.f32 0.0, %v5778
      %v5780 = vpop.f32.mrb[0].mxu0
      %5781 = vdwg.mxu0
      %v5782 = vadd.f32 %v5432, %v5644
      %v5783 = vadd.f32 %v5433, %v5649
      %v5784 = vadd.f32 %v5434, %v5654
      %v5785 = vadd.f32 %v5435, %v5659
      %v5786 = vadd.f32 %v5436, %v5664
      %v5787 = vadd.f32 %v5437, %v5669
      %v5788 = vadd.f32 %v5438, %v5674
      %v5789 = vadd.f32 %v5439, %v5679
      %v5790 = vadd.f32 %v5440, %v5684
      %v5791 = vadd.f32 %v5441, %v5689
      %v5792 = vadd.f32 %v5442, %v5694
      %v5793 = vadd.f32 %v5443, %v5699
      %v5794 = vadd.f32 %v5444, %v5704
      %v5795 = vadd.f32 %v5445, %v5709
      %v5796 = vadd.f32 %v5446, %v5714
      %v5797 = vadd.f32 %v5447, %v5719
      %v5798 = vadd.f32 %v5448, %v5724
      %v5799 = vadd.f32 %v5449, %v5729
      %v5800 = vadd.f32 %v5450, %v5734
      %v5801 = vadd.f32 %v5451, %v5739
      %v5802 = vadd.f32 %v5452, %v5744
      %v5803 = vadd.f32 %v5453, %v5749
      %v5804 = vadd.f32 %v5454, %v5754
      %v5805 = vadd.f32 %v5455, %v5759
      %v5806 = vadd.f32 %v5456, %v5764
      %v5807 = vadd.f32 %v5457, %v5769
      %v5808 = vadd.f32 %v5458, %v5774
      %v5809 = vadd.f32 %v5459, %v5779
      %v5810 = vld [vmem:[#allocation2 + $0x21] sm:$0xff]
      %v5811 = vld [vmem:[#allocation2 + $0x29] sm:$0xff]
      %v5812 = vld [vmem:[#allocation2 + $0x31] sm:$0xff]
      %v5813 = vld [vmem:[#allocation2 + $0x39] sm:$0xff]
      %v5814 = vld [vmem:[#allocation2 + $0x41] sm:$0xff]
      %v5815 = vld [vmem:[#allocation2 + $0x49] sm:$0xff]
      %v5816 = vld [vmem:[#allocation2 + $0x51] sm:$0xff]
      %v5817 = vld [vmem:[#allocation2 + $0x59] sm:$0xff]
      %v5818 = vld [vmem:[#allocation2 + $0x61] sm:$0xff]
      %v5819 = vld [vmem:[#allocation2 + $0x69] sm:$0xff]
      %v5820 = vld [vmem:[#allocation2 + $0x71] sm:$0xff]
      %v5821 = vld [vmem:[#allocation2 + $0x79] sm:$0xff]
      %v5822 = vld [vmem:[#allocation2 + $0x81] sm:$0xff]
      %v5823 = vld [vmem:[#allocation2 + $0x89] sm:$0xff]
      %v5824 = vld [vmem:[#allocation2 + $0x91] sm:$0xff]
      %v5825 = vld [vmem:[#allocation2 + $0x99] sm:$0xff]
      %v5826 = vld [vmem:[#allocation2 + $0xa1] sm:$0xff]
      %v5827 = vld [vmem:[#allocation2 + $0xa9] sm:$0xff]
      %v5828 = vld [vmem:[#allocation2 + $0xb1] sm:$0xff]
      %v5829 = vld [vmem:[#allocation2 + $0xb9] sm:$0xff]
      %v5830 = vld [vmem:[#allocation2 + $0xc1] sm:$0xff]
      %v5831 = vld [vmem:[#allocation2 + $0xc9] sm:$0xff]
      %v5832 = vld [vmem:[#allocation2 + $0xd1] sm:$0xff]
      %v5833 = vld [vmem:[#allocation2 + $0xd9] sm:$0xff]
      %v5834 = vld [vmem:[#allocation2 + $0xe1] sm:$0xff]
      %v5835 = vld [vmem:[#allocation2 + $0xe9] sm:$0xff]
      %v5836 = vld [vmem:[#allocation2 + $0xf1] sm:$0xff]
      %v5837 = vld [vmem:[#allocation2 + $0xf9] sm:$0xff]
      %s5838 = scalar_lea.vmem %s3, 224
      %v5839 = vld [vmem:[%s5838] sm:$0xff]
      %v5840 = vld [vmem:[%s5838 + $0x8] sm:$0xff]
      %v5841 = vld [vmem:[%s5838 + $0x10] sm:$0xff]
      %v5842 = vld [vmem:[%s5838 + $0x18] sm:$0xff]
      %v5844 = vsel %vm3383, %v5810, 0
      %v5847 = vsel %vm3383, %v5811, 0
      %v5850 = vsel %vm3383, %v5812, 0
      %v5853 = vsel %vm3383, %v5813, 0
      %v5856 = vsel %vm3383, %v5814, 0
      %v5859 = vsel %vm3383, %v5815, 0
      %v5862 = vsel %vm3383, %v5816, 0
      %v5865 = vsel %vm3383, %v5817, 0
      %v5868 = vsel %vm3383, %v5818, 0
      %v5871 = vsel %vm3383, %v5819, 0
      %v5874 = vsel %vm3383, %v5820, 0
      %v5877 = vsel %vm3383, %v5821, 0
      %v5880 = vsel %vm3383, %v5822, 0
      %v5883 = vsel %vm3383, %v5823, 0
      %v5886 = vsel %vm3383, %v5824, 0
      %v5889 = vsel %vm3383, %v5825, 0
      %v5892 = vsel %vm3383, %v5826, 0
      %v5895 = vsel %vm3383, %v5827, 0
      %v5898 = vsel %vm3383, %v5828, 0
      %v5901 = vsel %vm3383, %v5829, 0
      %v5904 = vsel %vm3383, %v5830, 0
      %v5907 = vsel %vm3383, %v5831, 0
      %v5910 = vsel %vm3383, %v5832, 0
      %v5913 = vsel %vm3383, %v5833, 0
      %v5916 = vsel %vm3383, %v5834, 0
      %v5919 = vsel %vm3383, %v5835, 0
      %v5922 = vsel %vm3383, %v5836, 0
      %v5925 = vsel %vm3383, %v5837, 0
      %5927 = vmatprep.subr.mxu0 0.0
      %5928 = vmatpush1.msra.mxu0 %v5839
      %5929 = vmatprep.subr.mxu0 0.0
      %5930 = vmatpush1.msra.mxu0 %v5840
      %5931 = vmatprep.subr.mxu0 0.0
      %5932 = vmatpush1.msra.mxu0 %v5841
      %5933 = vmatprep.subr.mxu0 0.0
      %5934 = vmatpush1.msra.mxu0 %v5842
      %5935 = vmatprep.subr.mxu0 0.0
      %5936 = vmatpush1.msra.mxu0 0.0
      %5937 = vmatprep.subr.mxu0 0.0
      %5938 = vmatpush1.msra.mxu0 0.0
      %5939 = vmatprep.subr.mxu0 0.0
      %5940 = vmatpush1.msra.mxu0 0.0
      %5941 = vmatprep.subr.mxu0 0.0
      %5942 = vmatpush1.msra.mxu0 0.0
      %5943 = vmatprep.subr.mxu0 0.0
      %5944 = vmatpush1.msra.mxu0 0.0
      %5945 = vmatprep.subr.mxu0 0.0
      %5946 = vmatpush1.msra.mxu0 0.0
      %5947 = vmatprep.subr.mxu0 0.0
      %5948 = vmatpush1.msra.mxu0 0.0
      %5949 = vmatprep.subr.mxu0 0.0
      %5950 = vmatpush1.msra.mxu0 0.0
      %5951 = vmatprep.subr.mxu0 0.0
      %5952 = vmatpush1.msra.mxu0 0.0
      %5953 = vmatprep.subr.mxu0 0.0
      %5954 = vmatpush1.msra.mxu0 0.0
      %5955 = vmatprep.subr.mxu0 0.0
      %5956 = vmatpush1.msra.mxu0 0.0
      %5957 = vmatprep.subr.mxu0 0.0
      %5958 = vmatpush1.msra.mxu0 0.0
      %5959 = vmatprep.subr.mxu0 0.0
      %5960 = vmatpush1.msra.mxu0 0.0
      %5961 = vmatprep.subr.mxu0 0.0
      %5962 = vmatpush1.msra.mxu0 0.0
      %5963 = vmatprep.subr.mxu0 0.0
      %5964 = vmatpush1.msra.mxu0 0.0
      %5965 = vmatprep.subr.mxu0 0.0
      %5966 = vmatpush1.msra.mxu0 0.0
      %5967 = vmatprep.subr.mxu0 0.0
      %5968 = vmatpush1.msra.mxu0 0.0
      %5969 = vmatprep.subr.mxu0 0.0
      %5970 = vmatpush1.msra.mxu0 0.0
      %5971 = vmatprep.subr.mxu0 0.0
      %5972 = vmatpush1.msra.mxu0 0.0
      %5973 = vmatprep.subr.mxu0 0.0
      %5974 = vmatpush1.msra.mxu0 0.0
      %5975 = vmatprep.subr.mxu0 0.0
      %5976 = vmatpush1.msra.mxu0 0.0
      %5977 = vmatprep.subr.mxu0 0.0
      %5978 = vmatpush1.msra.mxu0 0.0
      %5979 = vmatprep.subr.mxu0 0.0
      %5980 = vmatpush1.msra.mxu0 0.0
      %5981 = vmatprep.subr.mxu0 0.0
      %5982 = vmatpush1.msra.mxu0 0.0
      %5983 = vmatprep.subr.mxu0 0.0
      %5984 = vmatpush1.msra.mxu0 0.0
      %5985 = vmatprep.subr.mxu0 0.0
      %5986 = vmatpush1.msra.mxu0 0.0
      %5987 = vmatprep.subr.mxu0 0.0
      %5988 = vmatpush1.msra.mxu0 0.0
      %5989 = vmatprep.subr.mxu0 0.0
      %5990 = vmatpush1.msra.mxu0 0.0
      %5991 = vmatprep.mubr.f32.mxu0 0.0
      %5992 = vmatmul.mubr.f32.gmra.mrb[0].mxu0 %v5844
      %v5993 = vpop.f32.mrb[0].mxu0
      %v5994 = vadd.f32 0.0, %v5993
      %v5995 = vpop.f32.mrb[0].mxu0
      %5996 = vmatprep.mubr.f32.mxu0 0.0
      %5997 = vmatmul.mubr.f32.gmra.mrb[0].mxu0 %v5847
      %v5998 = vpop.f32.mrb[0].mxu0
      %v5999 = vadd.f32 0.0, %v5998
      %v6000 = vpop.f32.mrb[0].mxu0
      %6001 = vmatprep.mubr.f32.mxu0 0.0
      %6002 = vmatmul.mubr.f32.gmra.mrb[0].mxu0 %v5850
      %v6003 = vpop.f32.mrb[0].mxu0
      %v6004 = vadd.f32 0.0, %v6003
      %v6005 = vpop.f32.mrb[0].mxu0
      %6006 = vmatprep.mubr.f32.mxu0 0.0
      %6007 = vmatmul.mubr.f32.gmra.mrb[0].mxu0 %v5853
      %v6008 = vpop.f32.mrb[0].mxu0
      %v6009 = vadd.f32 0.0, %v6008
      %v6010 = vpop.f32.mrb[0].mxu0
      %6011 = vmatprep.mubr.f32.mxu0 0.0
      %6012 = vmatmul.mubr.f32.gmra.mrb[0].mxu0 %v5856
      %v6013 = vpop.f32.mrb[0].mxu0
      %v6014 = vadd.f32 0.0, %v6013
      %v6015 = vpop.f32.mrb[0].mxu0
      %6016 = vmatprep.mubr.f32.mxu0 0.0
      %6017 = vmatmul.mubr.f32.gmra.mrb[0].mxu0 %v5859
      %v6018 = vpop.f32.mrb[0].mxu0
      %v6019 = vadd.f32 0.0, %v6018
      %v6020 = vpop.f32.mrb[0].mxu0
      %6021 = vmatprep.mubr.f32.mxu0 0.0
      %6022 = vmatmul.mubr.f32.gmra.mrb[0].mxu0 %v5862
      %v6023 = vpop.f32.mrb[0].mxu0
      %v6024 = vadd.f32 0.0, %v6023
      %v6025 = vpop.f32.mrb[0].mxu0
      %6026 = vmatprep.mubr.f32.mxu0 0.0
      %6027 = vmatmul.mubr.f32.gmra.mrb[0].mxu0 %v5865
      %v6028 = vpop.f32.mrb[0].mxu0
      %v6029 = vadd.f32 0.0, %v6028
      %v6030 = vpop.f32.mrb[0].mxu0
      %6031 = vmatprep.mubr.f32.mxu0 0.0
      %6032 = vmatmul.mubr.f32.gmra.mrb[0].mxu0 %v5868
      %v6033 = vpop.f32.mrb[0].mxu0
      %v6034 = vadd.f32 0.0, %v6033
      %v6035 = vpop.f32.mrb[0].mxu0
      %6036 = vmatprep.mubr.f32.mxu0 0.0
      %6037 = vmatmul.mubr.f32.gmra.mrb[0].mxu0 %v5871
      %v6038 = vpop.f32.mrb[0].mxu0
      %v6039 = vadd.f32 0.0, %v6038
      %v6040 = vpop.f32.mrb[0].mxu0
      %6041 = vmatprep.mubr.f32.mxu0 0.0
      %6042 = vmatmul.mubr.f32.gmra.mrb[0].mxu0 %v5874
      %v6043 = vpop.f32.mrb[0].mxu0
      %v6044 = vadd.f32 0.0, %v6043
      %v6045 = vpop.f32.mrb[0].mxu0
      %6046 = vmatprep.mubr.f32.mxu0 0.0
      %6047 = vmatmul.mubr.f32.gmra.mrb[0].mxu0 %v5877
      %v6048 = vpop.f32.mrb[0].mxu0
      %v6049 = vadd.f32 0.0, %v6048
      %v6050 = vpop.f32.mrb[0].mxu0
      %6051 = vmatprep.mubr.f32.mxu0 0.0
      %6052 = vmatmul.mubr.f32.gmra.mrb[0].mxu0 %v5880
      %v6053 = vpop.f32.mrb[0].mxu0
      %v6054 = vadd.f32 0.0, %v6053
      %v6055 = vpop.f32.mrb[0].mxu0
      %6056 = vmatprep.mubr.f32.mxu0 0.0
      %6057 = vmatmul.mubr.f32.gmra.mrb[0].mxu0 %v5883
      %v6058 = vpop.f32.mrb[0].mxu0
      %v6059 = vadd.f32 0.0, %v6058
      %v6060 = vpop.f32.mrb[0].mxu0
      %6061 = vmatprep.mubr.f32.mxu0 0.0
      %6062 = vmatmul.mubr.f32.gmra.mrb[0].mxu0 %v5886
      %v6063 = vpop.f32.mrb[0].mxu0
      %v6064 = vadd.f32 0.0, %v6063
      %v6065 = vpop.f32.mrb[0].mxu0
      %6066 = vmatprep.mubr.f32.mxu0 0.0
      %6067 = vmatmul.mubr.f32.gmra.mrb[0].mxu0 %v5889
      %v6068 = vpop.f32.mrb[0].mxu0
      %v6069 = vadd.f32 0.0, %v6068
      %v6070 = vpop.f32.mrb[0].mxu0
      %6071 = vmatprep.mubr.f32.mxu0 0.0
      %6072 = vmatmul.mubr.f32.gmra.mrb[0].mxu0 %v5892
      %v6073 = vpop.f32.mrb[0].mxu0
      %v6074 = vadd.f32 0.0, %v6073
      %v6075 = vpop.f32.mrb[0].mxu0
      %6076 = vmatprep.mubr.f32.mxu0 0.0
      %6077 = vmatmul.mubr.f32.gmra.mrb[0].mxu0 %v5895
      %v6078 = vpop.f32.mrb[0].mxu0
      %v6079 = vadd.f32 0.0, %v6078
      %v6080 = vpop.f32.mrb[0].mxu0
      %6081 = vmatprep.mubr.f32.mxu0 0.0
      %6082 = vmatmul.mubr.f32.gmra.mrb[0].mxu0 %v5898
      %v6083 = vpop.f32.mrb[0].mxu0
      %v6084 = vadd.f32 0.0, %v6083
      %v6085 = vpop.f32.mrb[0].mxu0
      %6086 = vmatprep.mubr.f32.mxu0 0.0
      %6087 = vmatmul.mubr.f32.gmra.mrb[0].mxu0 %v5901
      %v6088 = vpop.f32.mrb[0].mxu0
      %v6089 = vadd.f32 0.0, %v6088
      %v6090 = vpop.f32.mrb[0].mxu0
      %6091 = vmatprep.mubr.f32.mxu0 0.0
      %6092 = vmatmul.mubr.f32.gmra.mrb[0].mxu0 %v5904
      %v6093 = vpop.f32.mrb[0].mxu0
      %v6094 = vadd.f32 0.0, %v6093
      %v6095 = vpop.f32.mrb[0].mxu0
      %6096 = vmatprep.mubr.f32.mxu0 0.0
      %6097 = vmatmul.mubr.f32.gmra.mrb[0].mxu0 %v5907
      %v6098 = vpop.f32.mrb[0].mxu0
      %v6099 = vadd.f32 0.0, %v6098
      %v6100 = vpop.f32.mrb[0].mxu0
      %6101 = vmatprep.mubr.f32.mxu0 0.0
      %6102 = vmatmul.mubr.f32.gmra.mrb[0].mxu0 %v5910
      %v6103 = vpop.f32.mrb[0].mxu0
      %v6104 = vadd.f32 0.0, %v6103
      %v6105 = vpop.f32.mrb[0].mxu0
      %6106 = vmatprep.mubr.f32.mxu0 0.0
      %6107 = vmatmul.mubr.f32.gmra.mrb[0].mxu0 %v5913
      %v6108 = vpop.f32.mrb[0].mxu0
      %v6109 = vadd.f32 0.0, %v6108
      %v6110 = vpop.f32.mrb[0].mxu0
      %6111 = vmatprep.mubr.f32.mxu0 0.0
      %6112 = vmatmul.mubr.f32.gmra.mrb[0].mxu0 %v5916
      %v6113 = vpop.f32.mrb[0].mxu0
      %v6114 = vadd.f32 0.0, %v6113
      %v6115 = vpop.f32.mrb[0].mxu0
      %6116 = vmatprep.mubr.f32.mxu0 0.0
      %6117 = vmatmul.mubr.f32.gmra.mrb[0].mxu0 %v5919
      %v6118 = vpop.f32.mrb[0].mxu0
      %v6119 = vadd.f32 0.0, %v6118
      %v6120 = vpop.f32.mrb[0].mxu0
      %6121 = vmatprep.mubr.f32.mxu0 0.0
      %6122 = vmatmul.mubr.f32.gmra.mrb[0].mxu0 %v5922
      %v6123 = vpop.f32.mrb[0].mxu0
      %v6124 = vadd.f32 0.0, %v6123
      %v6125 = vpop.f32.mrb[0].mxu0
      %6126 = vmatprep.mubr.f32.mxu0 0.0
      %6127 = vmatmul.mubr.f32.gmra.mrb[0].mxu0 %v5925
      %v6128 = vpop.f32.mrb[0].mxu0
      %v6129 = vadd.f32 0.0, %v6128
      %v6130 = vpop.f32.mrb[0].mxu0
      %6131 = vdwg.mxu0
      %v6132 = vadd.f32 %v5782, %v5994
      %v6133 = vadd.f32 %v5783, %v5999
      %v6134 = vadd.f32 %v5784, %v6004
      %v6135 = vadd.f32 %v5785, %v6009
      %v6136 = vadd.f32 %v5786, %v6014
      %v6137 = vadd.f32 %v5787, %v6019
      %v6138 = vadd.f32 %v5788, %v6024
      %v6139 = vadd.f32 %v5789, %v6029
      %v6140 = vadd.f32 %v5790, %v6034
      %v6141 = vadd.f32 %v5791, %v6039
      %v6142 = vadd.f32 %v5792, %v6044
      %v6143 = vadd.f32 %v5793, %v6049
      %v6144 = vadd.f32 %v5794, %v6054
      %v6145 = vadd.f32 %v5795, %v6059
      %v6146 = vadd.f32 %v5796, %v6064
      %v6147 = vadd.f32 %v5797, %v6069
      %v6148 = vadd.f32 %v5798, %v6074
      %v6149 = vadd.f32 %v5799, %v6079
      %v6150 = vadd.f32 %v5800, %v6084
      %v6151 = vadd.f32 %v5801, %v6089
      %v6152 = vadd.f32 %v5802, %v6094
      %v6153 = vadd.f32 %v5803, %v6099
      %v6154 = vadd.f32 %v5804, %v6104
      %v6155 = vadd.f32 %v5805, %v6109
      %v6156 = vadd.f32 %v5806, %v6114
      %v6157 = vadd.f32 %v5807, %v6119
      %v6158 = vadd.f32 %v5808, %v6124
      %v6159 = vadd.f32 %v5809, %v6129
      %v6160 = vld [vmem:[#allocation2 + $0x22] sm:$0xff]
      %v6161 = vld [vmem:[#allocation2 + $0x2a] sm:$0xff]
      %v6162 = vld [vmem:[#allocation2 + $0x32] sm:$0xff]
      %v6163 = vld [vmem:[#allocation2 + $0x3a] sm:$0xff]
      %v6164 = vld [vmem:[#allocation2 + $0x42] sm:$0xff]
      %v6165 = vld [vmem:[#allocation2 + $0x4a] sm:$0xff]
      %v6166 = vld [vmem:[#allocation2 + $0x52] sm:$0xff]
      %v6167 = vld [vmem:[#allocation2 + $0x5a] sm:$0xff]
      %v6168 = vld [vmem:[#allocation2 + $0x62] sm:$0xff]
      %v6169 = vld [vmem:[#allocation2 + $0x6a] sm:$0xff]
      %v6170 = vld [vmem:[#allocation2 + $0x72] sm:$0xff]
      %v6171 = vld [vmem:[#allocation2 + $0x7a] sm:$0xff]
      %v6172 = vld [vmem:[#allocation2 + $0x82] sm:$0xff]
      %v6173 = vld [vmem:[#allocation2 + $0x8a] sm:$0xff]
      %v6174 = vld [vmem:[#allocation2 + $0x92] sm:$0xff]
      %v6175 = vld [vmem:[#allocation2 + $0x9a] sm:$0xff]
      %v6176 = vld [vmem:[#allocation2 + $0xa2] sm:$0xff]
      %v6177 = vld [vmem:[#allocation2 + $0xaa] sm:$0xff]
      %v6178 = vld [vmem:[#allocation2 + $0xb2] sm:$0xff]
      %v6179 = vld [vmem:[#allocation2 + $0xba] sm:$0xff]
      %v6180 = vld [vmem:[#allocation2 + $0xc2] sm:$0xff]
      %v6181 = vld [vmem:[#allocation2 + $0xca] sm:$0xff]
      %v6182 = vld [vmem:[#allocation2 + $0xd2] sm:$0xff]
      %v6183 = vld [vmem:[#allocation2 + $0xda] sm:$0xff]
      %v6184 = vld [vmem:[#allocation2 + $0xe2] sm:$0xff]
      %v6185 = vld [vmem:[#allocation2 + $0xea] sm:$0xff]
      %v6186 = vld [vmem:[#allocation2 + $0xf2] sm:$0xff]
      %v6187 = vld [vmem:[#allocation2 + $0xfa] sm:$0xff]
      %s6188 = scalar_lea.vmem %s3, 256
      %v6189 = vld [vmem:[%s6188] sm:$0xff]
      %v6190 = vld [vmem:[%s6188 + $0x8] sm:$0xff]
      %v6191 = vld [vmem:[%s6188 + $0x10] sm:$0xff]
      %v6192 = vld [vmem:[%s6188 + $0x18] sm:$0xff]
      %v6194 = vsel %vm3383, %v6160, 0
      %v6197 = vsel %vm3383, %v6161, 0
      %v6200 = vsel %vm3383, %v6162, 0
      %v6203 = vsel %vm3383, %v6163, 0
      %v6206 = vsel %vm3383, %v6164, 0
      %v6209 = vsel %vm3383, %v6165, 0
      %v6212 = vsel %vm3383, %v6166, 0
      %v6215 = vsel %vm3383, %v6167, 0
      %v6218 = vsel %vm3383, %v6168, 0
      %v6221 = vsel %vm3383, %v6169, 0
      %v6224 = vsel %vm3383, %v6170, 0
      %v6227 = vsel %vm3383, %v6171, 0
      %v6230 = vsel %vm3383, %v6172, 0
      %v6233 = vsel %vm3383, %v6173, 0
      %v6236 = vsel %vm3383, %v6174, 0
      %v6239 = vsel %vm3383, %v6175, 0
      %v6242 = vsel %vm3383, %v6176, 0
      %v6245 = vsel %vm3383, %v6177, 0
      %v6248 = vsel %vm3383, %v6178, 0
      %v6251 = vsel %vm3383, %v6179, 0
      %v6254 = vsel %vm3383, %v6180, 0
      %v6257 = vsel %vm3383, %v6181, 0
      %v6260 = vsel %vm3383, %v6182, 0
      %v6263 = vsel %vm3383, %v6183, 0
      %v6266 = vsel %vm3383, %v6184, 0
      %v6269 = vsel %vm3383, %v6185, 0
      %v6272 = vsel %vm3383, %v6186, 0
      %v6275 = vsel %vm3383, %v6187, 0
      %6277 = vmatprep.subr.mxu0 0.0
      %6278 = vmatpush1.msra.mxu0 %v6189
      %6279 = vmatprep.subr.mxu0 0.0
      %6280 = vmatpush1.msra.mxu0 %v6190
      %6281 = vmatprep.subr.mxu0 0.0
      %6282 = vmatpush1.msra.mxu0 %v6191
      %6283 = vmatprep.subr.mxu0 0.0
      %6284 = vmatpush1.msra.mxu0 %v6192
      %6285 = vmatprep.subr.mxu0 0.0
      %6286 = vmatpush1.msra.mxu0 0.0
      %6287 = vmatprep.subr.mxu0 0.0
      %6288 = vmatpush1.msra.mxu0 0.0
      %6289 = vmatprep.subr.mxu0 0.0
      %6290 = vmatpush1.msra.mxu0 0.0
      %6291 = vmatprep.subr.mxu0 0.0
      %6292 = vmatpush1.msra.mxu0 0.0
      %6293 = vmatprep.subr.mxu0 0.0
      %6294 = vmatpush1.msra.mxu0 0.0
      %6295 = vmatprep.subr.mxu0 0.0
      %6296 = vmatpush1.msra.mxu0 0.0
      %6297 = vmatprep.subr.mxu0 0.0
      %6298 = vmatpush1.msra.mxu0 0.0
      %6299 = vmatprep.subr.mxu0 0.0
      %6300 = vmatpush1.msra.mxu0 0.0
      %6301 = vmatprep.subr.mxu0 0.0
      %6302 = vmatpush1.msra.mxu0 0.0
      %6303 = vmatprep.subr.mxu0 0.0
      %6304 = vmatpush1.msra.mxu0 0.0
      %6305 = vmatprep.subr.mxu0 0.0
      %6306 = vmatpush1.msra.mxu0 0.0
      %6307 = vmatprep.subr.mxu0 0.0
      %6308 = vmatpush1.msra.mxu0 0.0
      %6309 = vmatprep.subr.mxu0 0.0
      %6310 = vmatpush1.msra.mxu0 0.0
      %6311 = vmatprep.subr.mxu0 0.0
      %6312 = vmatpush1.msra.mxu0 0.0
      %6313 = vmatprep.subr.mxu0 0.0
      %6314 = vmatpush1.msra.mxu0 0.0
      %6315 = vmatprep.subr.mxu0 0.0
      %6316 = vmatpush1.msra.mxu0 0.0
      %6317 = vmatprep.subr.mxu0 0.0
      %6318 = vmatpush1.msra.mxu0 0.0
      %6319 = vmatprep.subr.mxu0 0.0
      %6320 = vmatpush1.msra.mxu0 0.0
      %6321 = vmatprep.subr.mxu0 0.0
      %6322 = vmatpush1.msra.mxu0 0.0
      %6323 = vmatprep.subr.mxu0 0.0
      %6324 = vmatpush1.msra.mxu0 0.0
      %6325 = vmatprep.subr.mxu0 0.0
      %6326 = vmatpush1.msra.mxu0 0.0
      %6327 = vmatprep.subr.mxu0 0.0
      %6328 = vmatpush1.msra.mxu0 0.0
      %6329 = vmatprep.subr.mxu0 0.0
      %6330 = vmatpush1.msra.mxu0 0.0
      %6331 = vmatprep.subr.mxu0 0.0
      %6332 = vmatpush1.msra.mxu0 0.0
      %6333 = vmatprep.subr.mxu0 0.0
      %6334 = vmatpush1.msra.mxu0 0.0
      %6335 = vmatprep.subr.mxu0 0.0
      %6336 = vmatpush1.msra.mxu0 0.0
      %6337 = vmatprep.subr.mxu0 0.0
      %6338 = vmatpush1.msra.mxu0 0.0
      %6339 = vmatprep.subr.mxu0 0.0
      %6340 = vmatpush1.msra.mxu0 0.0
      %6341 = vmatprep.mubr.f32.mxu0 0.0
      %6342 = vmatmul.mubr.f32.gmra.mrb[0].mxu0 %v6194
      %v6343 = vpop.f32.mrb[0].mxu0
      %v6344 = vadd.f32 0.0, %v6343
      %v6345 = vpop.f32.mrb[0].mxu0
      %6346 = vmatprep.mubr.f32.mxu0 0.0
      %6347 = vmatmul.mubr.f32.gmra.mrb[0].mxu0 %v6197
      %v6348 = vpop.f32.mrb[0].mxu0
      %v6349 = vadd.f32 0.0, %v6348
      %v6350 = vpop.f32.mrb[0].mxu0
      %6351 = vmatprep.mubr.f32.mxu0 0.0
      %6352 = vmatmul.mubr.f32.gmra.mrb[0].mxu0 %v6200
      %v6353 = vpop.f32.mrb[0].mxu0
      %v6354 = vadd.f32 0.0, %v6353
      %v6355 = vpop.f32.mrb[0].mxu0
      %6356 = vmatprep.mubr.f32.mxu0 0.0
      %6357 = vmatmul.mubr.f32.gmra.mrb[0].mxu0 %v6203
      %v6358 = vpop.f32.mrb[0].mxu0
      %v6359 = vadd.f32 0.0, %v6358
      %v6360 = vpop.f32.mrb[0].mxu0
      %6361 = vmatprep.mubr.f32.mxu0 0.0
      %6362 = vmatmul.mubr.f32.gmra.mrb[0].mxu0 %v6206
      %v6363 = vpop.f32.mrb[0].mxu0
      %v6364 = vadd.f32 0.0, %v6363
      %v6365 = vpop.f32.mrb[0].mxu0
      %6366 = vmatprep.mubr.f32.mxu0 0.0
      %6367 = vmatmul.mubr.f32.gmra.mrb[0].mxu0 %v6209
      %v6368 = vpop.f32.mrb[0].mxu0
      %v6369 = vadd.f32 0.0, %v6368
      %v6370 = vpop.f32.mrb[0].mxu0
      %6371 = vmatprep.mubr.f32.mxu0 0.0
      %6372 = vmatmul.mubr.f32.gmra.mrb[0].mxu0 %v6212
      %v6373 = vpop.f32.mrb[0].mxu0
      %v6374 = vadd.f32 0.0, %v6373
      %v6375 = vpop.f32.mrb[0].mxu0
      %6376 = vmatprep.mubr.f32.mxu0 0.0
      %6377 = vmatmul.mubr.f32.gmra.mrb[0].mxu0 %v6215
      %v6378 = vpop.f32.mrb[0].mxu0
      %v6379 = vadd.f32 0.0, %v6378
      %v6380 = vpop.f32.mrb[0].mxu0
      %6381 = vmatprep.mubr.f32.mxu0 0.0
      %6382 = vmatmul.mubr.f32.gmra.mrb[0].mxu0 %v6218
      %v6383 = vpop.f32.mrb[0].mxu0
      %v6384 = vadd.f32 0.0, %v6383
      %v6385 = vpop.f32.mrb[0].mxu0
      %6386 = vmatprep.mubr.f32.mxu0 0.0
      %6387 = vmatmul.mubr.f32.gmra.mrb[0].mxu0 %v6221
      %v6388 = vpop.f32.mrb[0].mxu0
      %v6389 = vadd.f32 0.0, %v6388
      %v6390 = vpop.f32.mrb[0].mxu0
      %6391 = vmatprep.mubr.f32.mxu0 0.0
      %6392 = vmatmul.mubr.f32.gmra.mrb[0].mxu0 %v6224
      %v6393 = vpop.f32.mrb[0].mxu0
      %v6394 = vadd.f32 0.0, %v6393
      %v6395 = vpop.f32.mrb[0].mxu0
      %6396 = vmatprep.mubr.f32.mxu0 0.0
      %6397 = vmatmul.mubr.f32.gmra.mrb[0].mxu0 %v6227
      %v6398 = vpop.f32.mrb[0].mxu0
      %v6399 = vadd.f32 0.0, %v6398
      %v6400 = vpop.f32.mrb[0].mxu0
      %6401 = vmatprep.mubr.f32.mxu0 0.0
      %6402 = vmatmul.mubr.f32.gmra.mrb[0].mxu0 %v6230
      %v6403 = vpop.f32.mrb[0].mxu0
      %v6404 = vadd.f32 0.0, %v6403
      %v6405 = vpop.f32.mrb[0].mxu0
      %6406 = vmatprep.mubr.f32.mxu0 0.0
      %6407 = vmatmul.mubr.f32.gmra.mrb[0].mxu0 %v6233
      %v6408 = vpop.f32.mrb[0].mxu0
      %v6409 = vadd.f32 0.0, %v6408
      %v6410 = vpop.f32.mrb[0].mxu0
      %6411 = vmatprep.mubr.f32.mxu0 0.0
      %6412 = vmatmul.mubr.f32.gmra.mrb[0].mxu0 %v6236
      %v6413 = vpop.f32.mrb[0].mxu0
      %v6414 = vadd.f32 0.0, %v6413
      %v6415 = vpop.f32.mrb[0].mxu0
      %6416 = vmatprep.mubr.f32.mxu0 0.0
      %6417 = vmatmul.mubr.f32.gmra.mrb[0].mxu0 %v6239
      %v6418 = vpop.f32.mrb[0].mxu0
      %v6419 = vadd.f32 0.0, %v6418
      %v6420 = vpop.f32.mrb[0].mxu0
      %6421 = vmatprep.mubr.f32.mxu0 0.0
      %6422 = vmatmul.mubr.f32.gmra.mrb[0].mxu0 %v6242
      %v6423 = vpop.f32.mrb[0].mxu0
      %v6424 = vadd.f32 0.0, %v6423
      %v6425 = vpop.f32.mrb[0].mxu0
      %6426 = vmatprep.mubr.f32.mxu0 0.0
      %6427 = vmatmul.mubr.f32.gmra.mrb[0].mxu0 %v6245
      %v6428 = vpop.f32.mrb[0].mxu0
      %v6429 = vadd.f32 0.0, %v6428
      %v6430 = vpop.f32.mrb[0].mxu0
      %6431 = vmatprep.mubr.f32.mxu0 0.0
      %6432 = vmatmul.mubr.f32.gmra.mrb[0].mxu0 %v6248
      %v6433 = vpop.f32.mrb[0].mxu0
      %v6434 = vadd.f32 0.0, %v6433
      %v6435 = vpop.f32.mrb[0].mxu0
      %6436 = vmatprep.mubr.f32.mxu0 0.0
      %6437 = vmatmul.mubr.f32.gmra.mrb[0].mxu0 %v6251
      %v6438 = vpop.f32.mrb[0].mxu0
      %v6439 = vadd.f32 0.0, %v6438
      %v6440 = vpop.f32.mrb[0].mxu0
      %6441 = vmatprep.mubr.f32.mxu0 0.0
      %6442 = vmatmul.mubr.f32.gmra.mrb[0].mxu0 %v6254
      %v6443 = vpop.f32.mrb[0].mxu0
      %v6444 = vadd.f32 0.0, %v6443
      %v6445 = vpop.f32.mrb[0].mxu0
      %6446 = vmatprep.mubr.f32.mxu0 0.0
      %6447 = vmatmul.mubr.f32.gmra.mrb[0].mxu0 %v6257
      %v6448 = vpop.f32.mrb[0].mxu0
      %v6449 = vadd.f32 0.0, %v6448
      %v6450 = vpop.f32.mrb[0].mxu0
      %6451 = vmatprep.mubr.f32.mxu0 0.0
      %6452 = vmatmul.mubr.f32.gmra.mrb[0].mxu0 %v6260
      %v6453 = vpop.f32.mrb[0].mxu0
      %v6454 = vadd.f32 0.0, %v6453
      %v6455 = vpop.f32.mrb[0].mxu0
      %6456 = vmatprep.mubr.f32.mxu0 0.0
      %6457 = vmatmul.mubr.f32.gmra.mrb[0].mxu0 %v6263
      %v6458 = vpop.f32.mrb[0].mxu0
      %v6459 = vadd.f32 0.0, %v6458
      %v6460 = vpop.f32.mrb[0].mxu0
      %6461 = vmatprep.mubr.f32.mxu0 0.0
      %6462 = vmatmul.mubr.f32.gmra.mrb[0].mxu0 %v6266
      %v6463 = vpop.f32.mrb[0].mxu0
      %v6464 = vadd.f32 0.0, %v6463
      %v6465 = vpop.f32.mrb[0].mxu0
      %6466 = vmatprep.mubr.f32.mxu0 0.0
      %6467 = vmatmul.mubr.f32.gmra.mrb[0].mxu0 %v6269
      %v6468 = vpop.f32.mrb[0].mxu0
      %v6469 = vadd.f32 0.0, %v6468
      %v6470 = vpop.f32.mrb[0].mxu0
      %6471 = vmatprep.mubr.f32.mxu0 0.0
      %6472 = vmatmul.mubr.f32.gmra.mrb[0].mxu0 %v6272
      %v6473 = vpop.f32.mrb[0].mxu0
      %v6474 = vadd.f32 0.0, %v6473
      %v6475 = vpop.f32.mrb[0].mxu0
      %6476 = vmatprep.mubr.f32.mxu0 0.0
      %6477 = vmatmul.mubr.f32.gmra.mrb[0].mxu0 %v6275
      %v6478 = vpop.f32.mrb[0].mxu0
      %v6479 = vadd.f32 0.0, %v6478
      %v6480 = vpop.f32.mrb[0].mxu0
      %6481 = vdwg.mxu0
      %v6482 = vadd.f32 %v6132, %v6344
      %v6483 = vadd.f32 %v6133, %v6349
      %v6484 = vadd.f32 %v6134, %v6354
      %v6485 = vadd.f32 %v6135, %v6359
      %v6486 = vadd.f32 %v6136, %v6364
      %v6487 = vadd.f32 %v6137, %v6369
      %v6488 = vadd.f32 %v6138, %v6374
      %v6489 = vadd.f32 %v6139, %v6379
      %v6490 = vadd.f32 %v6140, %v6384
      %v6491 = vadd.f32 %v6141, %v6389
      %v6492 = vadd.f32 %v6142, %v6394
      %v6493 = vadd.f32 %v6143, %v6399
      %v6494 = vadd.f32 %v6144, %v6404
      %v6495 = vadd.f32 %v6145, %v6409
      %v6496 = vadd.f32 %v6146, %v6414
      %v6497 = vadd.f32 %v6147, %v6419
      %v6498 = vadd.f32 %v6148, %v6424
      %v6499 = vadd.f32 %v6149, %v6429
      %v6500 = vadd.f32 %v6150, %v6434
      %v6501 = vadd.f32 %v6151, %v6439
      %v6502 = vadd.f32 %v6152, %v6444
      %v6503 = vadd.f32 %v6153, %v6449
      %v6504 = vadd.f32 %v6154, %v6454
      %v6505 = vadd.f32 %v6155, %v6459
      %v6506 = vadd.f32 %v6156, %v6464
      %v6507 = vadd.f32 %v6157, %v6469
      %v6508 = vadd.f32 %v6158, %v6474
      %v6509 = vadd.f32 %v6159, %v6479
      %v6510 = vld [vmem:[%s4] sm:$0x1]
      %v6512 = vlaneseq
      %v6513 = vshrl.u32 %v6512, 7
      %v6514 = vsub.s32 0, %v6513
      %v6515 = vrot.slane %v6510, %v6514
      %v6517 = vadd.f32 %v6482, %v6515
      %v6518 = vadd.f32 %v6483, %v6515
      %v6519 = vadd.f32 %v6484, %v6515
      %v6520 = vadd.f32 %v6485, %v6515
      %v6521 = vadd.f32 %v6486, %v6515
      %v6522 = vadd.f32 %v6487, %v6515
      %v6523 = vadd.f32 %v6488, %v6515
      %v6524 = vadd.f32 %v6489, %v6515
      %v6525 = vadd.f32 %v6490, %v6515
      %v6526 = vadd.f32 %v6491, %v6515
      %v6527 = vadd.f32 %v6492, %v6515
      %v6528 = vadd.f32 %v6493, %v6515
      %v6529 = vadd.f32 %v6494, %v6515
      %v6530 = vadd.f32 %v6495, %v6515
      %v6531 = vadd.f32 %v6496, %v6515
      %v6532 = vadd.f32 %v6497, %v6515
      %v6533 = vadd.f32 %v6498, %v6515
      %v6534 = vadd.f32 %v6499, %v6515
      %v6535 = vadd.f32 %v6500, %v6515
      %v6536 = vadd.f32 %v6501, %v6515
      %v6537 = vadd.f32 %v6502, %v6515
      %v6538 = vadd.f32 %v6503, %v6515
      %v6539 = vadd.f32 %v6504, %v6515
      %v6540 = vadd.f32 %v6505, %v6515
      %v6541 = vadd.f32 %v6506, %v6515
      %v6542 = vadd.f32 %v6507, %v6515
      %v6543 = vadd.f32 %v6508, %v6515
      %v6544 = vadd.f32 %v6509, %v6515
      %v6545 = vmax.f32 %v6517, 0.0
      %v6546 = vmax.f32 %v6518, 0.0
      %v6547 = vmax.f32 %v6519, 0.0
      %v6548 = vmax.f32 %v6520, 0.0
      %v6549 = vmax.f32 %v6521, 0.0
      %v6550 = vmax.f32 %v6522, 0.0
      %v6551 = vmax.f32 %v6523, 0.0
      %v6552 = vmax.f32 %v6524, 0.0
      %v6553 = vmax.f32 %v6525, 0.0
      %v6554 = vmax.f32 %v6526, 0.0
      %v6555 = vmax.f32 %v6527, 0.0
      %v6556 = vmax.f32 %v6528, 0.0
      %v6557 = vmax.f32 %v6529, 0.0
      %v6558 = vmax.f32 %v6530, 0.0
      %v6559 = vmax.f32 %v6531, 0.0
      %v6560 = vmax.f32 %v6532, 0.0
      %v6561 = vmax.f32 %v6533, 0.0
      %v6562 = vmax.f32 %v6534, 0.0
      %v6563 = vmax.f32 %v6535, 0.0
      %v6564 = vmax.f32 %v6536, 0.0
      %v6565 = vmax.f32 %v6537, 0.0
      %v6566 = vmax.f32 %v6538, 0.0
      %v6567 = vmax.f32 %v6539, 0.0
      %v6568 = vmax.f32 %v6540, 0.0
      %v6569 = vmax.f32 %v6541, 0.0
      %v6570 = vmax.f32 %v6542, 0.0
      %v6571 = vmax.f32 %v6543, 0.0
      %v6572 = vmax.f32 %v6544, 0.0
      %vm6573 = vcmask 523264
      %6574 = vst.msk [vmem:[%s224] sm:$0xff] %vm6573, %v6545
      %6575 = vst.msk [vmem:[%s224 + $0x8] sm:$0xff] %vm6573, %v6546
      %6576 = vst.msk [vmem:[%s224 + $0x10] sm:$0xff] %vm6573, %v6547
      %6577 = vst.msk [vmem:[%s224 + $0x18] sm:$0xff] %vm6573, %v6548
      %6578 = vst.msk [vmem:[%s224 + $0x20] sm:$0xff] %vm6573, %v6549
      %6579 = vst.msk [vmem:[%s224 + $0x28] sm:$0xff] %vm6573, %v6550
      %6580 = vst.msk [vmem:[%s224 + $0x30] sm:$0xff] %vm6573, %v6551
      %6581 = vst.msk [vmem:[%s224 + $0x38] sm:$0xff] %vm6573, %v6552
      %6582 = vst.msk [vmem:[%s224 + $0x40] sm:$0xff] %vm6573, %v6553
      %6583 = vst.msk [vmem:[%s224 + $0x48] sm:$0xff] %vm6573, %v6554
      %6584 = vst.msk [vmem:[%s224 + $0x50] sm:$0xff] %vm6573, %v6555
      %6585 = vst.msk [vmem:[%s224 + $0x58] sm:$0xff] %vm6573, %v6556
      %6586 = vst.msk [vmem:[%s224 + $0x60] sm:$0xff] %vm6573, %v6557
      %6587 = vst.msk [vmem:[%s224 + $0x68] sm:$0xff] %vm6573, %v6558
      %6588 = vst.msk [vmem:[%s224 + $0x70] sm:$0xff] %vm6573, %v6559
      %6589 = vst.msk [vmem:[%s224 + $0x78] sm:$0xff] %vm6573, %v6560
      %6590 = vst.msk [vmem:[%s224 + $0x80] sm:$0xff] %vm6573, %v6561
      %6591 = vst.msk [vmem:[%s224 + $0x88] sm:$0xff] %vm6573, %v6562
      %6592 = vst.msk [vmem:[%s224 + $0x90] sm:$0xff] %vm6573, %v6563
      %6593 = vst.msk [vmem:[%s224 + $0x98] sm:$0xff] %vm6573, %v6564
      %6594 = vst.msk [vmem:[%s224 + $0xa0] sm:$0xff] %vm6573, %v6565
      %6595 = vst.msk [vmem:[%s224 + $0xa8] sm:$0xff] %vm6573, %v6566
      %6596 = vst.msk [vmem:[%s224 + $0xb0] sm:$0xff] %vm6573, %v6567
      %6597 = vst.msk [vmem:[%s224 + $0xb8] sm:$0xff] %vm6573, %v6568
      %6598 = vst.msk [vmem:[%s224 + $0xc0] sm:$0xff] %vm6573, %v6569
      %6599 = vst.msk [vmem:[%s224 + $0xc8] sm:$0xff] %vm6573, %v6570
      %6600 = vst.msk [vmem:[%s224 + $0xd0] sm:$0xff] %vm6573, %v6571
      %6601 = vst.msk [vmem:[%s224 + $0xd8] sm:$0xff] %vm6573, %v6572
      %6602 = vst.msk [vmem:[%s224 + $0xe0] sm:$0xff] %vm6573, 0.0
      %6603 = vst.msk [vmem:[%s224 + $0xe8] sm:$0xff] %vm6573, 0.0
      %6604 = vst.msk [vmem:[%s224 + $0xf0] sm:$0xff] %vm6573, 0.0
      %6605 = vst.msk [vmem:[%s224 + $0xf8] sm:$0xff] %vm6573, 0.0
      %6606 = vst.msk [vmem:[%s224 + $0x100] sm:$0xff] %vm6573, 0.0
      %p6607 = scmp.lt.s32.totalorder %s16, 1
      %s6608 = scalar_select %p6607, %s16, 1
      %s6609 = smul.addr %s6608, 33
      %s6610 = smul.addr %s6609, 8
      %s6611 = scalar_lea.vmem %s5, %s6610
      // Predicated region
      $region41: #{vgg_block_forward.1} parent=39 // pred_check
        %p6612 = pneg %p144
      $region42: #{vgg_block_forward.1} parent=39 // pred_check_branch
        %6614 = sbr.rel (%p6612) target = $region44
      $region43: #{vgg_block_forward.1} parent=39 // pred_region
        _
      $region44: #{vgg_block_forward.1} parent=39 // pred_fallthru
        _
    $region40: #{vgg_block_forward.1} parent=5 // pred_fallthru
      _
    %p6615 = scmp.le.s32.totalorder 2, %s11
    // Predicated region
    $region45: #{vgg_block_forward.1} parent=5 // pred_check
      %p6616 = pneg %p6615
    $region46: #{vgg_block_forward.1} parent=5 // pred_check_branch
      %6618 = sbr.rel (%p6616) target = $region48
    $region47: #{vgg_block_forward.1} parent=5 // pred_region
      %s6619 = ssub.s32 %s11, 2
      // Predicated region
      $region49: #{vgg_block_forward.1} parent=47 // pred_check
        %p6620 = pneg %p150
      $region50: #{vgg_block_forward.1} parent=47 // pred_check_branch
        %6622 = sbr.rel (%p6620) target = $region52
      $region51: #{vgg_block_forward.1} parent=47 // pred_region
        %p6623 = scmp.lt.s32.totalorder %s17, 1
        %s6624 = scalar_select %p6623, %s17, 1
        %s6625 = smul.addr %s6624, 33
        %s6626 = smul.addr %s6625, 8
        %s6627 = scalar_lea.vmem %s5, %s6626
      $region52: #{vgg_block_forward.1} parent=47 // pred_fallthru
        _
    $region48: #{vgg_block_forward.1} parent=5 // pred_fallthru
      _
  $region6: #{vgg_block_forward.1} parent=0 // loop_footer
    %s15 = sadd.s32 1, %s11
  $region7: #{vgg_block_forward.1} parent=0 // loop_footer_branch
    %10 = sbr.rel target = $region3
  $region8: #{vgg_block_forward.1} parent=0 // loop_exit
    _

</llo_original>
